<compile_context>
chip_gen: v5e
topology: v5e:2x2
jax: 0.10.0
libtpu: 0.0.40
codegen_flags: <defaults>
</compile_context>

<pallas_src>
import jax
import jax.numpy as jnp
from jax import lax
from jax.experimental import pallas as pl
from jax.experimental.pallas import tpu as pltpu

LEAKY_SLOPE = 0.01                      # nn.LeakyReLU() default
LN_EPS = 1e-5                           # nn.LayerNorm default eps
_HIGHEST = jax.lax.Precision.HIGHEST

_LANE = 128                             # TPU lane width
_MAX_TILE_N = 8192                      # rows per grid step (VMEM-safe on all gens)
_MIN_TILE_N = 1024                      # keep per-step overhead amortized
_TARGET_STEPS = 8                       # ~4 steps/TensorCore on v7x megacore


# ----------------------------------------------------------------------------
# Kernel
# ----------------------------------------------------------------------------
def _layer_norm_fm(z, gamma, beta):
    """Feature-major LayerNorm: z is [F, N]; normalize over axis 0 (features).

    Single pass over z for the statistics (E[z], E[z^2]); gamma/beta are [F, 1].
    Biased variance + eps inside the sqrt match nn.LayerNorm.
    """
    f = z.shape[0]
    s1 = jnp.sum(z, axis=0, keepdims=True)          # [1, N] sublane reduce
    s2 = jnp.sum(z * z, axis=0, keepdims=True)      # [1, N] sublane reduce
    mean = s1 * (1.0 / f)
    var = s2 * (1.0 / f) - mean * mean              # biased variance
    inv = lax.rsqrt(var + LN_EPS)                   # EUP slot
    return (z - mean) * inv * gamma + beta


def _leaky_relu(x):
    # max(x, 0.01*x) == LeakyReLU(negative_slope=0.01) for all x.
    return jnp.maximum(x, LEAKY_SLOPE * x)


def _decoder_kernel(x_ref,
                    w1T_ref, b1_ref, g1_ref, be1_ref,
                    w2T_ref, b2_ref, g2_ref, be2_ref,
                    w3_ref, b3_ref,
                    out_ref):
    x = x_ref[...]                                  # [tn, ld] row-major block

    # Linear 1 -> feature-major activations (batch on the 128-lane axis):
    #   z[o, n] = sum_d w1[d, o] * x[n, d]   ("NT" contraction over trailing ld)
    z = lax.dot_general(w1T_ref[...], x, (((1,), (1,)), ((), ())),
                        preferred_element_type=jnp.float32,
                        precision=_HIGHEST) + b1_ref[...]
    z = _leaky_relu(_layer_norm_fm(z, g1_ref[...], be1_ref[...]))
    z_skip = z

    # Linear 2 + LN2 + LeakyReLU (plain "NN" matmul, stays feature-major)
    z = lax.dot_general(w2T_ref[...], z, (((1,), (0,)), ((), ())),
                        preferred_element_type=jnp.float32,
                        precision=_HIGHEST) + b2_ref[...]
    z = _leaky_relu(_layer_norm_fm(z, g2_ref[...], be2_ref[...]))

    # Residual skip + Linear 3, producing the row-major output block directly:
    #   out[n, o] = sum_h z[h, n] * w3[h, o]  ("TN" contraction -> [tn, n_bands])
    z = z + z_skip
    out = lax.dot_general(z, w3_ref[...], (((0,), (0,)), ((), ())),
                          preferred_element_type=jnp.float32,
                          precision=_HIGHEST) + b3_ref[...]
    out_ref[...] = out.astype(out_ref.dtype)


# ----------------------------------------------------------------------------
# Wrapper
# ----------------------------------------------------------------------------
def _pick_tile_n(B, max_tile_n):
    """Batch tile: ~B/TARGET_STEPS rows, 128-aligned, clamped to [MIN, max]."""
    max_tile = max(_LANE, (int(max_tile_n) // _LANE) * _LANE)
    min_tile = min(_MIN_TILE_N, max_tile)
    tn = -(-B // _TARGET_STEPS)
    tn = -(-tn // _LANE) * _LANE
    tn = max(min(tn, max_tile), min_tile)
    if tn >= B:
        tn = B          # single full-array block: no padding, no ragged edge
    return tn


def spatial_spectral_decoder(x, params, *, max_tile_n=_MAX_TILE_N):
    """x: [B, ld] float32 (row-major); returns [B, n_bands] float32 (row-major)."""
    B, ld = x.shape
    H = params["w1"].shape[1]
    nb = params["w3"].shape[1]

    tn = _pick_tile_n(B, max_tile_n)
    grid = -(-B // tn)      # partial last block: OOB reads are garbage in
                            # independent lanes, OOB writes are dropped.

    # Parameter layouts for feature-major compute (tiny arrays, rearranged once).
    w1T = params["w1"].T                              # [H, ld]
    w2T = params["w2"].T                              # [H, H]
    w3 = params["w3"]                                 # [H, nb]
    col = lambda v: v.reshape(-1, 1)                  # [F] -> [F, 1] (column bias)
    b1, g1, be1 = col(params["b1"]), col(params["g1"]), col(params["be1"])
    b2, g2, be2 = col(params["b2"]), col(params["g2"]), col(params["be2"])
    b3 = params["b3"].reshape(1, -1)                  # [1, nb] (row bias for out)

    full = lambda a: pl.BlockSpec(a.shape, lambda i: (0, 0))
    in_specs = [
        pl.BlockSpec((tn, ld), lambda i: (i, 0)),     # x tiled over batch rows
        full(w1T), full(b1), full(g1), full(be1),
        full(w2T), full(b2), full(g2), full(be2),
        full(w3), full(b3),
    ]
    out_spec = pl.BlockSpec((tn, nb), lambda i: (i, 0))

    # VMEM budget from the actual block sizes: double-buffered in/out blocks
    # (their narrow minor dims are lane-padded to 128 in VMEM), ~8 live [H, tn]
    # f32 intermediates, double-buffered weights; +50% headroom.  Stays well
    # under v7x's 64 MiB physical VMEM even at the max tile.
    lane_pad = lambda d: -(-d // _LANE) * _LANE
    blk_bytes = 4 * tn * (2 * lane_pad(ld) + 2 * lane_pad(nb) + 8 * H)
    w_bytes = 8 * (ld * H + H * H + H * nb + 6 * H + nb)
    vmem_limit = int(min(max(1.5 * (blk_bytes + w_bytes), 8 << 20), 48 << 20))

    cost = pl.CostEstimate(
        flops=2 * B * (ld * H + H * H + H * nb),
        transcendentals=2 * B,                        # one rsqrt per LayerNorm per row
        bytes_accessed=4 * (B * (ld + nb)
                            + ld * H + H * H + H * nb + 6 * H + nb),
    )

    return pl.pallas_call(
        _decoder_kernel,
        out_shape=jax.ShapeDtypeStruct((B, nb), jnp.float32),
        grid_spec=pltpu.PrefetchScalarGridSpec(
            num_scalar_prefetch=0,
            grid=(grid,),
            in_specs=in_specs,
            out_specs=out_spec,
        ),
        compiler_params=pltpu.CompilerParams(
            dimension_semantics=("parallel",),
            vmem_limit_bytes=vmem_limit,
        ),
        cost_estimate=cost,
    )(x,
      w1T, b1, g1, be1,
      w2T, b2, g2, be2,
      w3, b3)


# ----------------------------------------------------------------------------
# Parameter init + pure-JAX reference (PyTorch semantics) for the self-check
# ----------------------------------------------------------------------------
def init_params(key, n_bands, ld, hidden_dim):
    """PyTorch-default-like init (uniform +/- 1/sqrt(fan_in)).
    Weights stored [in_features, out_features]; vectors stored 1-D."""
    ks = jax.random.split(key, 6)

    def linear(kw, kb, fan_in, fan_out):
        bound = 1.0 / jnp.sqrt(jnp.float32(fan_in))
        w = jax.random.uniform(kw, (fan_in, fan_out), jnp.float32, -bound, bound)
        b = jax.random.uniform(kb, (fan_out,), jnp.float32, -bound, bound)
        return w, b

    w1, b1 = linear(ks[0], ks[1], ld, hidden_dim)
    w2, b2 = linear(ks[2], ks[3], hidden_dim, hidden_dim)
    w3, b3 = linear(ks[4], ks[5], hidden_dim, n_bands)
    ones = jnp.ones((hidden_dim,), jnp.float32)
    zeros = jnp.zeros((hidden_dim,), jnp.float32)
    return dict(w1=w1, b1=b1, g1=ones, be1=zeros,
                w2=w2, b2=b2, g2=ones, be2=zeros,
                w3=w3, b3=b3)


def reference_decoder(x, p):
    """Row-major pure-JAX reference (HIGHEST-precision matmuls for parity)."""
    mm = lambda a, b: jnp.dot(a, b, precision=_HIGHEST)

    def ln(z, g, b):
        m = jnp.mean(z, -1, keepdims=True)
        v = jnp.mean((z - m) ** 2, -1, keepdims=True)
        return (z - m) / jnp.sqrt(v + LN_EPS) * g + b

    lrelu = lambda z: jnp.where(z >= 0, z, LEAKY_SLOPE * z)
    z = lrelu(ln(mm(x, p["w1"]) + p["b1"], p["g1"], p["be1"]))
    zs = z
    z = lrelu(ln(mm(z, p["w2"]) + p["b2"], p["g2"], p["be2"]))
    z = z + zs
    return mm(z, p["w3"]) + p["b3"]


if __name__ == "__main__":
    key = jax.random.PRNGKey(0)
    k_x1, k_x2, k_p = jax.random.split(key, 3)

    # Small shapes consistent with the module: latent ld=8, hidden=32, n_bands=16.
    ld, hidden_dim, n_bands = 8, 32, 16
    params = init_params(k_p, n_bands, ld, hidden_dim)

    # Case 1: small batch -> single full-array block (no padding, no ragged edge).
    x1 = jax.random.normal(k_x1, (256, ld), jnp.float32)
    out1 = jax.block_until_ready(spatial_spectral_decoder(x1, params))
    ref1 = reference_decoder(x1, params)
    assert out1.shape == (256, n_bands)
    assert jnp.allclose(out1, ref1, atol=1e-4, rtol=1e-4), "mismatch vs reference (B=256)"

    # Case 2: ragged batch with a forced small tile -> 2-step grid whose last
    # block is partial (exercises the no-padding boundary path used for large B).
    x2 = jax.random.normal(k_x2, (200, ld), jnp.float32)
    out2 = jax.block_until_ready(spatial_spectral_decoder(x2, params, max_tile_n=128))
    ref2 = reference_decoder(x2, params)
    assert out2.shape == (200, n_bands)
    assert jnp.allclose(out2, ref2, atol=1e-4, rtol=1e-4), "mismatch vs reference (B=200)"

    print("KERNEL_OK")
</pallas_src>

<mosaic_0001>
module attributes {stable_mosaic.version = 11 : i64} {
  func.func @_decoder_kernel(%arg0: i32, %arg1: memref<256x8xf32, #tpu.memory_space<vmem>>, %arg2: memref<32x8xf32, #tpu.memory_space<vmem>>, %arg3: memref<32x1xf32, #tpu.memory_space<vmem>>, %arg4: memref<32x1xf32, #tpu.memory_space<vmem>>, %arg5: memref<32x1xf32, #tpu.memory_space<vmem>>, %arg6: memref<32x32xf32, #tpu.memory_space<vmem>>, %arg7: memref<32x1xf32, #tpu.memory_space<vmem>>, %arg8: memref<32x1xf32, #tpu.memory_space<vmem>>, %arg9: memref<32x1xf32, #tpu.memory_space<vmem>>, %arg10: memref<32x16xf32, #tpu.memory_space<vmem>>, %arg11: memref<1x16xf32, #tpu.memory_space<vmem>>, %arg12: memref<256x16xf32, #tpu.memory_space<vmem>>) attributes {dimension_semantics = [#tpu.dimension_semantics<parallel>], iteration_bounds = array<i64: 1>, scalar_prefetch = 0 : i64, scratch_operands = 0 : i64, tpu.core_type = #tpu.core_type<tc>, window_params = [{transform_indices = @transform_0, window_bounds = array<i64: 256, 8>}, {pipeline_mode = #tpu.pipeline_mode<synchronous>, transform_indices = @transform_1, window_bounds = array<i64: 32, 8>}, {pipeline_mode = #tpu.pipeline_mode<synchronous>, transform_indices = @transform_2, window_bounds = array<i64: 32, 1>}, {pipeline_mode = #tpu.pipeline_mode<synchronous>, transform_indices = @transform_3, window_bounds = array<i64: 32, 1>}, {pipeline_mode = #tpu.pipeline_mode<synchronous>, transform_indices = @transform_4, window_bounds = array<i64: 32, 1>}, {pipeline_mode = #tpu.pipeline_mode<synchronous>, transform_indices = @transform_5, window_bounds = array<i64: 32, 32>}, {pipeline_mode = #tpu.pipeline_mode<synchronous>, transform_indices = @transform_6, window_bounds = array<i64: 32, 1>}, {pipeline_mode = #tpu.pipeline_mode<synchronous>, transform_indices = @transform_7, window_bounds = array<i64: 32, 1>}, {pipeline_mode = #tpu.pipeline_mode<synchronous>, transform_indices = @transform_8, window_bounds = array<i64: 32, 1>}, {pipeline_mode = #tpu.pipeline_mode<synchronous>, transform_indices = @transform_9, window_bounds = array<i64: 32, 16>}, {pipeline_mode = #tpu.pipeline_mode<synchronous>, transform_indices = @transform_10, window_bounds = array<i64: 1, 16>}, {transform_indices = @transform_11, window_bounds = array<i64: 256, 16>}]} {
    %c0 = arith.constant 0 : index
    %c0_0 = arith.constant 0 : index
    %0 = vector.load %arg1[%c0, %c0_0] : memref<256x8xf32, #tpu.memory_space<vmem>>, vector<256x8xf32>
    %c0_1 = arith.constant 0 : index
    %c0_2 = arith.constant 0 : index
    %1 = vector.load %arg2[%c0_1, %c0_2] : memref<32x8xf32, #tpu.memory_space<vmem>>, vector<32x8xf32>
    %cst = arith.constant dense<0.000000e+00> : vector<32x256xf32>
    %2 = tpu.matmul %1, %0, %cst {dimension_numbers = #tpu.dot_dimension_numbers<[1], [1], [0], [0], [0, 0, 1, 0], [], []>, precision = #tpu.contract_precision<fp32>} : vector<32x8xf32>, vector<256x8xf32>, vector<32x256xf32> -> vector<32x256xf32>
    %c0_3 = arith.constant 0 : index
    %c0_4 = arith.constant 0 : index
    %3 = vector.load %arg3[%c0_3, %c0_4] : memref<32x1xf32, #tpu.memory_space<vmem>>, vector<32x1xf32>
    %4 = vector.broadcast %3 : vector<32x1xf32> to vector<32x256xf32>
    %5 = arith.addf %2, %4 : vector<32x256xf32>
    %c0_5 = arith.constant 0 : index
    %c0_6 = arith.constant 0 : index
    %6 = vector.load %arg4[%c0_5, %c0_6] : memref<32x1xf32, #tpu.memory_space<vmem>>, vector<32x1xf32>
    %c0_7 = arith.constant 0 : index
    %c0_8 = arith.constant 0 : index
    %7 = vector.load %arg5[%c0_7, %c0_8] : memref<32x1xf32, #tpu.memory_space<vmem>>, vector<32x1xf32>
    %cst_9 = arith.constant dense<0.000000e+00> : vector<256xf32>
    %8 = vector.multi_reduction <add>, %5, %cst_9 [0] : vector<32x256xf32> to vector<256xf32>
    %9 = vector.shape_cast %8 : vector<256xf32> to vector<1x256xf32>
    %10 = arith.mulf %5, %5 : vector<32x256xf32>
    %cst_10 = arith.constant dense<0.000000e+00> : vector<256xf32>
    %11 = vector.multi_reduction <add>, %10, %cst_10 [0] : vector<32x256xf32> to vector<256xf32>
    %12 = vector.shape_cast %11 : vector<256xf32> to vector<1x256xf32>
    %cst_11 = arith.constant 3.125000e-02 : f32
    %13 = vector.broadcast %cst_11 : f32 to vector<1x256xf32>
    %14 = arith.mulf %9, %13 : vector<1x256xf32>
    %cst_12 = arith.constant 3.125000e-02 : f32
    %15 = vector.broadcast %cst_12 : f32 to vector<1x256xf32>
    %16 = arith.mulf %12, %15 : vector<1x256xf32>
    %17 = arith.mulf %14, %14 : vector<1x256xf32>
    %18 = arith.subf %16, %17 : vector<1x256xf32>
    %cst_13 = arith.constant 9.99999974E-6 : f32
    %19 = vector.broadcast %cst_13 : f32 to vector<1x256xf32>
    %20 = arith.addf %18, %19 : vector<1x256xf32>
    %21 = math.rsqrt %20 : vector<1x256xf32>
    %22 = vector.broadcast %14 : vector<1x256xf32> to vector<32x256xf32>
    %23 = arith.subf %5, %22 : vector<32x256xf32>
    %24 = vector.broadcast %21 : vector<1x256xf32> to vector<32x256xf32>
    %25 = arith.mulf %23, %24 : vector<32x256xf32>
    %26 = vector.broadcast %6 : vector<32x1xf32> to vector<32x256xf32>
    %27 = arith.mulf %25, %26 : vector<32x256xf32>
    %28 = vector.broadcast %7 : vector<32x1xf32> to vector<32x256xf32>
    %29 = arith.addf %27, %28 : vector<32x256xf32>
    %cst_14 = arith.constant 0.00999999977 : f32
    %30 = vector.broadcast %cst_14 : f32 to vector<32x256xf32>
    %31 = arith.mulf %30, %29 : vector<32x256xf32>
    %32 = arith.maximumf %29, %31 : vector<32x256xf32>
    %c0_15 = arith.constant 0 : index
    %c0_16 = arith.constant 0 : index
    %33 = vector.load %arg6[%c0_15, %c0_16] : memref<32x32xf32, #tpu.memory_space<vmem>>, vector<32x32xf32>
    %cst_17 = arith.constant dense<0.000000e+00> : vector<32x256xf32>
    %34 = tpu.matmul %33, %32, %cst_17 {dimension_numbers = #tpu.dot_dimension_numbers<[1], [0], [0], [1], [0, 0, 1, 1], [], []>, precision = #tpu.contract_precision<fp32>} : vector<32x32xf32>, vector<32x256xf32>, vector<32x256xf32> -> vector<32x256xf32>
    %c0_18 = arith.constant 0 : index
    %c0_19 = arith.constant 0 : index
    %35 = vector.load %arg7[%c0_18, %c0_19] : memref<32x1xf32, #tpu.memory_space<vmem>>, vector<32x1xf32>
    %36 = vector.broadcast %35 : vector<32x1xf32> to vector<32x256xf32>
    %37 = arith.addf %34, %36 : vector<32x256xf32>
    %c0_20 = arith.constant 0 : index
    %c0_21 = arith.constant 0 : index
    %38 = vector.load %arg8[%c0_20, %c0_21] : memref<32x1xf32, #tpu.memory_space<vmem>>, vector<32x1xf32>
    %c0_22 = arith.constant 0 : index
    %c0_23 = arith.constant 0 : index
    %39 = vector.load %arg9[%c0_22, %c0_23] : memref<32x1xf32, #tpu.memory_space<vmem>>, vector<32x1xf32>
    %cst_24 = arith.constant dense<0.000000e+00> : vector<256xf32>
    %40 = vector.multi_reduction <add>, %37, %cst_24 [0] : vector<32x256xf32> to vector<256xf32>
    %41 = vector.shape_cast %40 : vector<256xf32> to vector<1x256xf32>
    %42 = arith.mulf %37, %37 : vector<32x256xf32>
    %cst_25 = arith.constant dense<0.000000e+00> : vector<256xf32>
    %43 = vector.multi_reduction <add>, %42, %cst_25 [0] : vector<32x256xf32> to vector<256xf32>
    %44 = vector.shape_cast %43 : vector<256xf32> to vector<1x256xf32>
    %cst_26 = arith.constant 3.125000e-02 : f32
    %45 = vector.broadcast %cst_26 : f32 to vector<1x256xf32>
    %46 = arith.mulf %41, %45 : vector<1x256xf32>
    %cst_27 = arith.constant 3.125000e-02 : f32
    %47 = vector.broadcast %cst_27 : f32 to vector<1x256xf32>
    %48 = arith.mulf %44, %47 : vector<1x256xf32>
    %49 = arith.mulf %46, %46 : vector<1x256xf32>
    %50 = arith.subf %48, %49 : vector<1x256xf32>
    %cst_28 = arith.constant 9.99999974E-6 : f32
    %51 = vector.broadcast %cst_28 : f32 to vector<1x256xf32>
    %52 = arith.addf %50, %51 : vector<1x256xf32>
    %53 = math.rsqrt %52 : vector<1x256xf32>
    %54 = vector.broadcast %46 : vector<1x256xf32> to vector<32x256xf32>
    %55 = arith.subf %37, %54 : vector<32x256xf32>
    %56 = vector.broadcast %53 : vector<1x256xf32> to vector<32x256xf32>
    %57 = arith.mulf %55, %56 : vector<32x256xf32>
    %58 = vector.broadcast %38 : vector<32x1xf32> to vector<32x256xf32>
    %59 = arith.mulf %57, %58 : vector<32x256xf32>
    %60 = vector.broadcast %39 : vector<32x1xf32> to vector<32x256xf32>
    %61 = arith.addf %59, %60 : vector<32x256xf32>
    %cst_29 = arith.constant 0.00999999977 : f32
    %62 = vector.broadcast %cst_29 : f32 to vector<32x256xf32>
    %63 = arith.mulf %62, %61 : vector<32x256xf32>
    %64 = arith.maximumf %61, %63 : vector<32x256xf32>
    %65 = arith.addf %64, %32 : vector<32x256xf32>
    %c0_30 = arith.constant 0 : index
    %c0_31 = arith.constant 0 : index
    %66 = vector.load %arg10[%c0_30, %c0_31] : memref<32x16xf32, #tpu.memory_space<vmem>>, vector<32x16xf32>
    %cst_32 = arith.constant dense<0.000000e+00> : vector<256x16xf32>
    %67 = tpu.matmul %65, %66, %cst_32 {dimension_numbers = #tpu.dot_dimension_numbers<[0], [0], [1], [1], [0, 1, 1, 1], [], []>, precision = #tpu.contract_precision<fp32>} : vector<32x256xf32>, vector<32x16xf32>, vector<256x16xf32> -> vector<256x16xf32>
    %c0_33 = arith.constant 0 : index
    %c0_34 = arith.constant 0 : index
    %68 = vector.load %arg11[%c0_33, %c0_34] : memref<1x16xf32, #tpu.memory_space<vmem>>, vector<1x16xf32>
    %69 = vector.broadcast %68 : vector<1x16xf32> to vector<256x16xf32>
    %70 = arith.addf %67, %69 : vector<256x16xf32>
    %c0_35 = arith.constant 0 : index
    %c0_36 = arith.constant 0 : index
    %71 = vector.load %arg12[%c0_35, %c0_36] : memref<256x16xf32, #tpu.memory_space<vmem>>, vector<256x16xf32>
    tpu.vector_store %arg12[%c0_35, %c0_36], %70 {strides = array<i32>} : memref<256x16xf32, #tpu.memory_space<vmem>>, vector<256x16xf32>,
    return
  }
  func.func @transform_0(%arg0: i32) -> (i32, i32) {
    %c0_i32 = arith.constant 0 : i32
    %c0_i32_0 = arith.constant 0 : i32
    return %arg0, %c0_i32 : i32, i32
  }
  func.func @transform_1(%arg0: i32) -> (i32, i32) {
    %c0_i32 = arith.constant 0 : i32
    %c0_i32_0 = arith.constant 0 : i32
    %c0_i32_1 = arith.constant 0 : i32
    return %c0_i32, %c0_i32_0 : i32, i32
  }
  func.func @transform_2(%arg0: i32) -> (i32, i32) {
    %c0_i32 = arith.constant 0 : i32
    %c0_i32_0 = arith.constant 0 : i32
    %c0_i32_1 = arith.constant 0 : i32
    return %c0_i32, %c0_i32_0 : i32, i32
  }
  func.func @transform_3(%arg0: i32) -> (i32, i32) {
    %c0_i32 = arith.constant 0 : i32
    %c0_i32_0 = arith.constant 0 : i32
    %c0_i32_1 = arith.constant 0 : i32
    return %c0_i32, %c0_i32_0 : i32, i32
  }
  func.func @transform_4(%arg0: i32) -> (i32, i32) {
    %c0_i32 = arith.constant 0 : i32
    %c0_i32_0 = arith.constant 0 : i32
    %c0_i32_1 = arith.constant 0 : i32
    return %c0_i32, %c0_i32_0 : i32, i32
  }
  func.func @transform_5(%arg0: i32) -> (i32, i32) {
    %c0_i32 = arith.constant 0 : i32
    %c0_i32_0 = arith.constant 0 : i32
    %c0_i32_1 = arith.constant 0 : i32
    return %c0_i32, %c0_i32_0 : i32, i32
  }
  func.func @transform_6(%arg0: i32) -> (i32, i32) {
    %c0_i32 = arith.constant 0 : i32
    %c0_i32_0 = arith.constant 0 : i32
    %c0_i32_1 = arith.constant 0 : i32
    return %c0_i32, %c0_i32_0 : i32, i32
  }
  func.func @transform_7(%arg0: i32) -> (i32, i32) {
    %c0_i32 = arith.constant 0 : i32
    %c0_i32_0 = arith.constant 0 : i32
    %c0_i32_1 = arith.constant 0 : i32
    return %c0_i32, %c0_i32_0 : i32, i32
  }
  func.func @transform_8(%arg0: i32) -> (i32, i32) {
    %c0_i32 = arith.constant 0 : i32
    %c0_i32_0 = arith.constant 0 : i32
    %c0_i32_1 = arith.constant 0 : i32
    return %c0_i32, %c0_i32_0 : i32, i32
  }
  func.func @transform_9(%arg0: i32) -> (i32, i32) {
    %c0_i32 = arith.constant 0 : i32
    %c0_i32_0 = arith.constant 0 : i32
    %c0_i32_1 = arith.constant 0 : i32
    return %c0_i32, %c0_i32_0 : i32, i32
  }
  func.func @transform_10(%arg0: i32) -> (i32, i32) {
    %c0_i32 = arith.constant 0 : i32
    %c0_i32_0 = arith.constant 0 : i32
    %c0_i32_1 = arith.constant 0 : i32
    return %c0_i32, %c0_i32_0 : i32, i32
  }
  func.func @transform_11(%arg0: i32) -> (i32, i32) {
    %c0_i32 = arith.constant 0 : i32
    %c0_i32_0 = arith.constant 0 : i32
    return %arg0, %c0_i32 : i32, i32
  }
}

</mosaic_0001>

<llo_original>
// kernel: tpu_custom_call.1
$region0: #{tpu_custom_call.1}
  #allocation0 [shape = 'u32[]', space=smem, size = 0x4, offset = 0x4, fixed_abs, tag = 'smem constant byte address 0x4 - core index']
  #allocation1 [shape = 'u32[72,128]{1,0:T(1,128)}', space=vmem, size = 0x9000, scoped, tag = 'internal scratch']
  %s0 = inlined_call_operand.vmem [shape: f32[256,8], index: 0, kind: input, shape index: {}]
  %s1 = inlined_call_operand.vmem [shape: f32[32,8], index: 1, kind: input, shape index: {}]
  %s2 = inlined_call_operand.vmem [shape: f32[32,1], index: 2, kind: input, shape index: {}]
  %s3 = inlined_call_operand.vmem [shape: f32[32,1], index: 3, kind: input, shape index: {}]
  %s4 = inlined_call_operand.vmem [shape: f32[32,1], index: 4, kind: input, shape index: {}]
  %s5 = inlined_call_operand.vmem [shape: f32[32,32], index: 5, kind: input, shape index: {}]
  %s6 = inlined_call_operand.vmem [shape: f32[32,1], index: 6, kind: input, shape index: {}]
  %s7 = inlined_call_operand.vmem [shape: f32[32,1], index: 7, kind: input, shape index: {}]
  %s8 = inlined_call_operand.vmem [shape: f32[32,1], index: 8, kind: input, shape index: {}]
  %s9 = inlined_call_operand.vmem [shape: f32[32,16], index: 9, kind: input, shape index: {}]
  %s10 = inlined_call_operand.vmem [shape: f32[1,16], index: 10, kind: input, shape index: {}]
  %s11 = inlined_call_operand.vmem [shape: f32[256,16], index: 11, kind: output, shape index: {}]
  %s12 = sld [smem:[#allocation0]]
  $region54: #{tpu_custom_call.1} parent=0
    _
  %s14 = ssub.s32 1, %s12
  %s15 = scalar_select 0, %s14, %s12
  // Predicated region
  $region2: #{tpu_custom_call.1} parent=0 // pred_check
    _
  $region3: #{tpu_custom_call.1} parent=0 // pred_check_branch
    %17 = sbr.rel (0) target = $region5
  $region4: #{tpu_custom_call.1} parent=0 // pred_region
    _
  $region5: #{tpu_custom_call.1} parent=0 // pred_fallthru
    _
  // Predicated region
  $region6: #{tpu_custom_call.1} parent=0 // pred_check
    _
  $region7: #{tpu_custom_call.1} parent=0 // pred_check_branch
    %19 = sbr.rel (0) target = $region9
  $region8: #{tpu_custom_call.1} parent=0 // pred_region
    _
  $region9: #{tpu_custom_call.1} parent=0 // pred_fallthru
    _
  // Predicated region
  $region10: #{tpu_custom_call.1} parent=0 // pred_check
    _
  $region11: #{tpu_custom_call.1} parent=0 // pred_check_branch
    %21 = sbr.rel (0) target = $region13
  $region12: #{tpu_custom_call.1} parent=0 // pred_region
    _
  $region13: #{tpu_custom_call.1} parent=0 // pred_fallthru
    _
  // Predicated region
  $region14: #{tpu_custom_call.1} parent=0 // pred_check
    _
  $region15: #{tpu_custom_call.1} parent=0 // pred_check_branch
    %23 = sbr.rel (0) target = $region17
  $region16: #{tpu_custom_call.1} parent=0 // pred_region
    _
  $region17: #{tpu_custom_call.1} parent=0 // pred_fallthru
    _
  // Predicated region
  $region18: #{tpu_custom_call.1} parent=0 // pred_check
    _
  $region19: #{tpu_custom_call.1} parent=0 // pred_check_branch
    %25 = sbr.rel (0) target = $region21
  $region20: #{tpu_custom_call.1} parent=0 // pred_region
    _
  $region21: #{tpu_custom_call.1} parent=0 // pred_fallthru
    _
  // Predicated region
  $region22: #{tpu_custom_call.1} parent=0 // pred_check
    _
  $region23: #{tpu_custom_call.1} parent=0 // pred_check_branch
    %27 = sbr.rel (0) target = $region25
  $region24: #{tpu_custom_call.1} parent=0 // pred_region
    _
  $region25: #{tpu_custom_call.1} parent=0 // pred_fallthru
    _
  // Predicated region
  $region26: #{tpu_custom_call.1} parent=0 // pred_check
    _
  $region27: #{tpu_custom_call.1} parent=0 // pred_check_branch
    %29 = sbr.rel (0) target = $region29
  $region28: #{tpu_custom_call.1} parent=0 // pred_region
    _
  $region29: #{tpu_custom_call.1} parent=0 // pred_fallthru
    _
  // Predicated region
  $region30: #{tpu_custom_call.1} parent=0 // pred_check
    _
  $region31: #{tpu_custom_call.1} parent=0 // pred_check_branch
    %31 = sbr.rel (0) target = $region33
  $region32: #{tpu_custom_call.1} parent=0 // pred_region
    _
  $region33: #{tpu_custom_call.1} parent=0 // pred_fallthru
    _
  // Predicated region
  $region34: #{tpu_custom_call.1} parent=0 // pred_check
    _
  $region35: #{tpu_custom_call.1} parent=0 // pred_check_branch
    %33 = sbr.rel (0) target = $region37
  $region36: #{tpu_custom_call.1} parent=0 // pred_region
    _
  $region37: #{tpu_custom_call.1} parent=0 // pred_fallthru
    _
  // Predicated region
  $region38: #{tpu_custom_call.1} parent=0 // pred_check
    _
  $region39: #{tpu_custom_call.1} parent=0 // pred_check_branch
    %35 = sbr.rel (0) target = $region41
  $region40: #{tpu_custom_call.1} parent=0 // pred_region
    _
  $region41: #{tpu_custom_call.1} parent=0 // pred_fallthru
    _
  // Predicated region
  $region42: #{tpu_custom_call.1} parent=0 // pred_check
    _
  $region43: #{tpu_custom_call.1} parent=0 // pred_check_branch
    %37 = sbr.rel (0) target = $region45
  $region44: #{tpu_custom_call.1} parent=0 // pred_region
    _
  $region45: #{tpu_custom_call.1} parent=0 // pred_fallthru
    _
  %v38 = vld [vmem:[%s0] sm:$0xff]
  %v39 = vld [vmem:[%s0 + $0x8] sm:$0xff]
  %v40 = vld [vmem:[%s0 + $0x10] sm:$0xff]
  %v41 = vld [vmem:[%s0 + $0x18] sm:$0xff]
  %v42 = vld [vmem:[%s0 + $0x20] sm:$0xff]
  %v43 = vld [vmem:[%s0 + $0x28] sm:$0xff]
  %v44 = vld [vmem:[%s0 + $0x30] sm:$0xff]
  %v45 = vld [vmem:[%s0 + $0x38] sm:$0xff]
  %v46 = vld [vmem:[%s0 + $0x40] sm:$0xff]
  %v47 = vld [vmem:[%s0 + $0x48] sm:$0xff]
  %v48 = vld [vmem:[%s0 + $0x50] sm:$0xff]
  %v49 = vld [vmem:[%s0 + $0x58] sm:$0xff]
  %v50 = vld [vmem:[%s0 + $0x60] sm:$0xff]
  %v51 = vld [vmem:[%s0 + $0x68] sm:$0xff]
  %v52 = vld [vmem:[%s0 + $0x70] sm:$0xff]
  %v53 = vld [vmem:[%s0 + $0x78] sm:$0xff]
  %v54 = vld [vmem:[%s0 + $0x80] sm:$0xff]
  %v55 = vld [vmem:[%s0 + $0x88] sm:$0xff]
  %v56 = vld [vmem:[%s0 + $0x90] sm:$0xff]
  %v57 = vld [vmem:[%s0 + $0x98] sm:$0xff]
  %v58 = vld [vmem:[%s0 + $0xa0] sm:$0xff]
  %v59 = vld [vmem:[%s0 + $0xa8] sm:$0xff]
  %v60 = vld [vmem:[%s0 + $0xb0] sm:$0xff]
  %v61 = vld [vmem:[%s0 + $0xb8] sm:$0xff]
  %v62 = vld [vmem:[%s0 + $0xc0] sm:$0xff]
  %v63 = vld [vmem:[%s0 + $0xc8] sm:$0xff]
  %v64 = vld [vmem:[%s0 + $0xd0] sm:$0xff]
  %v65 = vld [vmem:[%s0 + $0xd8] sm:$0xff]
  %v66 = vld [vmem:[%s0 + $0xe0] sm:$0xff]
  %v67 = vld [vmem:[%s0 + $0xe8] sm:$0xff]
  %v68 = vld [vmem:[%s0 + $0xf0] sm:$0xff]
  %v69 = vld [vmem:[%s0 + $0xf8] sm:$0xff]
  %v70 = vld [vmem:[%s1] sm:$0xff]
  %v71 = vld [vmem:[%s1 + $0x8] sm:$0xff]
  %v72 = vld [vmem:[%s1 + $0x10] sm:$0xff]
  %v73 = vld [vmem:[%s1 + $0x18] sm:$0xff]
  %v74 = vld [vmem:[%s2] sm:$0xff]
  %v75 = vld [vmem:[%s2 + $0x8] sm:$0xff]
  %v76 = vld [vmem:[%s2 + $0x10] sm:$0xff]
  %v77 = vld [vmem:[%s2 + $0x18] sm:$0xff]
  %79 = vset.pattern.permute.xlu0 0
  %80 = vperm.xlu0 %79, %v74
  %v81 = vpop.permute.xlu0 %80
  %84 = vset.pattern.permute.xlu0 0
  %85 = vperm.xlu0 %84, %v75
  %v86 = vpop.permute.xlu0 %85
  %89 = vset.pattern.permute.xlu0 0
  %90 = vperm.xlu0 %89, %v76
  %v91 = vpop.permute.xlu0 %90
  %94 = vset.pattern.permute.xlu0 0
  %95 = vperm.xlu0 %94, %v77
  %v96 = vpop.permute.xlu0 %95
  %vm98 = vcmask 64512
  %v100 = vsel %vm98, %v70, 0
  %v103 = vsel %vm98, %v71, 0
  %v106 = vsel %vm98, %v72, 0
  %v109 = vsel %vm98, %v73, 0
  %v112 = vsel %vm98, %v38, 0
  %v115 = vsel %vm98, %v39, 0
  %v118 = vsel %vm98, %v40, 0
  %v121 = vsel %vm98, %v41, 0
  %v124 = vsel %vm98, %v42, 0
  %v127 = vsel %vm98, %v43, 0
  %v130 = vsel %vm98, %v44, 0
  %v133 = vsel %vm98, %v45, 0
  %v136 = vsel %vm98, %v46, 0
  %v139 = vsel %vm98, %v47, 0
  %v142 = vsel %vm98, %v48, 0
  %v145 = vsel %vm98, %v49, 0
  %v148 = vsel %vm98, %v50, 0
  %v151 = vsel %vm98, %v51, 0
  %v154 = vsel %vm98, %v52, 0
  %v157 = vsel %vm98, %v53, 0
  %v160 = vsel %vm98, %v54, 0
  %v163 = vsel %vm98, %v55, 0
  %v166 = vsel %vm98, %v56, 0
  %v169 = vsel %vm98, %v57, 0
  %v172 = vsel %vm98, %v58, 0
  %v175 = vsel %vm98, %v59, 0
  %v178 = vsel %vm98, %v60, 0
  %v181 = vsel %vm98, %v61, 0
  %v184 = vsel %vm98, %v62, 0
  %v187 = vsel %vm98, %v63, 0
  %v190 = vsel %vm98, %v64, 0
  %v193 = vsel %vm98, %v65, 0
  %v196 = vsel %vm98, %v66, 0
  %v199 = vsel %vm98, %v67, 0
  %v202 = vsel %vm98, %v68, 0
  %v205 = vsel %vm98, %v69, 0
  %v207 = vand.u32 %v157, 4294901760
  %208 = vmatpush.xpose.msra.mxu0 %v207
  %v209 = vand.u32 %v154, 4294901760
  %210 = vmatpush.xpose.msra.mxu0 %v209
  %v211 = vand.u32 %v151, 4294901760
  %212 = vmatpush.xpose.msra.mxu0 %v211
  %v213 = vand.u32 %v148, 4294901760
  %214 = vmatpush.xpose.msra.mxu0 %v213
  %v215 = vand.u32 %v145, 4294901760
  %216 = vmatpush.xpose.msra.mxu0 %v215
  %v217 = vand.u32 %v142, 4294901760
  %218 = vmatpush.xpose.msra.mxu0 %v217
  %v219 = vand.u32 %v139, 4294901760
  %220 = vmatpush.xpose.msra.mxu0 %v219
  %v221 = vand.u32 %v136, 4294901760
  %222 = vmatpush.xpose.msra.mxu0 %v221
  %v223 = vand.u32 %v133, 4294901760
  %224 = vmatpush.xpose.msra.mxu0 %v223
  %v225 = vand.u32 %v130, 4294901760
  %226 = vmatpush.xpose.msra.mxu0 %v225
  %v227 = vand.u32 %v127, 4294901760
  %228 = vmatpush.xpose.msra.mxu0 %v227
  %v229 = vand.u32 %v124, 4294901760
  %230 = vmatpush.xpose.msra.mxu0 %v229
  %v231 = vand.u32 %v121, 4294901760
  %232 = vmatpush.xpose.msra.mxu0 %v231
  %v233 = vand.u32 %v118, 4294901760
  %234 = vmatpush.xpose.msra.mxu0 %v233
  %v235 = vand.u32 %v115, 4294901760
  %236 = vmatpush.xpose.msra.mxu0 %v235
  %v237 = vand.u32 %v112, 4294901760
  %238 = vmatpush.xpose.msra.mxu0 %v237
  %v239 = vand.u32 %v100, 4294901760
  %v240 = vsub.f32 %v100, %v239
  %v241 = vand.u32 %v240, 4294901760
  %v242 = vsub.f32 %v240, %v241
  %v243 = vand.u32 %v242, 4294901760
  %244 = vmatmul.f32.gmra.mxu0 %v243
  %v245 = vpop.f32.mrf.mxu0
  %v246 = vadd.f32 %v81, %v245
  %v247 = vand.u32 %v103, 4294901760
  %v248 = vsub.f32 %v103, %v247
  %v249 = vand.u32 %v248, 4294901760
  %v250 = vsub.f32 %v248, %v249
  %v251 = vand.u32 %v250, 4294901760
  %252 = vmatmul.f32.gmra.mxu0 %v251
  %v253 = vpop.f32.mrf.mxu0
  %v254 = vadd.f32 %v86, %v253
  %v255 = vand.u32 %v106, 4294901760
  %v256 = vsub.f32 %v106, %v255
  %v257 = vand.u32 %v256, 4294901760
  %v258 = vsub.f32 %v256, %v257
  %v259 = vand.u32 %v258, 4294901760
  %260 = vmatmul.f32.gmra.mxu0 %v259
  %v261 = vpop.f32.mrf.mxu0
  %v262 = vadd.f32 %v91, %v261
  %v263 = vand.u32 %v109, 4294901760
  %v264 = vsub.f32 %v109, %v263
  %v265 = vand.u32 %v264, 4294901760
  %v266 = vsub.f32 %v264, %v265
  %v267 = vand.u32 %v266, 4294901760
  %268 = vmatmul.f32.gmra.mxu0 %v267
  %v269 = vpop.f32.mrf.mxu0
  %v270 = vadd.f32 %v96, %v269
  %271 = vdwg.mxu0
  %v272 = vand.u32 %v157, 4294901760
  %v273 = vsub.f32 %v157, %v272
  %v274 = vand.u32 %v273, 4294901760
  %v275 = vsub.f32 %v273, %v274
  %v276 = vand.u32 %v275, 4294901760
  %277 = vmatpush.xpose.msra.mxu0 %v276
  %v278 = vand.u32 %v154, 4294901760
  %v279 = vsub.f32 %v154, %v278
  %v280 = vand.u32 %v279, 4294901760
  %v281 = vsub.f32 %v279, %v280
  %v282 = vand.u32 %v281, 4294901760
  %283 = vmatpush.xpose.msra.mxu0 %v282
  %v284 = vand.u32 %v151, 4294901760
  %v285 = vsub.f32 %v151, %v284
  %v286 = vand.u32 %v285, 4294901760
  %v287 = vsub.f32 %v285, %v286
  %v288 = vand.u32 %v287, 4294901760
  %289 = vmatpush.xpose.msra.mxu0 %v288
  %v290 = vand.u32 %v148, 4294901760
  %v291 = vsub.f32 %v148, %v290
  %v292 = vand.u32 %v291, 4294901760
  %v293 = vsub.f32 %v291, %v292
  %v294 = vand.u32 %v293, 4294901760
  %295 = vmatpush.xpose.msra.mxu0 %v294
  %v296 = vand.u32 %v145, 4294901760
  %v297 = vsub.f32 %v145, %v296
  %v298 = vand.u32 %v297, 4294901760
  %v299 = vsub.f32 %v297, %v298
  %v300 = vand.u32 %v299, 4294901760
  %301 = vmatpush.xpose.msra.mxu0 %v300
  %v302 = vand.u32 %v142, 4294901760
  %v303 = vsub.f32 %v142, %v302
  %v304 = vand.u32 %v303, 4294901760
  %v305 = vsub.f32 %v303, %v304
  %v306 = vand.u32 %v305, 4294901760
  %307 = vmatpush.xpose.msra.mxu0 %v306
  %v308 = vand.u32 %v139, 4294901760
  %v309 = vsub.f32 %v139, %v308
  %v310 = vand.u32 %v309, 4294901760
  %v311 = vsub.f32 %v309, %v310
  %v312 = vand.u32 %v311, 4294901760
  %313 = vmatpush.xpose.msra.mxu0 %v312
  %v314 = vand.u32 %v136, 4294901760
  %v315 = vsub.f32 %v136, %v314
  %v316 = vand.u32 %v315, 4294901760
  %v317 = vsub.f32 %v315, %v316
  %v318 = vand.u32 %v317, 4294901760
  %319 = vmatpush.xpose.msra.mxu0 %v318
  %v320 = vand.u32 %v133, 4294901760
  %v321 = vsub.f32 %v133, %v320
  %v322 = vand.u32 %v321, 4294901760
  %v323 = vsub.f32 %v321, %v322
  %v324 = vand.u32 %v323, 4294901760
  %325 = vmatpush.xpose.msra.mxu0 %v324
  %v326 = vand.u32 %v130, 4294901760
  %v327 = vsub.f32 %v130, %v326
  %v328 = vand.u32 %v327, 4294901760
  %v329 = vsub.f32 %v327, %v328
  %v330 = vand.u32 %v329, 4294901760
  %331 = vmatpush.xpose.msra.mxu0 %v330
  %v332 = vand.u32 %v127, 4294901760
  %v333 = vsub.f32 %v127, %v332
  %v334 = vand.u32 %v333, 4294901760
  %v335 = vsub.f32 %v333, %v334
  %v336 = vand.u32 %v335, 4294901760
  %337 = vmatpush.xpose.msra.mxu0 %v336
  %v338 = vand.u32 %v124, 4294901760
  %v339 = vsub.f32 %v124, %v338
  %v340 = vand.u32 %v339, 4294901760
  %v341 = vsub.f32 %v339, %v340
  %v342 = vand.u32 %v341, 4294901760
  %343 = vmatpush.xpose.msra.mxu0 %v342
  %v344 = vand.u32 %v121, 4294901760
  %v345 = vsub.f32 %v121, %v344
  %v346 = vand.u32 %v345, 4294901760
  %v347 = vsub.f32 %v345, %v346
  %v348 = vand.u32 %v347, 4294901760
  %349 = vmatpush.xpose.msra.mxu0 %v348
  %v350 = vand.u32 %v118, 4294901760
  %v351 = vsub.f32 %v118, %v350
  %v352 = vand.u32 %v351, 4294901760
  %v353 = vsub.f32 %v351, %v352
  %v354 = vand.u32 %v353, 4294901760
  %355 = vmatpush.xpose.msra.mxu0 %v354
  %v356 = vand.u32 %v115, 4294901760
  %v357 = vsub.f32 %v115, %v356
  %v358 = vand.u32 %v357, 4294901760
  %v359 = vsub.f32 %v357, %v358
  %v360 = vand.u32 %v359, 4294901760
  %361 = vmatpush.xpose.msra.mxu0 %v360
  %v362 = vand.u32 %v112, 4294901760
  %v363 = vsub.f32 %v112, %v362
  %v364 = vand.u32 %v363, 4294901760
  %v365 = vsub.f32 %v363, %v364
  %v366 = vand.u32 %v365, 4294901760
  %367 = vmatpush.xpose.msra.mxu0 %v366
  %v368 = vand.u32 %v100, 4294901760
  %369 = vmatmul.f32.gmra.mxu0 %v368
  %v370 = vpop.f32.mrf.mxu0
  %v371 = vadd.f32 %v246, %v370
  %v372 = vand.u32 %v103, 4294901760
  %373 = vmatmul.f32.gmra.mxu0 %v372
  %v374 = vpop.f32.mrf.mxu0
  %v375 = vadd.f32 %v254, %v374
  %v376 = vand.u32 %v106, 4294901760
  %377 = vmatmul.f32.gmra.mxu0 %v376
  %v378 = vpop.f32.mrf.mxu0
  %v379 = vadd.f32 %v262, %v378
  %v380 = vand.u32 %v109, 4294901760
  %381 = vmatmul.f32.gmra.mxu0 %v380
  %v382 = vpop.f32.mrf.mxu0
  %v383 = vadd.f32 %v270, %v382
  %384 = vdwg.mxu0
  %v385 = vand.u32 %v157, 4294901760
  %v386 = vsub.f32 %v157, %v385
  %387 = vmatpush.xpose.msra.mxu0 %v386
  %v388 = vand.u32 %v154, 4294901760
  %v389 = vsub.f32 %v154, %v388
  %390 = vmatpush.xpose.msra.mxu0 %v389
  %v391 = vand.u32 %v151, 4294901760
  %v392 = vsub.f32 %v151, %v391
  %393 = vmatpush.xpose.msra.mxu0 %v392
  %v394 = vand.u32 %v148, 4294901760
  %v395 = vsub.f32 %v148, %v394
  %396 = vmatpush.xpose.msra.mxu0 %v395
  %v397 = vand.u32 %v145, 4294901760
  %v398 = vsub.f32 %v145, %v397
  %399 = vmatpush.xpose.msra.mxu0 %v398
  %v400 = vand.u32 %v142, 4294901760
  %v401 = vsub.f32 %v142, %v400
  %402 = vmatpush.xpose.msra.mxu0 %v401
  %v403 = vand.u32 %v139, 4294901760
  %v404 = vsub.f32 %v139, %v403
  %405 = vmatpush.xpose.msra.mxu0 %v404
  %v406 = vand.u32 %v136, 4294901760
  %v407 = vsub.f32 %v136, %v406
  %408 = vmatpush.xpose.msra.mxu0 %v407
  %v409 = vand.u32 %v133, 4294901760
  %v410 = vsub.f32 %v133, %v409
  %411 = vmatpush.xpose.msra.mxu0 %v410
  %v412 = vand.u32 %v130, 4294901760
  %v413 = vsub.f32 %v130, %v412
  %414 = vmatpush.xpose.msra.mxu0 %v413
  %v415 = vand.u32 %v127, 4294901760
  %v416 = vsub.f32 %v127, %v415
  %417 = vmatpush.xpose.msra.mxu0 %v416
  %v418 = vand.u32 %v124, 4294901760
  %v419 = vsub.f32 %v124, %v418
  %420 = vmatpush.xpose.msra.mxu0 %v419
  %v421 = vand.u32 %v121, 4294901760
  %v422 = vsub.f32 %v121, %v421
  %423 = vmatpush.xpose.msra.mxu0 %v422
  %v424 = vand.u32 %v118, 4294901760
  %v425 = vsub.f32 %v118, %v424
  %426 = vmatpush.xpose.msra.mxu0 %v425
  %v427 = vand.u32 %v115, 4294901760
  %v428 = vsub.f32 %v115, %v427
  %429 = vmatpush.xpose.msra.mxu0 %v428
  %v430 = vand.u32 %v112, 4294901760
  %v431 = vsub.f32 %v112, %v430
  %432 = vmatpush.xpose.msra.mxu0 %v431
  %v433 = vand.u32 %v100, 4294901760
  %v434 = vsub.f32 %v100, %v433
  %435 = vmatmul.f32.gmra.mxu0 %v434
  %v436 = vpop.f32.mrf.mxu0
  %v437 = vadd.f32 %v371, %v436
  %v438 = vand.u32 %v103, 4294901760
  %v439 = vsub.f32 %v103, %v438
  %440 = vmatmul.f32.gmra.mxu0 %v439
  %v441 = vpop.f32.mrf.mxu0
  %v442 = vadd.f32 %v375, %v441
  %v443 = vand.u32 %v106, 4294901760
  %v444 = vsub.f32 %v106, %v443
  %445 = vmatmul.f32.gmra.mxu0 %v444
  %v446 = vpop.f32.mrf.mxu0
  %v447 = vadd.f32 %v379, %v446
  %v448 = vand.u32 %v109, 4294901760
  %v449 = vsub.f32 %v109, %v448
  %450 = vmatmul.f32.gmra.mxu0 %v449
  %v451 = vpop.f32.mrf.mxu0
  %v452 = vadd.f32 %v383, %v451
  %453 = vdwg.mxu0
  %v454 = vand.u32 %v157, 4294901760
  %455 = vmatpush.xpose.msra.mxu0 %v454
  %v456 = vand.u32 %v154, 4294901760
  %457 = vmatpush.xpose.msra.mxu0 %v456
  %v458 = vand.u32 %v151, 4294901760
  %459 = vmatpush.xpose.msra.mxu0 %v458
  %v460 = vand.u32 %v148, 4294901760
  %461 = vmatpush.xpose.msra.mxu0 %v460
  %v462 = vand.u32 %v145, 4294901760
  %463 = vmatpush.xpose.msra.mxu0 %v462
  %v464 = vand.u32 %v142, 4294901760
  %465 = vmatpush.xpose.msra.mxu0 %v464
  %v466 = vand.u32 %v139, 4294901760
  %467 = vmatpush.xpose.msra.mxu0 %v466
  %v468 = vand.u32 %v136, 4294901760
  %469 = vmatpush.xpose.msra.mxu0 %v468
  %v470 = vand.u32 %v133, 4294901760
  %471 = vmatpush.xpose.msra.mxu0 %v470
  %v472 = vand.u32 %v130, 4294901760
  %473 = vmatpush.xpose.msra.mxu0 %v472
  %v474 = vand.u32 %v127, 4294901760
  %475 = vmatpush.xpose.msra.mxu0 %v474
  %v476 = vand.u32 %v124, 4294901760
  %477 = vmatpush.xpose.msra.mxu0 %v476
  %v478 = vand.u32 %v121, 4294901760
  %479 = vmatpush.xpose.msra.mxu0 %v478
  %v480 = vand.u32 %v118, 4294901760
  %481 = vmatpush.xpose.msra.mxu0 %v480
  %v482 = vand.u32 %v115, 4294901760
  %483 = vmatpush.xpose.msra.mxu0 %v482
  %v484 = vand.u32 %v112, 4294901760
  %485 = vmatpush.xpose.msra.mxu0 %v484
  %v486 = vand.u32 %v100, 4294901760
  %v487 = vsub.f32 %v100, %v486
  %v488 = vand.u32 %v487, 4294901760
  %489 = vmatmul.f32.gmra.mxu0 %v488
  %v490 = vpop.f32.mrf.mxu0
  %v491 = vadd.f32 %v437, %v490
  %v492 = vand.u32 %v103, 4294901760
  %v493 = vsub.f32 %v103, %v492
  %v494 = vand.u32 %v493, 4294901760
  %495 = vmatmul.f32.gmra.mxu0 %v494
  %v496 = vpop.f32.mrf.mxu0
  %v497 = vadd.f32 %v442, %v496
  %v498 = vand.u32 %v106, 4294901760
  %v499 = vsub.f32 %v106, %v498
  %v500 = vand.u32 %v499, 4294901760
  %501 = vmatmul.f32.gmra.mxu0 %v500
  %v502 = vpop.f32.mrf.mxu0
  %v503 = vadd.f32 %v447, %v502
  %v504 = vand.u32 %v109, 4294901760
  %v505 = vsub.f32 %v109, %v504
  %v506 = vand.u32 %v505, 4294901760
  %507 = vmatmul.f32.gmra.mxu0 %v506
  %v508 = vpop.f32.mrf.mxu0
  %v509 = vadd.f32 %v452, %v508
  %510 = vdwg.mxu0
  %v511 = vand.u32 %v157, 4294901760
  %v512 = vsub.f32 %v157, %v511
  %v513 = vand.u32 %v512, 4294901760
  %514 = vmatpush.xpose.msra.mxu0 %v513
  %v515 = vand.u32 %v154, 4294901760
  %v516 = vsub.f32 %v154, %v515
  %v517 = vand.u32 %v516, 4294901760
  %518 = vmatpush.xpose.msra.mxu0 %v517
  %v519 = vand.u32 %v151, 4294901760
  %v520 = vsub.f32 %v151, %v519
  %v521 = vand.u32 %v520, 4294901760
  %522 = vmatpush.xpose.msra.mxu0 %v521
  %v523 = vand.u32 %v148, 4294901760
  %v524 = vsub.f32 %v148, %v523
  %v525 = vand.u32 %v524, 4294901760
  %526 = vmatpush.xpose.msra.mxu0 %v525
  %v527 = vand.u32 %v145, 4294901760
  %v528 = vsub.f32 %v145, %v527
  %v529 = vand.u32 %v528, 4294901760
  %530 = vmatpush.xpose.msra.mxu0 %v529
  %v531 = vand.u32 %v142, 4294901760
  %v532 = vsub.f32 %v142, %v531
  %v533 = vand.u32 %v532, 4294901760
  %534 = vmatpush.xpose.msra.mxu0 %v533
  %v535 = vand.u32 %v139, 4294901760
  %v536 = vsub.f32 %v139, %v535
  %v537 = vand.u32 %v536, 4294901760
  %538 = vmatpush.xpose.msra.mxu0 %v537
  %v539 = vand.u32 %v136, 4294901760
  %v540 = vsub.f32 %v136, %v539
  %v541 = vand.u32 %v540, 4294901760
  %542 = vmatpush.xpose.msra.mxu0 %v541
  %v543 = vand.u32 %v133, 4294901760
  %v544 = vsub.f32 %v133, %v543
  %v545 = vand.u32 %v544, 4294901760
  %546 = vmatpush.xpose.msra.mxu0 %v545
  %v547 = vand.u32 %v130, 4294901760
  %v548 = vsub.f32 %v130, %v547
  %v549 = vand.u32 %v548, 4294901760
  %550 = vmatpush.xpose.msra.mxu0 %v549
  %v551 = vand.u32 %v127, 4294901760
  %v552 = vsub.f32 %v127, %v551
  %v553 = vand.u32 %v552, 4294901760
  %554 = vmatpush.xpose.msra.mxu0 %v553
  %v555 = vand.u32 %v124, 4294901760
  %v556 = vsub.f32 %v124, %v555
  %v557 = vand.u32 %v556, 4294901760
  %558 = vmatpush.xpose.msra.mxu0 %v557
  %v559 = vand.u32 %v121, 4294901760
  %v560 = vsub.f32 %v121, %v559
  %v561 = vand.u32 %v560, 4294901760
  %562 = vmatpush.xpose.msra.mxu0 %v561
  %v563 = vand.u32 %v118, 4294901760
  %v564 = vsub.f32 %v118, %v563
  %v565 = vand.u32 %v564, 4294901760
  %566 = vmatpush.xpose.msra.mxu0 %v565
  %v567 = vand.u32 %v115, 4294901760
  %v568 = vsub.f32 %v115, %v567
  %v569 = vand.u32 %v568, 4294901760
  %570 = vmatpush.xpose.msra.mxu0 %v569
  %v571 = vand.u32 %v112, 4294901760
  %v572 = vsub.f32 %v112, %v571
  %v573 = vand.u32 %v572, 4294901760
  %574 = vmatpush.xpose.msra.mxu0 %v573
  %v575 = vand.u32 %v100, 4294901760
  %576 = vmatmul.f32.gmra.mxu0 %v575
  %v577 = vpop.f32.mrf.mxu0
  %v578 = vadd.f32 %v491, %v577
  %v579 = vand.u32 %v103, 4294901760
  %580 = vmatmul.f32.gmra.mxu0 %v579
  %v581 = vpop.f32.mrf.mxu0
  %v582 = vadd.f32 %v497, %v581
  %v583 = vand.u32 %v106, 4294901760
  %584 = vmatmul.f32.gmra.mxu0 %v583
  %v585 = vpop.f32.mrf.mxu0
  %v586 = vadd.f32 %v503, %v585
  %v587 = vand.u32 %v109, 4294901760
  %588 = vmatmul.f32.gmra.mxu0 %v587
  %v589 = vpop.f32.mrf.mxu0
  %v590 = vadd.f32 %v509, %v589
  %591 = vdwg.mxu0
  %v592 = vand.u32 %v157, 4294901760
  %593 = vmatpush.xpose.msra.mxu0 %v592
  %v594 = vand.u32 %v154, 4294901760
  %595 = vmatpush.xpose.msra.mxu0 %v594
  %v596 = vand.u32 %v151, 4294901760
  %597 = vmatpush.xpose.msra.mxu0 %v596
  %v598 = vand.u32 %v148, 4294901760
  %599 = vmatpush.xpose.msra.mxu0 %v598
  %v600 = vand.u32 %v145, 4294901760
  %601 = vmatpush.xpose.msra.mxu0 %v600
  %v602 = vand.u32 %v142, 4294901760
  %603 = vmatpush.xpose.msra.mxu0 %v602
  %v604 = vand.u32 %v139, 4294901760
  %605 = vmatpush.xpose.msra.mxu0 %v604
  %v606 = vand.u32 %v136, 4294901760
  %607 = vmatpush.xpose.msra.mxu0 %v606
  %v608 = vand.u32 %v133, 4294901760
  %609 = vmatpush.xpose.msra.mxu0 %v608
  %v610 = vand.u32 %v130, 4294901760
  %611 = vmatpush.xpose.msra.mxu0 %v610
  %v612 = vand.u32 %v127, 4294901760
  %613 = vmatpush.xpose.msra.mxu0 %v612
  %v614 = vand.u32 %v124, 4294901760
  %615 = vmatpush.xpose.msra.mxu0 %v614
  %v616 = vand.u32 %v121, 4294901760
  %617 = vmatpush.xpose.msra.mxu0 %v616
  %v618 = vand.u32 %v118, 4294901760
  %619 = vmatpush.xpose.msra.mxu0 %v618
  %v620 = vand.u32 %v115, 4294901760
  %621 = vmatpush.xpose.msra.mxu0 %v620
  %v622 = vand.u32 %v112, 4294901760
  %623 = vmatpush.xpose.msra.mxu0 %v622
  %v624 = vand.u32 %v100, 4294901760
  %625 = vmatmul.f32.gmra.mxu0 %v624
  %v626 = vpop.f32.mrf.mxu0
  %v627 = vadd.f32 %v578, %v626
  %v628 = vand.u32 %v103, 4294901760
  %629 = vmatmul.f32.gmra.mxu0 %v628
  %v630 = vpop.f32.mrf.mxu0
  %v631 = vadd.f32 %v582, %v630
  %v632 = vand.u32 %v106, 4294901760
  %633 = vmatmul.f32.gmra.mxu0 %v632
  %v634 = vpop.f32.mrf.mxu0
  %v635 = vadd.f32 %v586, %v634
  %v636 = vand.u32 %v109, 4294901760
  %637 = vmatmul.f32.gmra.mxu0 %v636
  %v638 = vpop.f32.mrf.mxu0
  %v639 = vadd.f32 %v590, %v638
  %640 = vdwg.mxu0
  %v641 = vand.u32 %v205, 4294901760
  %642 = vmatpush.xpose.msra.mxu0 %v641
  %v643 = vand.u32 %v202, 4294901760
  %644 = vmatpush.xpose.msra.mxu0 %v643
  %v645 = vand.u32 %v199, 4294901760
  %646 = vmatpush.xpose.msra.mxu0 %v645
  %v647 = vand.u32 %v196, 4294901760
  %648 = vmatpush.xpose.msra.mxu0 %v647
  %v649 = vand.u32 %v193, 4294901760
  %650 = vmatpush.xpose.msra.mxu0 %v649
  %v651 = vand.u32 %v190, 4294901760
  %652 = vmatpush.xpose.msra.mxu0 %v651
  %v653 = vand.u32 %v187, 4294901760
  %654 = vmatpush.xpose.msra.mxu0 %v653
  %v655 = vand.u32 %v184, 4294901760
  %656 = vmatpush.xpose.msra.mxu0 %v655
  %v657 = vand.u32 %v181, 4294901760
  %658 = vmatpush.xpose.msra.mxu0 %v657
  %v659 = vand.u32 %v178, 4294901760
  %660 = vmatpush.xpose.msra.mxu0 %v659
  %v661 = vand.u32 %v175, 4294901760
  %662 = vmatpush.xpose.msra.mxu0 %v661
  %v663 = vand.u32 %v172, 4294901760
  %664 = vmatpush.xpose.msra.mxu0 %v663
  %v665 = vand.u32 %v169, 4294901760
  %666 = vmatpush.xpose.msra.mxu0 %v665
  %v667 = vand.u32 %v166, 4294901760
  %668 = vmatpush.xpose.msra.mxu0 %v667
  %v669 = vand.u32 %v163, 4294901760
  %670 = vmatpush.xpose.msra.mxu0 %v669
  %v671 = vand.u32 %v160, 4294901760
  %672 = vmatpush.xpose.msra.mxu0 %v671
  %v673 = vand.u32 %v100, 4294901760
  %v674 = vsub.f32 %v100, %v673
  %v675 = vand.u32 %v674, 4294901760
  %v676 = vsub.f32 %v674, %v675
  %v677 = vand.u32 %v676, 4294901760
  %678 = vmatmul.f32.gmra.mxu0 %v677
  %v679 = vpop.f32.mrf.mxu0
  %v680 = vadd.f32 %v81, %v679
  %v681 = vand.u32 %v103, 4294901760
  %v682 = vsub.f32 %v103, %v681
  %v683 = vand.u32 %v682, 4294901760
  %v684 = vsub.f32 %v682, %v683
  %v685 = vand.u32 %v684, 4294901760
  %686 = vmatmul.f32.gmra.mxu0 %v685
  %v687 = vpop.f32.mrf.mxu0
  %v688 = vadd.f32 %v86, %v687
  %v689 = vand.u32 %v106, 4294901760
  %v690 = vsub.f32 %v106, %v689
  %v691 = vand.u32 %v690, 4294901760
  %v692 = vsub.f32 %v690, %v691
  %v693 = vand.u32 %v692, 4294901760
  %694 = vmatmul.f32.gmra.mxu0 %v693
  %v695 = vpop.f32.mrf.mxu0
  %v696 = vadd.f32 %v91, %v695
  %v697 = vand.u32 %v109, 4294901760
  %v698 = vsub.f32 %v109, %v697
  %v699 = vand.u32 %v698, 4294901760
  %v700 = vsub.f32 %v698, %v699
  %v701 = vand.u32 %v700, 4294901760
  %702 = vmatmul.f32.gmra.mxu0 %v701
  %v703 = vpop.f32.mrf.mxu0
  %v704 = vadd.f32 %v96, %v703
  %705 = vdwg.mxu0
  %v706 = vand.u32 %v205, 4294901760
  %v707 = vsub.f32 %v205, %v706
  %v708 = vand.u32 %v707, 4294901760
  %v709 = vsub.f32 %v707, %v708
  %v710 = vand.u32 %v709, 4294901760
  %711 = vmatpush.xpose.msra.mxu0 %v710
  %v712 = vand.u32 %v202, 4294901760
  %v713 = vsub.f32 %v202, %v712
  %v714 = vand.u32 %v713, 4294901760
  %v715 = vsub.f32 %v713, %v714
  %v716 = vand.u32 %v715, 4294901760
  %717 = vmatpush.xpose.msra.mxu0 %v716
  %v718 = vand.u32 %v199, 4294901760
  %v719 = vsub.f32 %v199, %v718
  %v720 = vand.u32 %v719, 4294901760
  %v721 = vsub.f32 %v719, %v720
  %v722 = vand.u32 %v721, 4294901760
  %723 = vmatpush.xpose.msra.mxu0 %v722
  %v724 = vand.u32 %v196, 4294901760
  %v725 = vsub.f32 %v196, %v724
  %v726 = vand.u32 %v725, 4294901760
  %v727 = vsub.f32 %v725, %v726
  %v728 = vand.u32 %v727, 4294901760
  %729 = vmatpush.xpose.msra.mxu0 %v728
  %v730 = vand.u32 %v193, 4294901760
  %v731 = vsub.f32 %v193, %v730
  %v732 = vand.u32 %v731, 4294901760
  %v733 = vsub.f32 %v731, %v732
  %v734 = vand.u32 %v733, 4294901760
  %735 = vmatpush.xpose.msra.mxu0 %v734
  %v736 = vand.u32 %v190, 4294901760
  %v737 = vsub.f32 %v190, %v736
  %v738 = vand.u32 %v737, 4294901760
  %v739 = vsub.f32 %v737, %v738
  %v740 = vand.u32 %v739, 4294901760
  %741 = vmatpush.xpose.msra.mxu0 %v740
  %v742 = vand.u32 %v187, 4294901760
  %v743 = vsub.f32 %v187, %v742
  %v744 = vand.u32 %v743, 4294901760
  %v745 = vsub.f32 %v743, %v744
  %v746 = vand.u32 %v745, 4294901760
  %747 = vmatpush.xpose.msra.mxu0 %v746
  %v748 = vand.u32 %v184, 4294901760
  %v749 = vsub.f32 %v184, %v748
  %v750 = vand.u32 %v749, 4294901760
  %v751 = vsub.f32 %v749, %v750
  %v752 = vand.u32 %v751, 4294901760
  %753 = vmatpush.xpose.msra.mxu0 %v752
  %v754 = vand.u32 %v181, 4294901760
  %v755 = vsub.f32 %v181, %v754
  %v756 = vand.u32 %v755, 4294901760
  %v757 = vsub.f32 %v755, %v756
  %v758 = vand.u32 %v757, 4294901760
  %759 = vmatpush.xpose.msra.mxu0 %v758
  %v760 = vand.u32 %v178, 4294901760
  %v761 = vsub.f32 %v178, %v760
  %v762 = vand.u32 %v761, 4294901760
  %v763 = vsub.f32 %v761, %v762
  %v764 = vand.u32 %v763, 4294901760
  %765 = vmatpush.xpose.msra.mxu0 %v764
  %v766 = vand.u32 %v175, 4294901760
  %v767 = vsub.f32 %v175, %v766
  %v768 = vand.u32 %v767, 4294901760
  %v769 = vsub.f32 %v767, %v768
  %v770 = vand.u32 %v769, 4294901760
  %771 = vmatpush.xpose.msra.mxu0 %v770
  %v772 = vand.u32 %v172, 4294901760
  %v773 = vsub.f32 %v172, %v772
  %v774 = vand.u32 %v773, 4294901760
  %v775 = vsub.f32 %v773, %v774
  %v776 = vand.u32 %v775, 4294901760
  %777 = vmatpush.xpose.msra.mxu0 %v776
  %v778 = vand.u32 %v169, 4294901760
  %v779 = vsub.f32 %v169, %v778
  %v780 = vand.u32 %v779, 4294901760
  %v781 = vsub.f32 %v779, %v780
  %v782 = vand.u32 %v781, 4294901760
  %783 = vmatpush.xpose.msra.mxu0 %v782
  %v784 = vand.u32 %v166, 4294901760
  %v785 = vsub.f32 %v166, %v784
  %v786 = vand.u32 %v785, 4294901760
  %v787 = vsub.f32 %v785, %v786
  %v788 = vand.u32 %v787, 4294901760
  %789 = vmatpush.xpose.msra.mxu0 %v788
  %v790 = vand.u32 %v163, 4294901760
  %v791 = vsub.f32 %v163, %v790
  %v792 = vand.u32 %v791, 4294901760
  %v793 = vsub.f32 %v791, %v792
  %v794 = vand.u32 %v793, 4294901760
  %795 = vmatpush.xpose.msra.mxu0 %v794
  %v796 = vand.u32 %v160, 4294901760
  %v797 = vsub.f32 %v160, %v796
  %v798 = vand.u32 %v797, 4294901760
  %v799 = vsub.f32 %v797, %v798
  %v800 = vand.u32 %v799, 4294901760
  %801 = vmatpush.xpose.msra.mxu0 %v800
  %v802 = vand.u32 %v100, 4294901760
  %803 = vmatmul.f32.gmra.mxu0 %v802
  %v804 = vpop.f32.mrf.mxu0
  %v805 = vadd.f32 %v680, %v804
  %v806 = vand.u32 %v103, 4294901760
  %807 = vmatmul.f32.gmra.mxu0 %v806
  %v808 = vpop.f32.mrf.mxu0
  %v809 = vadd.f32 %v688, %v808
  %v810 = vand.u32 %v106, 4294901760
  %811 = vmatmul.f32.gmra.mxu0 %v810
  %v812 = vpop.f32.mrf.mxu0
  %v813 = vadd.f32 %v696, %v812
  %v814 = vand.u32 %v109, 4294901760
  %815 = vmatmul.f32.gmra.mxu0 %v814
  %v816 = vpop.f32.mrf.mxu0
  %v817 = vadd.f32 %v704, %v816
  %818 = vdwg.mxu0
  %v819 = vand.u32 %v205, 4294901760
  %v820 = vsub.f32 %v205, %v819
  %821 = vmatpush.xpose.msra.mxu0 %v820
  %v822 = vand.u32 %v202, 4294901760
  %v823 = vsub.f32 %v202, %v822
  %824 = vmatpush.xpose.msra.mxu0 %v823
  %v825 = vand.u32 %v199, 4294901760
  %v826 = vsub.f32 %v199, %v825
  %827 = vmatpush.xpose.msra.mxu0 %v826
  %v828 = vand.u32 %v196, 4294901760
  %v829 = vsub.f32 %v196, %v828
  %830 = vmatpush.xpose.msra.mxu0 %v829
  %v831 = vand.u32 %v193, 4294901760
  %v832 = vsub.f32 %v193, %v831
  %833 = vmatpush.xpose.msra.mxu0 %v832
  %v834 = vand.u32 %v190, 4294901760
  %v835 = vsub.f32 %v190, %v834
  %836 = vmatpush.xpose.msra.mxu0 %v835
  %v837 = vand.u32 %v187, 4294901760
  %v838 = vsub.f32 %v187, %v837
  %839 = vmatpush.xpose.msra.mxu0 %v838
  %v840 = vand.u32 %v184, 4294901760
  %v841 = vsub.f32 %v184, %v840
  %842 = vmatpush.xpose.msra.mxu0 %v841
  %v843 = vand.u32 %v181, 4294901760
  %v844 = vsub.f32 %v181, %v843
  %845 = vmatpush.xpose.msra.mxu0 %v844
  %v846 = vand.u32 %v178, 4294901760
  %v847 = vsub.f32 %v178, %v846
  %848 = vmatpush.xpose.msra.mxu0 %v847
  %v849 = vand.u32 %v175, 4294901760
  %v850 = vsub.f32 %v175, %v849
  %851 = vmatpush.xpose.msra.mxu0 %v850
  %v852 = vand.u32 %v172, 4294901760
  %v853 = vsub.f32 %v172, %v852
  %854 = vmatpush.xpose.msra.mxu0 %v853
  %v855 = vand.u32 %v169, 4294901760
  %v856 = vsub.f32 %v169, %v855
  %857 = vmatpush.xpose.msra.mxu0 %v856
  %v858 = vand.u32 %v166, 4294901760
  %v859 = vsub.f32 %v166, %v858
  %860 = vmatpush.xpose.msra.mxu0 %v859
  %v861 = vand.u32 %v163, 4294901760
  %v862 = vsub.f32 %v163, %v861
  %863 = vmatpush.xpose.msra.mxu0 %v862
  %v864 = vand.u32 %v160, 4294901760
  %v865 = vsub.f32 %v160, %v864
  %866 = vmatpush.xpose.msra.mxu0 %v865
  %v867 = vand.u32 %v100, 4294901760
  %v868 = vsub.f32 %v100, %v867
  %869 = vmatmul.f32.gmra.mxu0 %v868
  %v870 = vpop.f32.mrf.mxu0
  %v871 = vadd.f32 %v805, %v870
  %v872 = vand.u32 %v103, 4294901760
  %v873 = vsub.f32 %v103, %v872
  %874 = vmatmul.f32.gmra.mxu0 %v873
  %v875 = vpop.f32.mrf.mxu0
  %v876 = vadd.f32 %v809, %v875
  %v877 = vand.u32 %v106, 4294901760
  %v878 = vsub.f32 %v106, %v877
  %879 = vmatmul.f32.gmra.mxu0 %v878
  %v880 = vpop.f32.mrf.mxu0
  %v881 = vadd.f32 %v813, %v880
  %v882 = vand.u32 %v109, 4294901760
  %v883 = vsub.f32 %v109, %v882
  %884 = vmatmul.f32.gmra.mxu0 %v883
  %v885 = vpop.f32.mrf.mxu0
  %v886 = vadd.f32 %v817, %v885
  %887 = vdwg.mxu0
  %v888 = vand.u32 %v205, 4294901760
  %889 = vmatpush.xpose.msra.mxu0 %v888
  %v890 = vand.u32 %v202, 4294901760
  %891 = vmatpush.xpose.msra.mxu0 %v890
  %v892 = vand.u32 %v199, 4294901760
  %893 = vmatpush.xpose.msra.mxu0 %v892
  %v894 = vand.u32 %v196, 4294901760
  %895 = vmatpush.xpose.msra.mxu0 %v894
  %v896 = vand.u32 %v193, 4294901760
  %897 = vmatpush.xpose.msra.mxu0 %v896
  %v898 = vand.u32 %v190, 4294901760
  %899 = vmatpush.xpose.msra.mxu0 %v898
  %v900 = vand.u32 %v187, 4294901760
  %901 = vmatpush.xpose.msra.mxu0 %v900
  %v902 = vand.u32 %v184, 4294901760
  %903 = vmatpush.xpose.msra.mxu0 %v902
  %v904 = vand.u32 %v181, 4294901760
  %905 = vmatpush.xpose.msra.mxu0 %v904
  %v906 = vand.u32 %v178, 4294901760
  %907 = vmatpush.xpose.msra.mxu0 %v906
  %v908 = vand.u32 %v175, 4294901760
  %909 = vmatpush.xpose.msra.mxu0 %v908
  %v910 = vand.u32 %v172, 4294901760
  %911 = vmatpush.xpose.msra.mxu0 %v910
  %v912 = vand.u32 %v169, 4294901760
  %913 = vmatpush.xpose.msra.mxu0 %v912
  %v914 = vand.u32 %v166, 4294901760
  %915 = vmatpush.xpose.msra.mxu0 %v914
  %v916 = vand.u32 %v163, 4294901760
  %917 = vmatpush.xpose.msra.mxu0 %v916
  %v918 = vand.u32 %v160, 4294901760
  %919 = vmatpush.xpose.msra.mxu0 %v918
  %v920 = vand.u32 %v100, 4294901760
  %v921 = vsub.f32 %v100, %v920
  %v922 = vand.u32 %v921, 4294901760
  %923 = vmatmul.f32.gmra.mxu0 %v922
  %v924 = vpop.f32.mrf.mxu0
  %v925 = vadd.f32 %v871, %v924
  %v926 = vand.u32 %v103, 4294901760
  %v927 = vsub.f32 %v103, %v926
  %v928 = vand.u32 %v927, 4294901760
  %929 = vmatmul.f32.gmra.mxu0 %v928
  %v930 = vpop.f32.mrf.mxu0
  %v931 = vadd.f32 %v876, %v930
  %v932 = vand.u32 %v106, 4294901760
  %v933 = vsub.f32 %v106, %v932
  %v934 = vand.u32 %v933, 4294901760
  %935 = vmatmul.f32.gmra.mxu0 %v934
  %v936 = vpop.f32.mrf.mxu0
  %v937 = vadd.f32 %v881, %v936
  %v938 = vand.u32 %v109, 4294901760
  %v939 = vsub.f32 %v109, %v938
  %v940 = vand.u32 %v939, 4294901760
  %941 = vmatmul.f32.gmra.mxu0 %v940
  %v942 = vpop.f32.mrf.mxu0
  %v943 = vadd.f32 %v886, %v942
  %944 = vdwg.mxu0
  %v945 = vand.u32 %v205, 4294901760
  %v946 = vsub.f32 %v205, %v945
  %v947 = vand.u32 %v946, 4294901760
  %948 = vmatpush.xpose.msra.mxu0 %v947
  %v949 = vand.u32 %v202, 4294901760
  %v950 = vsub.f32 %v202, %v949
  %v951 = vand.u32 %v950, 4294901760
  %952 = vmatpush.xpose.msra.mxu0 %v951
  %v953 = vand.u32 %v199, 4294901760
  %v954 = vsub.f32 %v199, %v953
  %v955 = vand.u32 %v954, 4294901760
  %956 = vmatpush.xpose.msra.mxu0 %v955
  %v957 = vand.u32 %v196, 4294901760
  %v958 = vsub.f32 %v196, %v957
  %v959 = vand.u32 %v958, 4294901760
  %960 = vmatpush.xpose.msra.mxu0 %v959
  %v961 = vand.u32 %v193, 4294901760
  %v962 = vsub.f32 %v193, %v961
  %v963 = vand.u32 %v962, 4294901760
  %964 = vmatpush.xpose.msra.mxu0 %v963
  %v965 = vand.u32 %v190, 4294901760
  %v966 = vsub.f32 %v190, %v965
  %v967 = vand.u32 %v966, 4294901760
  %968 = vmatpush.xpose.msra.mxu0 %v967
  %v969 = vand.u32 %v187, 4294901760
  %v970 = vsub.f32 %v187, %v969
  %v971 = vand.u32 %v970, 4294901760
  %972 = vmatpush.xpose.msra.mxu0 %v971
  %v973 = vand.u32 %v184, 4294901760
  %v974 = vsub.f32 %v184, %v973
  %v975 = vand.u32 %v974, 4294901760
  %976 = vmatpush.xpose.msra.mxu0 %v975
  %v977 = vand.u32 %v181, 4294901760
  %v978 = vsub.f32 %v181, %v977
  %v979 = vand.u32 %v978, 4294901760
  %980 = vmatpush.xpose.msra.mxu0 %v979
  %v981 = vand.u32 %v178, 4294901760
  %v982 = vsub.f32 %v178, %v981
  %v983 = vand.u32 %v982, 4294901760
  %984 = vmatpush.xpose.msra.mxu0 %v983
  %v985 = vand.u32 %v175, 4294901760
  %v986 = vsub.f32 %v175, %v985
  %v987 = vand.u32 %v986, 4294901760
  %988 = vmatpush.xpose.msra.mxu0 %v987
  %v989 = vand.u32 %v172, 4294901760
  %v990 = vsub.f32 %v172, %v989
  %v991 = vand.u32 %v990, 4294901760
  %992 = vmatpush.xpose.msra.mxu0 %v991
  %v993 = vand.u32 %v169, 4294901760
  %v994 = vsub.f32 %v169, %v993
  %v995 = vand.u32 %v994, 4294901760
  %996 = vmatpush.xpose.msra.mxu0 %v995
  %v997 = vand.u32 %v166, 4294901760
  %v998 = vsub.f32 %v166, %v997
  %v999 = vand.u32 %v998, 4294901760
  %1000 = vmatpush.xpose.msra.mxu0 %v999
  %v1001 = vand.u32 %v163, 4294901760
  %v1002 = vsub.f32 %v163, %v1001
  %v1003 = vand.u32 %v1002, 4294901760
  %1004 = vmatpush.xpose.msra.mxu0 %v1003
  %v1005 = vand.u32 %v160, 4294901760
  %v1006 = vsub.f32 %v160, %v1005
  %v1007 = vand.u32 %v1006, 4294901760
  %1008 = vmatpush.xpose.msra.mxu0 %v1007
  %v1009 = vand.u32 %v100, 4294901760
  %1010 = vmatmul.f32.gmra.mxu0 %v1009
  %v1011 = vpop.f32.mrf.mxu0
  %v1012 = vadd.f32 %v925, %v1011
  %v1013 = vand.u32 %v103, 4294901760
  %1014 = vmatmul.f32.gmra.mxu0 %v1013
  %v1015 = vpop.f32.mrf.mxu0
  %v1016 = vadd.f32 %v931, %v1015
  %v1017 = vand.u32 %v106, 4294901760
  %1018 = vmatmul.f32.gmra.mxu0 %v1017
  %v1019 = vpop.f32.mrf.mxu0
  %v1020 = vadd.f32 %v937, %v1019
  %v1021 = vand.u32 %v109, 4294901760
  %1022 = vmatmul.f32.gmra.mxu0 %v1021
  %v1023 = vpop.f32.mrf.mxu0
  %v1024 = vadd.f32 %v943, %v1023
  %1025 = vdwg.mxu0
  %v1026 = vand.u32 %v205, 4294901760
  %1027 = vmatpush.xpose.msra.mxu0 %v1026
  %v1028 = vand.u32 %v202, 4294901760
  %1029 = vmatpush.xpose.msra.mxu0 %v1028
  %v1030 = vand.u32 %v199, 4294901760
  %1031 = vmatpush.xpose.msra.mxu0 %v1030
  %v1032 = vand.u32 %v196, 4294901760
  %1033 = vmatpush.xpose.msra.mxu0 %v1032
  %v1034 = vand.u32 %v193, 4294901760
  %1035 = vmatpush.xpose.msra.mxu0 %v1034
  %v1036 = vand.u32 %v190, 4294901760
  %1037 = vmatpush.xpose.msra.mxu0 %v1036
  %v1038 = vand.u32 %v187, 4294901760
  %1039 = vmatpush.xpose.msra.mxu0 %v1038
  %v1040 = vand.u32 %v184, 4294901760
  %1041 = vmatpush.xpose.msra.mxu0 %v1040
  %v1042 = vand.u32 %v181, 4294901760
  %1043 = vmatpush.xpose.msra.mxu0 %v1042
  %v1044 = vand.u32 %v178, 4294901760
  %1045 = vmatpush.xpose.msra.mxu0 %v1044
  %v1046 = vand.u32 %v175, 4294901760
  %1047 = vmatpush.xpose.msra.mxu0 %v1046
  %v1048 = vand.u32 %v172, 4294901760
  %1049 = vmatpush.xpose.msra.mxu0 %v1048
  %v1050 = vand.u32 %v169, 4294901760
  %1051 = vmatpush.xpose.msra.mxu0 %v1050
  %v1052 = vand.u32 %v166, 4294901760
  %1053 = vmatpush.xpose.msra.mxu0 %v1052
  %v1054 = vand.u32 %v163, 4294901760
  %1055 = vmatpush.xpose.msra.mxu0 %v1054
  %v1056 = vand.u32 %v160, 4294901760
  %1057 = vmatpush.xpose.msra.mxu0 %v1056
  %v1058 = vand.u32 %v100, 4294901760
  %1059 = vmatmul.f32.gmra.mxu0 %v1058
  %v1060 = vpop.f32.mrf.mxu0
  %v1061 = vadd.f32 %v1012, %v1060
  %v1062 = vand.u32 %v103, 4294901760
  %1063 = vmatmul.f32.gmra.mxu0 %v1062
  %v1064 = vpop.f32.mrf.mxu0
  %v1065 = vadd.f32 %v1016, %v1064
  %v1066 = vand.u32 %v106, 4294901760
  %1067 = vmatmul.f32.gmra.mxu0 %v1066
  %v1068 = vpop.f32.mrf.mxu0
  %v1069 = vadd.f32 %v1020, %v1068
  %v1070 = vand.u32 %v109, 4294901760
  %1071 = vmatmul.f32.gmra.mxu0 %v1070
  %v1072 = vpop.f32.mrf.mxu0
  %v1073 = vadd.f32 %v1024, %v1072
  %1074 = vdwg.mxu0
  %v1075 = vld [vmem:[%s3] sm:$0xff]
  %v1076 = vld [vmem:[%s3 + $0x8] sm:$0xff]
  %v1077 = vld [vmem:[%s3 + $0x10] sm:$0xff]
  %v1078 = vld [vmem:[%s3 + $0x18] sm:$0xff]
  %v1079 = vld [vmem:[%s4] sm:$0xff]
  %v1080 = vld [vmem:[%s4 + $0x8] sm:$0xff]
  %v1081 = vld [vmem:[%s4 + $0x10] sm:$0xff]
  %v1082 = vld [vmem:[%s4 + $0x18] sm:$0xff]
  %v1083 = vadd.f32 %v627, %v631
  %v1084 = vadd.f32 %v1083, %v635
  %v1085 = vadd.f32 %v1084, %v639
  %v1086 = vrot.slane %v1085, 4
  %v1087 = vadd.f32 %v1085, %v1086
  %v1088 = vrot.slane %v1087, 2
  %v1089 = vadd.f32 %v1087, %v1088
  %v1090 = vrot.slane %v1089, 1
  %v1091 = vadd.f32 %v1089, %v1090
  %v1092 = vadd.f32 %v1061, %v1065
  %v1093 = vadd.f32 %v1092, %v1069
  %v1094 = vadd.f32 %v1093, %v1073
  %v1095 = vrot.slane %v1094, 4
  %v1096 = vadd.f32 %v1094, %v1095
  %v1097 = vrot.slane %v1096, 2
  %v1098 = vadd.f32 %v1096, %v1097
  %v1099 = vrot.slane %v1098, 1
  %v1100 = vadd.f32 %v1098, %v1099
  %v1101 = vmul.f32 %v627, %v627
  %v1102 = vmul.f32 %v1061, %v1061
  %v1103 = vmul.f32 %v631, %v631
  %v1104 = vmul.f32 %v1065, %v1065
  %v1105 = vmul.f32 %v635, %v635
  %v1106 = vmul.f32 %v1069, %v1069
  %v1107 = vmul.f32 %v639, %v639
  %v1108 = vmul.f32 %v1073, %v1073
  %v1109 = vadd.f32 %v1101, %v1103
  %v1110 = vadd.f32 %v1109, %v1105
  %v1111 = vadd.f32 %v1110, %v1107
  %v1112 = vrot.slane %v1111, 4
  %v1113 = vadd.f32 %v1111, %v1112
  %v1114 = vrot.slane %v1113, 2
  %v1115 = vadd.f32 %v1113, %v1114
  %v1116 = vrot.slane %v1115, 1
  %v1117 = vadd.f32 %v1115, %v1116
  %v1118 = vadd.f32 %v1102, %v1104
  %v1119 = vadd.f32 %v1118, %v1106
  %v1120 = vadd.f32 %v1119, %v1108
  %v1121 = vrot.slane %v1120, 4
  %v1122 = vadd.f32 %v1120, %v1121
  %v1123 = vrot.slane %v1122, 2
  %v1124 = vadd.f32 %v1122, %v1123
  %v1125 = vrot.slane %v1124, 1
  %v1126 = vadd.f32 %v1124, %v1125
  %v1127 = vmul.f32 %v1091, 0.03125
  %v1128 = vmul.f32 %v1100, 0.03125
  %v1129 = vmul.f32 %v1117, 0.03125
  %v1130 = vmul.f32 %v1126, 0.03125
  %v1131 = vmul.f32 %v1127, %v1127
  %v1132 = vmul.f32 %v1128, %v1128
  %v1133 = vsub.f32 %v1129, %v1131
  %v1134 = vsub.f32 %v1130, %v1132
  %v1135 = vadd.f32 %v1133, 1e-05
  %v1136 = vadd.f32 %v1134, 1e-05
  %v1137 = vrsqrt.pop %v1135
  %v1138 = vmul.f32 %v1137, %v1135
  %v1139 = vmul.f32 %v1138, %v1137
  %v1140 = vmul.f32 0.5, %v1139
  %v1141 = vsub.f32 1.5, %v1140
  %v1142 = vmul.f32 %v1137, %v1141
  %vm1143 = vweird.f32 %v1135
  %vm1144 = vweird.f32 %v1137
  %vm1145 = vmor %vm1143, %vm1144
  %v1146 = vsel %vm1145, %v1137, %v1142
  %v1147 = vrsqrt.pop %v1136
  %v1148 = vmul.f32 %v1147, %v1136
  %v1149 = vmul.f32 %v1148, %v1147
  %v1150 = vmul.f32 0.5, %v1149
  %v1151 = vsub.f32 1.5, %v1150
  %v1152 = vmul.f32 %v1147, %v1151
  %vm1153 = vweird.f32 %v1136
  %vm1154 = vweird.f32 %v1147
  %vm1155 = vmor %vm1153, %vm1154
  %v1156 = vsel %vm1155, %v1147, %v1152
  %v1157 = vsub.f32 %v627, %v1127
  %v1158 = vsub.f32 %v1061, %v1128
  %v1159 = vsub.f32 %v631, %v1127
  %v1160 = vsub.f32 %v1065, %v1128
  %v1161 = vsub.f32 %v635, %v1127
  %v1162 = vsub.f32 %v1069, %v1128
  %v1163 = vsub.f32 %v639, %v1127
  %v1164 = vsub.f32 %v1073, %v1128
  %v1165 = vmul.f32 %v1157, %v1146
  %v1166 = vmul.f32 %v1158, %v1156
  %v1167 = vmul.f32 %v1159, %v1146
  %v1168 = vmul.f32 %v1160, %v1156
  %v1169 = vmul.f32 %v1161, %v1146
  %v1170 = vmul.f32 %v1162, %v1156
  %v1171 = vmul.f32 %v1163, %v1146
  %v1172 = vmul.f32 %v1164, %v1156
  %1174 = vset.pattern.permute.xlu0 0
  %1175 = vperm.xlu0 %1174, %v1075
  %v1176 = vpop.permute.xlu0 %1175
  %1179 = vset.pattern.permute.xlu0 0
  %1180 = vperm.xlu0 %1179, %v1076
  %v1181 = vpop.permute.xlu0 %1180
  %1184 = vset.pattern.permute.xlu0 0
  %1185 = vperm.xlu0 %1184, %v1077
  %v1186 = vpop.permute.xlu0 %1185
  %1189 = vset.pattern.permute.xlu0 0
  %1190 = vperm.xlu0 %1189, %v1078
  %v1191 = vpop.permute.xlu0 %1190
  %v1193 = vmul.f32 %v1165, %v1176
  %v1194 = vmul.f32 %v1166, %v1176
  %v1195 = vmul.f32 %v1167, %v1181
  %v1196 = vmul.f32 %v1168, %v1181
  %v1197 = vmul.f32 %v1169, %v1186
  %v1198 = vmul.f32 %v1170, %v1186
  %v1199 = vmul.f32 %v1171, %v1191
  %v1200 = vmul.f32 %v1172, %v1191
  %1202 = vset.pattern.permute.xlu0 0
  %1203 = vperm.xlu0 %1202, %v1079
  %v1204 = vpop.permute.xlu0 %1203
  %1207 = vset.pattern.permute.xlu0 0
  %1208 = vperm.xlu0 %1207, %v1080
  %v1209 = vpop.permute.xlu0 %1208
  %1212 = vset.pattern.permute.xlu0 0
  %1213 = vperm.xlu0 %1212, %v1081
  %v1214 = vpop.permute.xlu0 %1213
  %1217 = vset.pattern.permute.xlu0 0
  %1218 = vperm.xlu0 %1217, %v1082
  %v1219 = vpop.permute.xlu0 %1218
  %v1221 = vadd.f32 %v1193, %v1204
  %v1222 = vadd.f32 %v1194, %v1204
  %v1223 = vadd.f32 %v1195, %v1209
  %v1224 = vadd.f32 %v1196, %v1209
  %v1225 = vadd.f32 %v1197, %v1214
  %v1226 = vadd.f32 %v1198, %v1214
  %v1227 = vadd.f32 %v1199, %v1219
  %v1228 = vadd.f32 %v1200, %v1219
  %v1229 = vmul.f32 %v1221, 0.01
  %v1230 = vmul.f32 %v1222, 0.01
  %v1231 = vmul.f32 %v1223, 0.01
  %v1232 = vmul.f32 %v1224, 0.01
  %v1233 = vmul.f32 %v1225, 0.01
  %v1234 = vmul.f32 %v1226, 0.01
  %v1235 = vmul.f32 %v1227, 0.01
  %v1236 = vmul.f32 %v1228, 0.01
  %v1237 = vmax.f32 %v1221, %v1229
  %v1238 = vmax.f32 %v1222, %v1230
  %v1239 = vmax.f32 %v1223, %v1231
  %v1240 = vmax.f32 %v1224, %v1232
  %v1241 = vmax.f32 %v1225, %v1233
  %v1242 = vmax.f32 %v1226, %v1234
  %v1243 = vmax.f32 %v1227, %v1235
  %v1244 = vmax.f32 %v1228, %v1236
  %v1245 = vld [vmem:[%s5] sm:$0xff]
  %v1246 = vld [vmem:[%s5 + $0x8] sm:$0xff]
  %v1247 = vld [vmem:[%s5 + $0x10] sm:$0xff]
  %v1248 = vld [vmem:[%s5 + $0x18] sm:$0xff]
  %v1249 = vld [vmem:[%s6] sm:$0xff]
  %v1250 = vld [vmem:[%s6 + $0x8] sm:$0xff]
  %v1251 = vld [vmem:[%s6 + $0x10] sm:$0xff]
  %v1252 = vld [vmem:[%s6 + $0x18] sm:$0xff]
  %1254 = vset.pattern.permute.xlu0 0
  %1255 = vperm.xlu0 %1254, %v1249
  %v1256 = vpop.permute.xlu0 %1255
  %1259 = vset.pattern.permute.xlu0 0
  %1260 = vperm.xlu0 %1259, %v1250
  %v1261 = vpop.permute.xlu0 %1260
  %1264 = vset.pattern.permute.xlu0 0
  %1265 = vperm.xlu0 %1264, %v1251
  %v1266 = vpop.permute.xlu0 %1265
  %1269 = vset.pattern.permute.xlu0 0
  %1270 = vperm.xlu0 %1269, %v1252
  %v1271 = vpop.permute.xlu0 %1270
  %vm1273 = vcmask 261120
  %v1275 = vsel %vm1273, %v1245, 0
  %v1278 = vsel %vm1273, %v1246, 0
  %v1281 = vsel %vm1273, %v1247, 0
  %v1284 = vsel %vm1273, %v1248, 0
  %1286 = vmatpush.msra.mxu0 0.0
  %1287 = vmatpush.msra.mxu0 0.0
  %1288 = vmatpush.msra.mxu0 0.0
  %1289 = vmatpush.msra.mxu0 0.0
  %1290 = vmatpush.msra.mxu0 0.0
  %1291 = vmatpush.msra.mxu0 0.0
  %1292 = vmatpush.msra.mxu0 0.0
  %1293 = vmatpush.msra.mxu0 0.0
  %1294 = vmatpush.msra.mxu0 0.0
  %1295 = vmatpush.msra.mxu0 0.0
  %1296 = vmatpush.msra.mxu0 0.0
  %1297 = vmatpush.msra.mxu0 0.0
  %v1298 = vand.u32 %v1243, 4294901760
  %1299 = vmatpush.msra.mxu0 %v1298
  %v1300 = vand.u32 %v1241, 4294901760
  %1301 = vmatpush.msra.mxu0 %v1300
  %v1302 = vand.u32 %v1239, 4294901760
  %1303 = vmatpush.msra.mxu0 %v1302
  %v1304 = vand.u32 %v1237, 4294901760
  %1305 = vmatpush.msra.mxu0 %v1304
  %v1306 = vand.u32 %v1275, 4294901760
  %v1307 = vsub.f32 %v1275, %v1306
  %v1308 = vand.u32 %v1307, 4294901760
  %v1309 = vsub.f32 %v1307, %v1308
  %v1310 = vand.u32 %v1309, 4294901760
  %1311 = vmatmul.f32.gmra.mxu0 %v1310
  %v1312 = vpop.f32.mrf.mxu0
  %v1313 = vadd.f32 %v1256, %v1312
  %v1314 = vand.u32 %v1278, 4294901760
  %v1315 = vsub.f32 %v1278, %v1314
  %v1316 = vand.u32 %v1315, 4294901760
  %v1317 = vsub.f32 %v1315, %v1316
  %v1318 = vand.u32 %v1317, 4294901760
  %1319 = vmatmul.f32.gmra.mxu0 %v1318
  %v1320 = vpop.f32.mrf.mxu0
  %v1321 = vadd.f32 %v1261, %v1320
  %v1322 = vand.u32 %v1281, 4294901760
  %v1323 = vsub.f32 %v1281, %v1322
  %v1324 = vand.u32 %v1323, 4294901760
  %v1325 = vsub.f32 %v1323, %v1324
  %v1326 = vand.u32 %v1325, 4294901760
  %1327 = vmatmul.f32.gmra.mxu0 %v1326
  %v1328 = vpop.f32.mrf.mxu0
  %v1329 = vadd.f32 %v1266, %v1328
  %v1330 = vand.u32 %v1284, 4294901760
  %v1331 = vsub.f32 %v1284, %v1330
  %v1332 = vand.u32 %v1331, 4294901760
  %v1333 = vsub.f32 %v1331, %v1332
  %v1334 = vand.u32 %v1333, 4294901760
  %1335 = vmatmul.f32.gmra.mxu0 %v1334
  %v1336 = vpop.f32.mrf.mxu0
  %v1337 = vadd.f32 %v1271, %v1336
  %1338 = vdwg.mxu0
  %1339 = vmatpush.msra.mxu0 0.0
  %1340 = vmatpush.msra.mxu0 0.0
  %1341 = vmatpush.msra.mxu0 0.0
  %1342 = vmatpush.msra.mxu0 0.0
  %1343 = vmatpush.msra.mxu0 0.0
  %1344 = vmatpush.msra.mxu0 0.0
  %1345 = vmatpush.msra.mxu0 0.0
  %1346 = vmatpush.msra.mxu0 0.0
  %1347 = vmatpush.msra.mxu0 0.0
  %1348 = vmatpush.msra.mxu0 0.0
  %1349 = vmatpush.msra.mxu0 0.0
  %1350 = vmatpush.msra.mxu0 0.0
  %v1351 = vand.u32 %v1243, 4294901760
  %v1352 = vsub.f32 %v1243, %v1351
  %v1353 = vand.u32 %v1352, 4294901760
  %v1354 = vsub.f32 %v1352, %v1353
  %v1355 = vand.u32 %v1354, 4294901760
  %1356 = vmatpush.msra.mxu0 %v1355
  %v1357 = vand.u32 %v1241, 4294901760
  %v1358 = vsub.f32 %v1241, %v1357
  %v1359 = vand.u32 %v1358, 4294901760
  %v1360 = vsub.f32 %v1358, %v1359
  %v1361 = vand.u32 %v1360, 4294901760
  %1362 = vmatpush.msra.mxu0 %v1361
  %v1363 = vand.u32 %v1239, 4294901760
  %v1364 = vsub.f32 %v1239, %v1363
  %v1365 = vand.u32 %v1364, 4294901760
  %v1366 = vsub.f32 %v1364, %v1365
  %v1367 = vand.u32 %v1366, 4294901760
  %1368 = vmatpush.msra.mxu0 %v1367
  %v1369 = vand.u32 %v1237, 4294901760
  %v1370 = vsub.f32 %v1237, %v1369
  %v1371 = vand.u32 %v1370, 4294901760
  %v1372 = vsub.f32 %v1370, %v1371
  %v1373 = vand.u32 %v1372, 4294901760
  %1374 = vmatpush.msra.mxu0 %v1373
  %v1375 = vand.u32 %v1275, 4294901760
  %1376 = vmatmul.f32.gmra.mxu0 %v1375
  %v1377 = vpop.f32.mrf.mxu0
  %v1378 = vadd.f32 %v1313, %v1377
  %v1379 = vand.u32 %v1278, 4294901760
  %1380 = vmatmul.f32.gmra.mxu0 %v1379
  %v1381 = vpop.f32.mrf.mxu0
  %v1382 = vadd.f32 %v1321, %v1381
  %v1383 = vand.u32 %v1281, 4294901760
  %1384 = vmatmul.f32.gmra.mxu0 %v1383
  %v1385 = vpop.f32.mrf.mxu0
  %v1386 = vadd.f32 %v1329, %v1385
  %v1387 = vand.u32 %v1284, 4294901760
  %1388 = vmatmul.f32.gmra.mxu0 %v1387
  %v1389 = vpop.f32.mrf.mxu0
  %v1390 = vadd.f32 %v1337, %v1389
  %1391 = vdwg.mxu0
  %1392 = vmatpush.msra.mxu0 0.0
  %1393 = vmatpush.msra.mxu0 0.0
  %1394 = vmatpush.msra.mxu0 0.0
  %1395 = vmatpush.msra.mxu0 0.0
  %1396 = vmatpush.msra.mxu0 0.0
  %1397 = vmatpush.msra.mxu0 0.0
  %1398 = vmatpush.msra.mxu0 0.0
  %1399 = vmatpush.msra.mxu0 0.0
  %1400 = vmatpush.msra.mxu0 0.0
  %1401 = vmatpush.msra.mxu0 0.0
  %1402 = vmatpush.msra.mxu0 0.0
  %1403 = vmatpush.msra.mxu0 0.0
  %v1404 = vand.u32 %v1243, 4294901760
  %v1405 = vsub.f32 %v1243, %v1404
  %1406 = vmatpush.msra.mxu0 %v1405
  %v1407 = vand.u32 %v1241, 4294901760
  %v1408 = vsub.f32 %v1241, %v1407
  %1409 = vmatpush.msra.mxu0 %v1408
  %v1410 = vand.u32 %v1239, 4294901760
  %v1411 = vsub.f32 %v1239, %v1410
  %1412 = vmatpush.msra.mxu0 %v1411
  %v1413 = vand.u32 %v1237, 4294901760
  %v1414 = vsub.f32 %v1237, %v1413
  %1415 = vmatpush.msra.mxu0 %v1414
  %v1416 = vand.u32 %v1275, 4294901760
  %v1417 = vsub.f32 %v1275, %v1416
  %1418 = vmatmul.f32.gmra.mxu0 %v1417
  %v1419 = vpop.f32.mrf.mxu0
  %v1420 = vadd.f32 %v1378, %v1419
  %v1421 = vand.u32 %v1278, 4294901760
  %v1422 = vsub.f32 %v1278, %v1421
  %1423 = vmatmul.f32.gmra.mxu0 %v1422
  %v1424 = vpop.f32.mrf.mxu0
  %v1425 = vadd.f32 %v1382, %v1424
  %v1426 = vand.u32 %v1281, 4294901760
  %v1427 = vsub.f32 %v1281, %v1426
  %1428 = vmatmul.f32.gmra.mxu0 %v1427
  %v1429 = vpop.f32.mrf.mxu0
  %v1430 = vadd.f32 %v1386, %v1429
  %v1431 = vand.u32 %v1284, 4294901760
  %v1432 = vsub.f32 %v1284, %v1431
  %1433 = vmatmul.f32.gmra.mxu0 %v1432
  %v1434 = vpop.f32.mrf.mxu0
  %v1435 = vadd.f32 %v1390, %v1434
  %1436 = vdwg.mxu0
  %1437 = vmatpush.msra.mxu0 0.0
  %1438 = vmatpush.msra.mxu0 0.0
  %1439 = vmatpush.msra.mxu0 0.0
  %1440 = vmatpush.msra.mxu0 0.0
  %1441 = vmatpush.msra.mxu0 0.0
  %1442 = vmatpush.msra.mxu0 0.0
  %1443 = vmatpush.msra.mxu0 0.0
  %1444 = vmatpush.msra.mxu0 0.0
  %1445 = vmatpush.msra.mxu0 0.0
  %1446 = vmatpush.msra.mxu0 0.0
  %1447 = vmatpush.msra.mxu0 0.0
  %1448 = vmatpush.msra.mxu0 0.0
  %v1449 = vand.u32 %v1243, 4294901760
  %1450 = vmatpush.msra.mxu0 %v1449
  %v1451 = vand.u32 %v1241, 4294901760
  %1452 = vmatpush.msra.mxu0 %v1451
  %v1453 = vand.u32 %v1239, 4294901760
  %1454 = vmatpush.msra.mxu0 %v1453
  %v1455 = vand.u32 %v1237, 4294901760
  %1456 = vmatpush.msra.mxu0 %v1455
  %v1457 = vand.u32 %v1275, 4294901760
  %v1458 = vsub.f32 %v1275, %v1457
  %v1459 = vand.u32 %v1458, 4294901760
  %1460 = vmatmul.f32.gmra.mxu0 %v1459
  %v1461 = vpop.f32.mrf.mxu0
  %v1462 = vadd.f32 %v1420, %v1461
  %v1463 = vand.u32 %v1278, 4294901760
  %v1464 = vsub.f32 %v1278, %v1463
  %v1465 = vand.u32 %v1464, 4294901760
  %1466 = vmatmul.f32.gmra.mxu0 %v1465
  %v1467 = vpop.f32.mrf.mxu0
  %v1468 = vadd.f32 %v1425, %v1467
  %v1469 = vand.u32 %v1281, 4294901760
  %v1470 = vsub.f32 %v1281, %v1469
  %v1471 = vand.u32 %v1470, 4294901760
  %1472 = vmatmul.f32.gmra.mxu0 %v1471
  %v1473 = vpop.f32.mrf.mxu0
  %v1474 = vadd.f32 %v1430, %v1473
  %v1475 = vand.u32 %v1284, 4294901760
  %v1476 = vsub.f32 %v1284, %v1475
  %v1477 = vand.u32 %v1476, 4294901760
  %1478 = vmatmul.f32.gmra.mxu0 %v1477
  %v1479 = vpop.f32.mrf.mxu0
  %v1480 = vadd.f32 %v1435, %v1479
  %1481 = vdwg.mxu0
  %1482 = vmatpush.msra.mxu0 0.0
  %1483 = vmatpush.msra.mxu0 0.0
  %1484 = vmatpush.msra.mxu0 0.0
  %1485 = vmatpush.msra.mxu0 0.0
  %1486 = vmatpush.msra.mxu0 0.0
  %1487 = vmatpush.msra.mxu0 0.0
  %1488 = vmatpush.msra.mxu0 0.0
  %1489 = vmatpush.msra.mxu0 0.0
  %1490 = vmatpush.msra.mxu0 0.0
  %1491 = vmatpush.msra.mxu0 0.0
  %1492 = vmatpush.msra.mxu0 0.0
  %1493 = vmatpush.msra.mxu0 0.0
  %v1494 = vand.u32 %v1243, 4294901760
  %v1495 = vsub.f32 %v1243, %v1494
  %v1496 = vand.u32 %v1495, 4294901760
  %1497 = vmatpush.msra.mxu0 %v1496
  %v1498 = vand.u32 %v1241, 4294901760
  %v1499 = vsub.f32 %v1241, %v1498
  %v1500 = vand.u32 %v1499, 4294901760
  %1501 = vmatpush.msra.mxu0 %v1500
  %v1502 = vand.u32 %v1239, 4294901760
  %v1503 = vsub.f32 %v1239, %v1502
  %v1504 = vand.u32 %v1503, 4294901760
  %1505 = vmatpush.msra.mxu0 %v1504
  %v1506 = vand.u32 %v1237, 4294901760
  %v1507 = vsub.f32 %v1237, %v1506
  %v1508 = vand.u32 %v1507, 4294901760
  %1509 = vmatpush.msra.mxu0 %v1508
  %v1510 = vand.u32 %v1275, 4294901760
  %1511 = vmatmul.f32.gmra.mxu0 %v1510
  %v1512 = vpop.f32.mrf.mxu0
  %v1513 = vadd.f32 %v1462, %v1512
  %v1514 = vand.u32 %v1278, 4294901760
  %1515 = vmatmul.f32.gmra.mxu0 %v1514
  %v1516 = vpop.f32.mrf.mxu0
  %v1517 = vadd.f32 %v1468, %v1516
  %v1518 = vand.u32 %v1281, 4294901760
  %1519 = vmatmul.f32.gmra.mxu0 %v1518
  %v1520 = vpop.f32.mrf.mxu0
  %v1521 = vadd.f32 %v1474, %v1520
  %v1522 = vand.u32 %v1284, 4294901760
  %1523 = vmatmul.f32.gmra.mxu0 %v1522
  %v1524 = vpop.f32.mrf.mxu0
  %v1525 = vadd.f32 %v1480, %v1524
  %1526 = vdwg.mxu0
  %1527 = vmatpush.msra.mxu0 0.0
  %1528 = vmatpush.msra.mxu0 0.0
  %1529 = vmatpush.msra.mxu0 0.0
  %1530 = vmatpush.msra.mxu0 0.0
  %1531 = vmatpush.msra.mxu0 0.0
  %1532 = vmatpush.msra.mxu0 0.0
  %1533 = vmatpush.msra.mxu0 0.0
  %1534 = vmatpush.msra.mxu0 0.0
  %1535 = vmatpush.msra.mxu0 0.0
  %1536 = vmatpush.msra.mxu0 0.0
  %1537 = vmatpush.msra.mxu0 0.0
  %1538 = vmatpush.msra.mxu0 0.0
  %v1539 = vand.u32 %v1243, 4294901760
  %1540 = vmatpush.msra.mxu0 %v1539
  %v1541 = vand.u32 %v1241, 4294901760
  %1542 = vmatpush.msra.mxu0 %v1541
  %v1543 = vand.u32 %v1239, 4294901760
  %1544 = vmatpush.msra.mxu0 %v1543
  %v1545 = vand.u32 %v1237, 4294901760
  %1546 = vmatpush.msra.mxu0 %v1545
  %v1547 = vand.u32 %v1275, 4294901760
  %1548 = vmatmul.f32.gmra.mxu0 %v1547
  %v1549 = vpop.f32.mrf.mxu0
  %v1550 = vadd.f32 %v1513, %v1549
  %v1551 = vand.u32 %v1278, 4294901760
  %1552 = vmatmul.f32.gmra.mxu0 %v1551
  %v1553 = vpop.f32.mrf.mxu0
  %v1554 = vadd.f32 %v1517, %v1553
  %v1555 = vand.u32 %v1281, 4294901760
  %1556 = vmatmul.f32.gmra.mxu0 %v1555
  %v1557 = vpop.f32.mrf.mxu0
  %v1558 = vadd.f32 %v1521, %v1557
  %v1559 = vand.u32 %v1284, 4294901760
  %1560 = vmatmul.f32.gmra.mxu0 %v1559
  %v1561 = vpop.f32.mrf.mxu0
  %v1562 = vadd.f32 %v1525, %v1561
  %1563 = vdwg.mxu0
  %1564 = vmatpush.msra.mxu0 0.0
  %1565 = vmatpush.msra.mxu0 0.0
  %1566 = vmatpush.msra.mxu0 0.0
  %1567 = vmatpush.msra.mxu0 0.0
  %1568 = vmatpush.msra.mxu0 0.0
  %1569 = vmatpush.msra.mxu0 0.0
  %1570 = vmatpush.msra.mxu0 0.0
  %1571 = vmatpush.msra.mxu0 0.0
  %1572 = vmatpush.msra.mxu0 0.0
  %1573 = vmatpush.msra.mxu0 0.0
  %1574 = vmatpush.msra.mxu0 0.0
  %1575 = vmatpush.msra.mxu0 0.0
  %v1576 = vand.u32 %v1244, 4294901760
  %1577 = vmatpush.msra.mxu0 %v1576
  %v1578 = vand.u32 %v1242, 4294901760
  %1579 = vmatpush.msra.mxu0 %v1578
  %v1580 = vand.u32 %v1240, 4294901760
  %1581 = vmatpush.msra.mxu0 %v1580
  %v1582 = vand.u32 %v1238, 4294901760
  %1583 = vmatpush.msra.mxu0 %v1582
  %v1584 = vand.u32 %v1275, 4294901760
  %v1585 = vsub.f32 %v1275, %v1584
  %v1586 = vand.u32 %v1585, 4294901760
  %v1587 = vsub.f32 %v1585, %v1586
  %v1588 = vand.u32 %v1587, 4294901760
  %1589 = vmatmul.f32.gmra.mxu0 %v1588
  %v1590 = vpop.f32.mrf.mxu0
  %v1591 = vadd.f32 %v1256, %v1590
  %v1592 = vand.u32 %v1278, 4294901760
  %v1593 = vsub.f32 %v1278, %v1592
  %v1594 = vand.u32 %v1593, 4294901760
  %v1595 = vsub.f32 %v1593, %v1594
  %v1596 = vand.u32 %v1595, 4294901760
  %1597 = vmatmul.f32.gmra.mxu0 %v1596
  %v1598 = vpop.f32.mrf.mxu0
  %v1599 = vadd.f32 %v1261, %v1598
  %v1600 = vand.u32 %v1281, 4294901760
  %v1601 = vsub.f32 %v1281, %v1600
  %v1602 = vand.u32 %v1601, 4294901760
  %v1603 = vsub.f32 %v1601, %v1602
  %v1604 = vand.u32 %v1603, 4294901760
  %1605 = vmatmul.f32.gmra.mxu0 %v1604
  %v1606 = vpop.f32.mrf.mxu0
  %v1607 = vadd.f32 %v1266, %v1606
  %v1608 = vand.u32 %v1284, 4294901760
  %v1609 = vsub.f32 %v1284, %v1608
  %v1610 = vand.u32 %v1609, 4294901760
  %v1611 = vsub.f32 %v1609, %v1610
  %v1612 = vand.u32 %v1611, 4294901760
  %1613 = vmatmul.f32.gmra.mxu0 %v1612
  %v1614 = vpop.f32.mrf.mxu0
  %v1615 = vadd.f32 %v1271, %v1614
  %1616 = vdwg.mxu0
  %1617 = vmatpush.msra.mxu0 0.0
  %1618 = vmatpush.msra.mxu0 0.0
  %1619 = vmatpush.msra.mxu0 0.0
  %1620 = vmatpush.msra.mxu0 0.0
  %1621 = vmatpush.msra.mxu0 0.0
  %1622 = vmatpush.msra.mxu0 0.0
  %1623 = vmatpush.msra.mxu0 0.0
  %1624 = vmatpush.msra.mxu0 0.0
  %1625 = vmatpush.msra.mxu0 0.0
  %1626 = vmatpush.msra.mxu0 0.0
  %1627 = vmatpush.msra.mxu0 0.0
  %1628 = vmatpush.msra.mxu0 0.0
  %v1629 = vand.u32 %v1244, 4294901760
  %v1630 = vsub.f32 %v1244, %v1629
  %v1631 = vand.u32 %v1630, 4294901760
  %v1632 = vsub.f32 %v1630, %v1631
  %v1633 = vand.u32 %v1632, 4294901760
  %1634 = vmatpush.msra.mxu0 %v1633
  %v1635 = vand.u32 %v1242, 4294901760
  %v1636 = vsub.f32 %v1242, %v1635
  %v1637 = vand.u32 %v1636, 4294901760
  %v1638 = vsub.f32 %v1636, %v1637
  %v1639 = vand.u32 %v1638, 4294901760
  %1640 = vmatpush.msra.mxu0 %v1639
  %v1641 = vand.u32 %v1240, 4294901760
  %v1642 = vsub.f32 %v1240, %v1641
  %v1643 = vand.u32 %v1642, 4294901760
  %v1644 = vsub.f32 %v1642, %v1643
  %v1645 = vand.u32 %v1644, 4294901760
  %1646 = vmatpush.msra.mxu0 %v1645
  %v1647 = vand.u32 %v1238, 4294901760
  %v1648 = vsub.f32 %v1238, %v1647
  %v1649 = vand.u32 %v1648, 4294901760
  %v1650 = vsub.f32 %v1648, %v1649
  %v1651 = vand.u32 %v1650, 4294901760
  %1652 = vmatpush.msra.mxu0 %v1651
  %v1653 = vand.u32 %v1275, 4294901760
  %1654 = vmatmul.f32.gmra.mxu0 %v1653
  %v1655 = vpop.f32.mrf.mxu0
  %v1656 = vadd.f32 %v1591, %v1655
  %v1657 = vand.u32 %v1278, 4294901760
  %1658 = vmatmul.f32.gmra.mxu0 %v1657
  %v1659 = vpop.f32.mrf.mxu0
  %v1660 = vadd.f32 %v1599, %v1659
  %v1661 = vand.u32 %v1281, 4294901760
  %1662 = vmatmul.f32.gmra.mxu0 %v1661
  %v1663 = vpop.f32.mrf.mxu0
  %v1664 = vadd.f32 %v1607, %v1663
  %v1665 = vand.u32 %v1284, 4294901760
  %1666 = vmatmul.f32.gmra.mxu0 %v1665
  %v1667 = vpop.f32.mrf.mxu0
  %v1668 = vadd.f32 %v1615, %v1667
  %1669 = vdwg.mxu0
  %1670 = vmatpush.msra.mxu0 0.0
  %1671 = vmatpush.msra.mxu0 0.0
  %1672 = vmatpush.msra.mxu0 0.0
  %1673 = vmatpush.msra.mxu0 0.0
  %1674 = vmatpush.msra.mxu0 0.0
  %1675 = vmatpush.msra.mxu0 0.0
  %1676 = vmatpush.msra.mxu0 0.0
  %1677 = vmatpush.msra.mxu0 0.0
  %1678 = vmatpush.msra.mxu0 0.0
  %1679 = vmatpush.msra.mxu0 0.0
  %1680 = vmatpush.msra.mxu0 0.0
  %1681 = vmatpush.msra.mxu0 0.0
  %v1682 = vand.u32 %v1244, 4294901760
  %v1683 = vsub.f32 %v1244, %v1682
  %1684 = vmatpush.msra.mxu0 %v1683
  %v1685 = vand.u32 %v1242, 4294901760
  %v1686 = vsub.f32 %v1242, %v1685
  %1687 = vmatpush.msra.mxu0 %v1686
  %v1688 = vand.u32 %v1240, 4294901760
  %v1689 = vsub.f32 %v1240, %v1688
  %1690 = vmatpush.msra.mxu0 %v1689
  %v1691 = vand.u32 %v1238, 4294901760
  %v1692 = vsub.f32 %v1238, %v1691
  %1693 = vmatpush.msra.mxu0 %v1692
  %v1694 = vand.u32 %v1275, 4294901760
  %v1695 = vsub.f32 %v1275, %v1694
  %1696 = vmatmul.f32.gmra.mxu0 %v1695
  %v1697 = vpop.f32.mrf.mxu0
  %v1698 = vadd.f32 %v1656, %v1697
  %v1699 = vand.u32 %v1278, 4294901760
  %v1700 = vsub.f32 %v1278, %v1699
  %1701 = vmatmul.f32.gmra.mxu0 %v1700
  %v1702 = vpop.f32.mrf.mxu0
  %v1703 = vadd.f32 %v1660, %v1702
  %v1704 = vand.u32 %v1281, 4294901760
  %v1705 = vsub.f32 %v1281, %v1704
  %1706 = vmatmul.f32.gmra.mxu0 %v1705
  %v1707 = vpop.f32.mrf.mxu0
  %v1708 = vadd.f32 %v1664, %v1707
  %v1709 = vand.u32 %v1284, 4294901760
  %v1710 = vsub.f32 %v1284, %v1709
  %1711 = vmatmul.f32.gmra.mxu0 %v1710
  %v1712 = vpop.f32.mrf.mxu0
  %v1713 = vadd.f32 %v1668, %v1712
  %1714 = vdwg.mxu0
  %1715 = vmatpush.msra.mxu0 0.0
  %1716 = vmatpush.msra.mxu0 0.0
  %1717 = vmatpush.msra.mxu0 0.0
  %1718 = vmatpush.msra.mxu0 0.0
  %1719 = vmatpush.msra.mxu0 0.0
  %1720 = vmatpush.msra.mxu0 0.0
  %1721 = vmatpush.msra.mxu0 0.0
  %1722 = vmatpush.msra.mxu0 0.0
  %1723 = vmatpush.msra.mxu0 0.0
  %1724 = vmatpush.msra.mxu0 0.0
  %1725 = vmatpush.msra.mxu0 0.0
  %1726 = vmatpush.msra.mxu0 0.0
  %v1727 = vand.u32 %v1244, 4294901760
  %1728 = vmatpush.msra.mxu0 %v1727
  %v1729 = vand.u32 %v1242, 4294901760
  %1730 = vmatpush.msra.mxu0 %v1729
  %v1731 = vand.u32 %v1240, 4294901760
  %1732 = vmatpush.msra.mxu0 %v1731
  %v1733 = vand.u32 %v1238, 4294901760
  %1734 = vmatpush.msra.mxu0 %v1733
  %v1735 = vand.u32 %v1275, 4294901760
  %v1736 = vsub.f32 %v1275, %v1735
  %v1737 = vand.u32 %v1736, 4294901760
  %1738 = vmatmul.f32.gmra.mxu0 %v1737
  %v1739 = vpop.f32.mrf.mxu0
  %v1740 = vadd.f32 %v1698, %v1739
  %v1741 = vand.u32 %v1278, 4294901760
  %v1742 = vsub.f32 %v1278, %v1741
  %v1743 = vand.u32 %v1742, 4294901760
  %1744 = vmatmul.f32.gmra.mxu0 %v1743
  %v1745 = vpop.f32.mrf.mxu0
  %v1746 = vadd.f32 %v1703, %v1745
  %v1747 = vand.u32 %v1281, 4294901760
  %v1748 = vsub.f32 %v1281, %v1747
  %v1749 = vand.u32 %v1748, 4294901760
  %1750 = vmatmul.f32.gmra.mxu0 %v1749
  %v1751 = vpop.f32.mrf.mxu0
  %v1752 = vadd.f32 %v1708, %v1751
  %v1753 = vand.u32 %v1284, 4294901760
  %v1754 = vsub.f32 %v1284, %v1753
  %v1755 = vand.u32 %v1754, 4294901760
  %1756 = vmatmul.f32.gmra.mxu0 %v1755
  %v1757 = vpop.f32.mrf.mxu0
  %v1758 = vadd.f32 %v1713, %v1757
  %1759 = vdwg.mxu0
  %1760 = vmatpush.msra.mxu0 0.0
  %1761 = vmatpush.msra.mxu0 0.0
  %1762 = vmatpush.msra.mxu0 0.0
  %1763 = vmatpush.msra.mxu0 0.0
  %1764 = vmatpush.msra.mxu0 0.0
  %1765 = vmatpush.msra.mxu0 0.0
  %1766 = vmatpush.msra.mxu0 0.0
  %1767 = vmatpush.msra.mxu0 0.0
  %1768 = vmatpush.msra.mxu0 0.0
  %1769 = vmatpush.msra.mxu0 0.0
  %1770 = vmatpush.msra.mxu0 0.0
  %1771 = vmatpush.msra.mxu0 0.0
  %v1772 = vand.u32 %v1244, 4294901760
  %v1773 = vsub.f32 %v1244, %v1772
  %v1774 = vand.u32 %v1773, 4294901760
  %1775 = vmatpush.msra.mxu0 %v1774
  %v1776 = vand.u32 %v1242, 4294901760
  %v1777 = vsub.f32 %v1242, %v1776
  %v1778 = vand.u32 %v1777, 4294901760
  %1779 = vmatpush.msra.mxu0 %v1778
  %v1780 = vand.u32 %v1240, 4294901760
  %v1781 = vsub.f32 %v1240, %v1780
  %v1782 = vand.u32 %v1781, 4294901760
  %1783 = vmatpush.msra.mxu0 %v1782
  %v1784 = vand.u32 %v1238, 4294901760
  %v1785 = vsub.f32 %v1238, %v1784
  %v1786 = vand.u32 %v1785, 4294901760
  %1787 = vmatpush.msra.mxu0 %v1786
  %v1788 = vand.u32 %v1275, 4294901760
  %1789 = vmatmul.f32.gmra.mxu0 %v1788
  %v1790 = vpop.f32.mrf.mxu0
  %v1791 = vadd.f32 %v1740, %v1790
  %v1792 = vand.u32 %v1278, 4294901760
  %1793 = vmatmul.f32.gmra.mxu0 %v1792
  %v1794 = vpop.f32.mrf.mxu0
  %v1795 = vadd.f32 %v1746, %v1794
  %v1796 = vand.u32 %v1281, 4294901760
  %1797 = vmatmul.f32.gmra.mxu0 %v1796
  %v1798 = vpop.f32.mrf.mxu0
  %v1799 = vadd.f32 %v1752, %v1798
  %v1800 = vand.u32 %v1284, 4294901760
  %1801 = vmatmul.f32.gmra.mxu0 %v1800
  %v1802 = vpop.f32.mrf.mxu0
  %v1803 = vadd.f32 %v1758, %v1802
  %1804 = vdwg.mxu0
  %1805 = vmatpush.msra.mxu0 0.0
  %1806 = vmatpush.msra.mxu0 0.0
  %1807 = vmatpush.msra.mxu0 0.0
  %1808 = vmatpush.msra.mxu0 0.0
  %1809 = vmatpush.msra.mxu0 0.0
  %1810 = vmatpush.msra.mxu0 0.0
  %1811 = vmatpush.msra.mxu0 0.0
  %1812 = vmatpush.msra.mxu0 0.0
  %1813 = vmatpush.msra.mxu0 0.0
  %1814 = vmatpush.msra.mxu0 0.0
  %1815 = vmatpush.msra.mxu0 0.0
  %1816 = vmatpush.msra.mxu0 0.0
  %v1817 = vand.u32 %v1244, 4294901760
  %1818 = vmatpush.msra.mxu0 %v1817
  %v1819 = vand.u32 %v1242, 4294901760
  %1820 = vmatpush.msra.mxu0 %v1819
  %v1821 = vand.u32 %v1240, 4294901760
  %1822 = vmatpush.msra.mxu0 %v1821
  %v1823 = vand.u32 %v1238, 4294901760
  %1824 = vmatpush.msra.mxu0 %v1823
  %v1825 = vand.u32 %v1275, 4294901760
  %1826 = vmatmul.f32.gmra.mxu0 %v1825
  %v1827 = vpop.f32.mrf.mxu0
  %v1828 = vadd.f32 %v1791, %v1827
  %v1829 = vand.u32 %v1278, 4294901760
  %1830 = vmatmul.f32.gmra.mxu0 %v1829
  %v1831 = vpop.f32.mrf.mxu0
  %v1832 = vadd.f32 %v1795, %v1831
  %v1833 = vand.u32 %v1281, 4294901760
  %1834 = vmatmul.f32.gmra.mxu0 %v1833
  %v1835 = vpop.f32.mrf.mxu0
  %v1836 = vadd.f32 %v1799, %v1835
  %v1837 = vand.u32 %v1284, 4294901760
  %1838 = vmatmul.f32.gmra.mxu0 %v1837
  %v1839 = vpop.f32.mrf.mxu0
  %v1840 = vadd.f32 %v1803, %v1839
  %1841 = vdwg.mxu0
  %v1842 = vld [vmem:[%s7] sm:$0xff]
  %v1843 = vld [vmem:[%s7 + $0x8] sm:$0xff]
  %v1844 = vld [vmem:[%s7 + $0x10] sm:$0xff]
  %v1845 = vld [vmem:[%s7 + $0x18] sm:$0xff]
  %v1846 = vld [vmem:[%s8] sm:$0xff]
  %v1847 = vld [vmem:[%s8 + $0x8] sm:$0xff]
  %v1848 = vld [vmem:[%s8 + $0x10] sm:$0xff]
  %v1849 = vld [vmem:[%s8 + $0x18] sm:$0xff]
  %v1850 = vadd.f32 %v1550, %v1554
  %v1851 = vadd.f32 %v1850, %v1558
  %v1852 = vadd.f32 %v1851, %v1562
  %v1853 = vrot.slane %v1852, 4
  %v1854 = vadd.f32 %v1852, %v1853
  %v1855 = vrot.slane %v1854, 2
  %v1856 = vadd.f32 %v1854, %v1855
  %v1857 = vrot.slane %v1856, 1
  %v1858 = vadd.f32 %v1856, %v1857
  %v1859 = vadd.f32 %v1828, %v1832
  %v1860 = vadd.f32 %v1859, %v1836
  %v1861 = vadd.f32 %v1860, %v1840
  %v1862 = vrot.slane %v1861, 4
  %v1863 = vadd.f32 %v1861, %v1862
  %v1864 = vrot.slane %v1863, 2
  %v1865 = vadd.f32 %v1863, %v1864
  %v1866 = vrot.slane %v1865, 1
  %v1867 = vadd.f32 %v1865, %v1866
  %v1868 = vmul.f32 %v1550, %v1550
  %v1869 = vmul.f32 %v1828, %v1828
  %v1870 = vmul.f32 %v1554, %v1554
  %v1871 = vmul.f32 %v1832, %v1832
  %v1872 = vmul.f32 %v1558, %v1558
  %v1873 = vmul.f32 %v1836, %v1836
  %v1874 = vmul.f32 %v1562, %v1562
  %v1875 = vmul.f32 %v1840, %v1840
  %v1876 = vadd.f32 %v1868, %v1870
  %v1877 = vadd.f32 %v1876, %v1872
  %v1878 = vadd.f32 %v1877, %v1874
  %v1879 = vrot.slane %v1878, 4
  %v1880 = vadd.f32 %v1878, %v1879
  %v1881 = vrot.slane %v1880, 2
  %v1882 = vadd.f32 %v1880, %v1881
  %v1883 = vrot.slane %v1882, 1
  %v1884 = vadd.f32 %v1882, %v1883
  %v1885 = vadd.f32 %v1869, %v1871
  %v1886 = vadd.f32 %v1885, %v1873
  %v1887 = vadd.f32 %v1886, %v1875
  %v1888 = vrot.slane %v1887, 4
  %v1889 = vadd.f32 %v1887, %v1888
  %v1890 = vrot.slane %v1889, 2
  %v1891 = vadd.f32 %v1889, %v1890
  %v1892 = vrot.slane %v1891, 1
  %v1893 = vadd.f32 %v1891, %v1892
  %v1894 = vmul.f32 %v1858, 0.03125
  %v1895 = vmul.f32 %v1867, 0.03125
  %v1896 = vmul.f32 %v1884, 0.03125
  %v1897 = vmul.f32 %v1893, 0.03125
  %v1898 = vmul.f32 %v1894, %v1894
  %v1899 = vmul.f32 %v1895, %v1895
  %v1900 = vsub.f32 %v1896, %v1898
  %v1901 = vsub.f32 %v1897, %v1899
  %v1902 = vadd.f32 %v1900, 1e-05
  %v1903 = vadd.f32 %v1901, 1e-05
  %v1904 = vrsqrt.pop %v1902
  %v1905 = vmul.f32 %v1904, %v1902
  %v1906 = vmul.f32 %v1905, %v1904
  %v1907 = vmul.f32 0.5, %v1906
  %v1908 = vsub.f32 1.5, %v1907
  %v1909 = vmul.f32 %v1904, %v1908
  %vm1910 = vweird.f32 %v1902
  %vm1911 = vweird.f32 %v1904
  %vm1912 = vmor %vm1910, %vm1911
  %v1913 = vsel %vm1912, %v1904, %v1909
  %v1914 = vrsqrt.pop %v1903
  %v1915 = vmul.f32 %v1914, %v1903
  %v1916 = vmul.f32 %v1915, %v1914
  %v1917 = vmul.f32 0.5, %v1916
  %v1918 = vsub.f32 1.5, %v1917
  %v1919 = vmul.f32 %v1914, %v1918
  %vm1920 = vweird.f32 %v1903
  %vm1921 = vweird.f32 %v1914
  %vm1922 = vmor %vm1920, %vm1921
  %v1923 = vsel %vm1922, %v1914, %v1919
  %v1924 = vsub.f32 %v1550, %v1894
  %v1925 = vsub.f32 %v1828, %v1895
  %v1926 = vsub.f32 %v1554, %v1894
  %v1927 = vsub.f32 %v1832, %v1895
  %v1928 = vsub.f32 %v1558, %v1894
  %v1929 = vsub.f32 %v1836, %v1895
  %v1930 = vsub.f32 %v1562, %v1894
  %v1931 = vsub.f32 %v1840, %v1895
  %v1932 = vmul.f32 %v1924, %v1913
  %v1933 = vmul.f32 %v1925, %v1923
  %v1934 = vmul.f32 %v1926, %v1913
  %v1935 = vmul.f32 %v1927, %v1923
  %v1936 = vmul.f32 %v1928, %v1913
  %v1937 = vmul.f32 %v1929, %v1923
  %v1938 = vmul.f32 %v1930, %v1913
  %v1939 = vmul.f32 %v1931, %v1923
  %1941 = vset.pattern.permute.xlu0 0
  %1942 = vperm.xlu0 %1941, %v1842
  %v1943 = vpop.permute.xlu0 %1942
  %1946 = vset.pattern.permute.xlu0 0
  %1947 = vperm.xlu0 %1946, %v1843
  %v1948 = vpop.permute.xlu0 %1947
  %1951 = vset.pattern.permute.xlu0 0
  %1952 = vperm.xlu0 %1951, %v1844
  %v1953 = vpop.permute.xlu0 %1952
  %1956 = vset.pattern.permute.xlu0 0
  %1957 = vperm.xlu0 %1956, %v1845
  %v1958 = vpop.permute.xlu0 %1957
  %v1960 = vmul.f32 %v1932, %v1943
  %v1961 = vmul.f32 %v1933, %v1943
  %v1962 = vmul.f32 %v1934, %v1948
  %v1963 = vmul.f32 %v1935, %v1948
  %v1964 = vmul.f32 %v1936, %v1953
  %v1965 = vmul.f32 %v1937, %v1953
  %v1966 = vmul.f32 %v1938, %v1958
  %v1967 = vmul.f32 %v1939, %v1958
  %1969 = vset.pattern.permute.xlu0 0
  %1970 = vperm.xlu0 %1969, %v1846
  %v1971 = vpop.permute.xlu0 %1970
  %1974 = vset.pattern.permute.xlu0 0
  %1975 = vperm.xlu0 %1974, %v1847
  %v1976 = vpop.permute.xlu0 %1975
  %1979 = vset.pattern.permute.xlu0 0
  %1980 = vperm.xlu0 %1979, %v1848
  %v1981 = vpop.permute.xlu0 %1980
  %1984 = vset.pattern.permute.xlu0 0
  %1985 = vperm.xlu0 %1984, %v1849
  %v1986 = vpop.permute.xlu0 %1985
  %v1988 = vadd.f32 %v1960, %v1971
  %v1989 = vadd.f32 %v1961, %v1971
  %v1990 = vadd.f32 %v1962, %v1976
  %v1991 = vadd.f32 %v1963, %v1976
  %v1992 = vadd.f32 %v1964, %v1981
  %v1993 = vadd.f32 %v1965, %v1981
  %v1994 = vadd.f32 %v1966, %v1986
  %v1995 = vadd.f32 %v1967, %v1986
  %v1996 = vmul.f32 %v1988, 0.01
  %v1997 = vmul.f32 %v1989, 0.01
  %v1998 = vmul.f32 %v1990, 0.01
  %v1999 = vmul.f32 %v1991, 0.01
  %v2000 = vmul.f32 %v1992, 0.01
  %v2001 = vmul.f32 %v1993, 0.01
  %v2002 = vmul.f32 %v1994, 0.01
  %v2003 = vmul.f32 %v1995, 0.01
  %v2004 = vmax.f32 %v1988, %v1996
  %v2005 = vmax.f32 %v1989, %v1997
  %v2006 = vmax.f32 %v1990, %v1998
  %v2007 = vmax.f32 %v1991, %v1999
  %v2008 = vmax.f32 %v1992, %v2000
  %v2009 = vmax.f32 %v1993, %v2001
  %v2010 = vmax.f32 %v1994, %v2002
  %v2011 = vmax.f32 %v1995, %v2003
  %v2012 = vadd.f32 %v2004, %v1237
  %v2013 = vadd.f32 %v2005, %v1238
  %v2014 = vadd.f32 %v2006, %v1239
  %v2015 = vadd.f32 %v2007, %v1240
  %v2016 = vadd.f32 %v2008, %v1241
  %v2017 = vadd.f32 %v2009, %v1242
  %v2018 = vadd.f32 %v2010, %v1243
  %v2019 = vadd.f32 %v2011, %v1244
  %v2020 = vld [vmem:[%s9] sm:$0xff]
  %v2021 = vld [vmem:[%s9 + $0x8] sm:$0xff]
  %v2022 = vld [vmem:[%s9 + $0x10] sm:$0xff]
  %v2023 = vld [vmem:[%s9 + $0x18] sm:$0xff]
  %v2024 = vld [vmem:[%s10] sm:$0x1]
  %v2026 = vperm.slane %v2024, 0
  %2028 = vxpose.xlu0.b32.start [1/16] %v2012, 128
  %2029 = vxpose.xlu0.b32.cont [2/16] %v2014, 128
  %2030 = vxpose.xlu0.b32.cont [3/16] %v2016, 128
  %2031 = vxpose.xlu0.b32.cont [4/16] %v2018, 128
  %2032 = vxpose.xlu0.b32.cont [5/16] 0.0, 128
  %2033 = vxpose.xlu0.b32.cont [6/16] 0.0, 128
  %2034 = vxpose.xlu0.b32.cont [7/16] 0.0, 128
  %2035 = vxpose.xlu0.b32.cont [8/16] 0.0, 128
  %2036 = vxpose.xlu0.b32.cont [9/16] 0.0, 128
  %2037 = vxpose.xlu0.b32.cont [10/16] 0.0, 128
  %2038 = vxpose.xlu0.b32.cont [11/16] 0.0, 128
  %2039 = vxpose.xlu0.b32.cont [12/16] 0.0, 128
  %2040 = vxpose.xlu0.b32.cont [13/16] 0.0, 128
  %2041 = vxpose.xlu0.b32.cont [14/16] 0.0, 128
  %2042 = vxpose.xlu0.b32.cont [15/16] 0.0, 128
  %2043 = vxpose.xlu0.b32.end [16/16] 0.0, 128
  %v2044 = vpop.trf.xlu0
  %v2045 = vpop.trf.xlu0
  %v2046 = vpop.trf.xlu0
  %v2047 = vpop.trf.xlu0
  %v2048 = vpop.trf.xlu0
  %v2049 = vpop.trf.xlu0
  %v2050 = vpop.trf.xlu0
  %v2051 = vpop.trf.xlu0
  %v2052 = vpop.trf.xlu0
  %v2053 = vpop.trf.xlu0
  %v2054 = vpop.trf.xlu0
  %v2055 = vpop.trf.xlu0
  %v2056 = vpop.trf.xlu0
  %v2057 = vpop.trf.xlu0
  %v2058 = vpop.trf.xlu0
  %v2059 = vpop.trf.xlu0
  %2060 = vxpose.xlu0.b32.start [1/16] %v2013, 128
  %2061 = vxpose.xlu0.b32.cont [2/16] %v2015, 128
  %2062 = vxpose.xlu0.b32.cont [3/16] %v2017, 128
  %2063 = vxpose.xlu0.b32.cont [4/16] %v2019, 128
  %2064 = vxpose.xlu0.b32.cont [5/16] 0.0, 128
  %2065 = vxpose.xlu0.b32.cont [6/16] 0.0, 128
  %2066 = vxpose.xlu0.b32.cont [7/16] 0.0, 128
  %2067 = vxpose.xlu0.b32.cont [8/16] 0.0, 128
  %2068 = vxpose.xlu0.b32.cont [9/16] 0.0, 128
  %2069 = vxpose.xlu0.b32.cont [10/16] 0.0, 128
  %2070 = vxpose.xlu0.b32.cont [11/16] 0.0, 128
  %2071 = vxpose.xlu0.b32.cont [12/16] 0.0, 128
  %2072 = vxpose.xlu0.b32.cont [13/16] 0.0, 128
  %2073 = vxpose.xlu0.b32.cont [14/16] 0.0, 128
  %2074 = vxpose.xlu0.b32.cont [15/16] 0.0, 128
  %2075 = vxpose.xlu0.b32.end [16/16] 0.0, 128
  %v2076 = vpop.trf.xlu0
  %v2077 = vpop.trf.xlu0
  %v2078 = vpop.trf.xlu0
  %v2079 = vpop.trf.xlu0
  %v2080 = vpop.trf.xlu0
  %v2081 = vpop.trf.xlu0
  %v2082 = vpop.trf.xlu0
  %v2083 = vpop.trf.xlu0
  %v2084 = vpop.trf.xlu0
  %v2085 = vpop.trf.xlu0
  %v2086 = vpop.trf.xlu0
  %v2087 = vpop.trf.xlu0
  %v2088 = vpop.trf.xlu0
  %v2089 = vpop.trf.xlu0
  %v2090 = vpop.trf.xlu0
  %v2091 = vpop.trf.xlu0
  %v2093 = vsel %vm1273, %v2044, 0
  %v2096 = vsel %vm1273, %v2045, 0
  %v2099 = vsel %vm1273, %v2046, 0
  %v2102 = vsel %vm1273, %v2047, 0
  %v2105 = vsel %vm1273, %v2048, 0
  %v2108 = vsel %vm1273, %v2049, 0
  %v2111 = vsel %vm1273, %v2050, 0
  %v2114 = vsel %vm1273, %v2051, 0
  %v2117 = vsel %vm1273, %v2052, 0
  %v2120 = vsel %vm1273, %v2053, 0
  %v2123 = vsel %vm1273, %v2054, 0
  %v2126 = vsel %vm1273, %v2055, 0
  %v2129 = vsel %vm1273, %v2056, 0
  %v2132 = vsel %vm1273, %v2057, 0
  %v2135 = vsel %vm1273, %v2058, 0
  %v2138 = vsel %vm1273, %v2059, 0
  %v2141 = vsel %vm1273, %v2076, 0
  %v2144 = vsel %vm1273, %v2077, 0
  %v2147 = vsel %vm1273, %v2078, 0
  %v2150 = vsel %vm1273, %v2079, 0
  %v2153 = vsel %vm1273, %v2080, 0
  %v2156 = vsel %vm1273, %v2081, 0
  %v2159 = vsel %vm1273, %v2082, 0
  %v2162 = vsel %vm1273, %v2083, 0
  %v2165 = vsel %vm1273, %v2084, 0
  %v2168 = vsel %vm1273, %v2085, 0
  %v2171 = vsel %vm1273, %v2086, 0
  %v2174 = vsel %vm1273, %v2087, 0
  %v2177 = vsel %vm1273, %v2088, 0
  %v2180 = vsel %vm1273, %v2089, 0
  %v2183 = vsel %vm1273, %v2090, 0
  %v2186 = vsel %vm1273, %v2091, 0
  %2188 = vmatpush.msra.mxu0 0.0
  %2189 = vmatpush.msra.mxu0 0.0
  %2190 = vmatpush.msra.mxu0 0.0
  %2191 = vmatpush.msra.mxu0 0.0
  %2192 = vmatpush.msra.mxu0 0.0
  %2193 = vmatpush.msra.mxu0 0.0
  %2194 = vmatpush.msra.mxu0 0.0
  %2195 = vmatpush.msra.mxu0 0.0
  %2196 = vmatpush.msra.mxu0 0.0
  %2197 = vmatpush.msra.mxu0 0.0
  %2198 = vmatpush.msra.mxu0 0.0
  %2199 = vmatpush.msra.mxu0 0.0
  %v2200 = vand.u32 %v2023, 4294901760
  %2201 = vmatpush.msra.mxu0 %v2200
  %v2202 = vand.u32 %v2022, 4294901760
  %2203 = vmatpush.msra.mxu0 %v2202
  %v2204 = vand.u32 %v2021, 4294901760
  %2205 = vmatpush.msra.mxu0 %v2204
  %v2206 = vand.u32 %v2020, 4294901760
  %2207 = vmatpush.msra.mxu0 %v2206
  %v2208 = vand.u32 %v2093, 4294901760
  %v2209 = vsub.f32 %v2093, %v2208
  %v2210 = vand.u32 %v2209, 4294901760
  %v2211 = vsub.f32 %v2209, %v2210
  %v2212 = vand.u32 %v2211, 4294901760
  %2213 = vmatmul.f32.gmra.mxu0 %v2212
  %v2214 = vpop.f32.mrf.mxu0
  %v2215 = vadd.f32 %v2026, %v2214
  %v2216 = vand.u32 %v2096, 4294901760
  %v2217 = vsub.f32 %v2096, %v2216
  %v2218 = vand.u32 %v2217, 4294901760
  %v2219 = vsub.f32 %v2217, %v2218
  %v2220 = vand.u32 %v2219, 4294901760
  %2221 = vmatmul.f32.gmra.mxu0 %v2220
  %v2222 = vpop.f32.mrf.mxu0
  %v2223 = vadd.f32 %v2026, %v2222
  %v2224 = vand.u32 %v2099, 4294901760
  %v2225 = vsub.f32 %v2099, %v2224
  %v2226 = vand.u32 %v2225, 4294901760
  %v2227 = vsub.f32 %v2225, %v2226
  %v2228 = vand.u32 %v2227, 4294901760
  %2229 = vmatmul.f32.gmra.mxu0 %v2228
  %v2230 = vpop.f32.mrf.mxu0
  %v2231 = vadd.f32 %v2026, %v2230
  %v2232 = vand.u32 %v2102, 4294901760
  %v2233 = vsub.f32 %v2102, %v2232
  %v2234 = vand.u32 %v2233, 4294901760
  %v2235 = vsub.f32 %v2233, %v2234
  %v2236 = vand.u32 %v2235, 4294901760
  %2237 = vmatmul.f32.gmra.mxu0 %v2236
  %v2238 = vpop.f32.mrf.mxu0
  %v2239 = vadd.f32 %v2026, %v2238
  %v2240 = vand.u32 %v2105, 4294901760
  %v2241 = vsub.f32 %v2105, %v2240
  %v2242 = vand.u32 %v2241, 4294901760
  %v2243 = vsub.f32 %v2241, %v2242
  %v2244 = vand.u32 %v2243, 4294901760
  %2245 = vmatmul.f32.gmra.mxu0 %v2244
  %v2246 = vpop.f32.mrf.mxu0
  %v2247 = vadd.f32 %v2026, %v2246
  %v2248 = vand.u32 %v2108, 4294901760
  %v2249 = vsub.f32 %v2108, %v2248
  %v2250 = vand.u32 %v2249, 4294901760
  %v2251 = vsub.f32 %v2249, %v2250
  %v2252 = vand.u32 %v2251, 4294901760
  %2253 = vmatmul.f32.gmra.mxu0 %v2252
  %v2254 = vpop.f32.mrf.mxu0
  %v2255 = vadd.f32 %v2026, %v2254
  %v2256 = vand.u32 %v2111, 4294901760
  %v2257 = vsub.f32 %v2111, %v2256
  %v2258 = vand.u32 %v2257, 4294901760
  %v2259 = vsub.f32 %v2257, %v2258
  %v2260 = vand.u32 %v2259, 4294901760
  %2261 = vmatmul.f32.gmra.mxu0 %v2260
  %v2262 = vpop.f32.mrf.mxu0
  %v2263 = vadd.f32 %v2026, %v2262
  %v2264 = vand.u32 %v2114, 4294901760
  %v2265 = vsub.f32 %v2114, %v2264
  %v2266 = vand.u32 %v2265, 4294901760
  %v2267 = vsub.f32 %v2265, %v2266
  %v2268 = vand.u32 %v2267, 4294901760
  %2269 = vmatmul.f32.gmra.mxu0 %v2268
  %v2270 = vpop.f32.mrf.mxu0
  %v2271 = vadd.f32 %v2026, %v2270
  %v2272 = vand.u32 %v2117, 4294901760
  %v2273 = vsub.f32 %v2117, %v2272
  %v2274 = vand.u32 %v2273, 4294901760
  %v2275 = vsub.f32 %v2273, %v2274
  %v2276 = vand.u32 %v2275, 4294901760
  %2277 = vmatmul.f32.gmra.mxu0 %v2276
  %v2278 = vpop.f32.mrf.mxu0
  %v2279 = vadd.f32 %v2026, %v2278
  %v2280 = vand.u32 %v2120, 4294901760
  %v2281 = vsub.f32 %v2120, %v2280
  %v2282 = vand.u32 %v2281, 4294901760
  %v2283 = vsub.f32 %v2281, %v2282
  %v2284 = vand.u32 %v2283, 4294901760
  %2285 = vmatmul.f32.gmra.mxu0 %v2284
  %v2286 = vpop.f32.mrf.mxu0
  %v2287 = vadd.f32 %v2026, %v2286
  %v2288 = vand.u32 %v2123, 4294901760
  %v2289 = vsub.f32 %v2123, %v2288
  %v2290 = vand.u32 %v2289, 4294901760
  %v2291 = vsub.f32 %v2289, %v2290
  %v2292 = vand.u32 %v2291, 4294901760
  %2293 = vmatmul.f32.gmra.mxu0 %v2292
  %v2294 = vpop.f32.mrf.mxu0
  %v2295 = vadd.f32 %v2026, %v2294
  %v2296 = vand.u32 %v2126, 4294901760
  %v2297 = vsub.f32 %v2126, %v2296
  %v2298 = vand.u32 %v2297, 4294901760
  %v2299 = vsub.f32 %v2297, %v2298
  %v2300 = vand.u32 %v2299, 4294901760
  %2301 = vmatmul.f32.gmra.mxu0 %v2300
  %v2302 = vpop.f32.mrf.mxu0
  %v2303 = vadd.f32 %v2026, %v2302
  %v2304 = vand.u32 %v2129, 4294901760
  %v2305 = vsub.f32 %v2129, %v2304
  %v2306 = vand.u32 %v2305, 4294901760
  %v2307 = vsub.f32 %v2305, %v2306
  %v2308 = vand.u32 %v2307, 4294901760
  %2309 = vmatmul.f32.gmra.mxu0 %v2308
  %v2310 = vpop.f32.mrf.mxu0
  %v2311 = vadd.f32 %v2026, %v2310
  %v2312 = vand.u32 %v2132, 4294901760
  %v2313 = vsub.f32 %v2132, %v2312
  %v2314 = vand.u32 %v2313, 4294901760
  %v2315 = vsub.f32 %v2313, %v2314
  %v2316 = vand.u32 %v2315, 4294901760
  %2317 = vmatmul.f32.gmra.mxu0 %v2316
  %v2318 = vpop.f32.mrf.mxu0
  %v2319 = vadd.f32 %v2026, %v2318
  %v2320 = vand.u32 %v2135, 4294901760
  %v2321 = vsub.f32 %v2135, %v2320
  %v2322 = vand.u32 %v2321, 4294901760
  %v2323 = vsub.f32 %v2321, %v2322
  %v2324 = vand.u32 %v2323, 4294901760
  %2325 = vmatmul.f32.gmra.mxu0 %v2324
  %v2326 = vpop.f32.mrf.mxu0
  %v2327 = vadd.f32 %v2026, %v2326
  %v2328 = vand.u32 %v2138, 4294901760
  %v2329 = vsub.f32 %v2138, %v2328
  %v2330 = vand.u32 %v2329, 4294901760
  %v2331 = vsub.f32 %v2329, %v2330
  %v2332 = vand.u32 %v2331, 4294901760
  %2333 = vmatmul.f32.gmra.mxu0 %v2332
  %v2334 = vpop.f32.mrf.mxu0
  %v2335 = vadd.f32 %v2026, %v2334
  %v2336 = vand.u32 %v2141, 4294901760
  %v2337 = vsub.f32 %v2141, %v2336
  %v2338 = vand.u32 %v2337, 4294901760
  %v2339 = vsub.f32 %v2337, %v2338
  %v2340 = vand.u32 %v2339, 4294901760
  %2341 = vmatmul.f32.gmra.mxu0 %v2340
  %v2342 = vpop.f32.mrf.mxu0
  %v2343 = vadd.f32 %v2026, %v2342
  %v2344 = vand.u32 %v2144, 4294901760
  %v2345 = vsub.f32 %v2144, %v2344
  %v2346 = vand.u32 %v2345, 4294901760
  %v2347 = vsub.f32 %v2345, %v2346
  %v2348 = vand.u32 %v2347, 4294901760
  %2349 = vmatmul.f32.gmra.mxu0 %v2348
  %v2350 = vpop.f32.mrf.mxu0
  %v2351 = vadd.f32 %v2026, %v2350
  %v2352 = vand.u32 %v2147, 4294901760
  %v2353 = vsub.f32 %v2147, %v2352
  %v2354 = vand.u32 %v2353, 4294901760
  %v2355 = vsub.f32 %v2353, %v2354
  %v2356 = vand.u32 %v2355, 4294901760
  %2357 = vmatmul.f32.gmra.mxu0 %v2356
  %v2358 = vpop.f32.mrf.mxu0
  %v2359 = vadd.f32 %v2026, %v2358
  %v2360 = vand.u32 %v2150, 4294901760
  %v2361 = vsub.f32 %v2150, %v2360
  %v2362 = vand.u32 %v2361, 4294901760
  %v2363 = vsub.f32 %v2361, %v2362
  %v2364 = vand.u32 %v2363, 4294901760
  %2365 = vmatmul.f32.gmra.mxu0 %v2364
  %v2366 = vpop.f32.mrf.mxu0
  %v2367 = vadd.f32 %v2026, %v2366
  %v2368 = vand.u32 %v2153, 4294901760
  %v2369 = vsub.f32 %v2153, %v2368
  %v2370 = vand.u32 %v2369, 4294901760
  %v2371 = vsub.f32 %v2369, %v2370
  %v2372 = vand.u32 %v2371, 4294901760
  %2373 = vmatmul.f32.gmra.mxu0 %v2372
  %v2374 = vpop.f32.mrf.mxu0
  %v2375 = vadd.f32 %v2026, %v2374
  %v2376 = vand.u32 %v2156, 4294901760
  %v2377 = vsub.f32 %v2156, %v2376
  %v2378 = vand.u32 %v2377, 4294901760
  %v2379 = vsub.f32 %v2377, %v2378
  %v2380 = vand.u32 %v2379, 4294901760
  %2381 = vmatmul.f32.gmra.mxu0 %v2380
  %v2382 = vpop.f32.mrf.mxu0
  %v2383 = vadd.f32 %v2026, %v2382
  %v2384 = vand.u32 %v2159, 4294901760
  %v2385 = vsub.f32 %v2159, %v2384
  %v2386 = vand.u32 %v2385, 4294901760
  %v2387 = vsub.f32 %v2385, %v2386
  %v2388 = vand.u32 %v2387, 4294901760
  %2389 = vmatmul.f32.gmra.mxu0 %v2388
  %v2390 = vpop.f32.mrf.mxu0
  %v2391 = vadd.f32 %v2026, %v2390
  %v2392 = vand.u32 %v2162, 4294901760
  %v2393 = vsub.f32 %v2162, %v2392
  %v2394 = vand.u32 %v2393, 4294901760
  %v2395 = vsub.f32 %v2393, %v2394
  %v2396 = vand.u32 %v2395, 4294901760
  %2397 = vmatmul.f32.gmra.mxu0 %v2396
  %v2398 = vpop.f32.mrf.mxu0
  %v2399 = vadd.f32 %v2026, %v2398
  %v2400 = vand.u32 %v2165, 4294901760
  %v2401 = vsub.f32 %v2165, %v2400
  %v2402 = vand.u32 %v2401, 4294901760
  %v2403 = vsub.f32 %v2401, %v2402
  %v2404 = vand.u32 %v2403, 4294901760
  %2405 = vmatmul.f32.gmra.mxu0 %v2404
  %v2406 = vpop.f32.mrf.mxu0
  %v2407 = vadd.f32 %v2026, %v2406
  %v2408 = vand.u32 %v2168, 4294901760
  %v2409 = vsub.f32 %v2168, %v2408
  %v2410 = vand.u32 %v2409, 4294901760
  %v2411 = vsub.f32 %v2409, %v2410
  %v2412 = vand.u32 %v2411, 4294901760
  %2413 = vmatmul.f32.gmra.mxu0 %v2412
  %v2414 = vpop.f32.mrf.mxu0
  %v2415 = vadd.f32 %v2026, %v2414
  %v2416 = vand.u32 %v2171, 4294901760
  %v2417 = vsub.f32 %v2171, %v2416
  %v2418 = vand.u32 %v2417, 4294901760
  %v2419 = vsub.f32 %v2417, %v2418
  %v2420 = vand.u32 %v2419, 4294901760
  %2421 = vmatmul.f32.gmra.mxu0 %v2420
  %v2422 = vpop.f32.mrf.mxu0
  %v2423 = vadd.f32 %v2026, %v2422
  %v2424 = vand.u32 %v2174, 4294901760
  %v2425 = vsub.f32 %v2174, %v2424
  %v2426 = vand.u32 %v2425, 4294901760
  %v2427 = vsub.f32 %v2425, %v2426
  %v2428 = vand.u32 %v2427, 4294901760
  %2429 = vmatmul.f32.gmra.mxu0 %v2428
  %v2430 = vpop.f32.mrf.mxu0
  %v2431 = vadd.f32 %v2026, %v2430
  %v2432 = vand.u32 %v2177, 4294901760
  %v2433 = vsub.f32 %v2177, %v2432
  %v2434 = vand.u32 %v2433, 4294901760
  %v2435 = vsub.f32 %v2433, %v2434
  %v2436 = vand.u32 %v2435, 4294901760
  %2437 = vmatmul.f32.gmra.mxu0 %v2436
  %v2438 = vpop.f32.mrf.mxu0
  %v2439 = vadd.f32 %v2026, %v2438
  %v2440 = vand.u32 %v2180, 4294901760
  %v2441 = vsub.f32 %v2180, %v2440
  %v2442 = vand.u32 %v2441, 4294901760
  %v2443 = vsub.f32 %v2441, %v2442
  %v2444 = vand.u32 %v2443, 4294901760
  %2445 = vmatmul.f32.gmra.mxu0 %v2444
  %v2446 = vpop.f32.mrf.mxu0
  %v2447 = vadd.f32 %v2026, %v2446
  %v2448 = vand.u32 %v2183, 4294901760
  %v2449 = vsub.f32 %v2183, %v2448
  %v2450 = vand.u32 %v2449, 4294901760
  %v2451 = vsub.f32 %v2449, %v2450
  %v2452 = vand.u32 %v2451, 4294901760
  %2453 = vmatmul.f32.gmra.mxu0 %v2452
  %v2454 = vpop.f32.mrf.mxu0
  %v2455 = vadd.f32 %v2026, %v2454
  %v2456 = vand.u32 %v2186, 4294901760
  %v2457 = vsub.f32 %v2186, %v2456
  %v2458 = vand.u32 %v2457, 4294901760
  %v2459 = vsub.f32 %v2457, %v2458
  %v2460 = vand.u32 %v2459, 4294901760
  %2461 = vmatmul.f32.gmra.mxu0 %v2460
  %v2462 = vpop.f32.mrf.mxu0
  %v2463 = vadd.f32 %v2026, %v2462
  %2464 = vdwg.mxu0
  %2465 = vmatpush.msra.mxu0 0.0
  %2466 = vmatpush.msra.mxu0 0.0
  %2467 = vmatpush.msra.mxu0 0.0
  %2468 = vmatpush.msra.mxu0 0.0
  %2469 = vmatpush.msra.mxu0 0.0
  %2470 = vmatpush.msra.mxu0 0.0
  %2471 = vmatpush.msra.mxu0 0.0
  %2472 = vmatpush.msra.mxu0 0.0
  %2473 = vmatpush.msra.mxu0 0.0
  %2474 = vmatpush.msra.mxu0 0.0
  %2475 = vmatpush.msra.mxu0 0.0
  %2476 = vmatpush.msra.mxu0 0.0
  %v2477 = vand.u32 %v2023, 4294901760
  %v2478 = vsub.f32 %v2023, %v2477
  %v2479 = vand.u32 %v2478, 4294901760
  %v2480 = vsub.f32 %v2478, %v2479
  %v2481 = vand.u32 %v2480, 4294901760
  %2482 = vmatpush.msra.mxu0 %v2481
  %v2483 = vand.u32 %v2022, 4294901760
  %v2484 = vsub.f32 %v2022, %v2483
  %v2485 = vand.u32 %v2484, 4294901760
  %v2486 = vsub.f32 %v2484, %v2485
  %v2487 = vand.u32 %v2486, 4294901760
  %2488 = vmatpush.msra.mxu0 %v2487
  %v2489 = vand.u32 %v2021, 4294901760
  %v2490 = vsub.f32 %v2021, %v2489
  %v2491 = vand.u32 %v2490, 4294901760
  %v2492 = vsub.f32 %v2490, %v2491
  %v2493 = vand.u32 %v2492, 4294901760
  %2494 = vmatpush.msra.mxu0 %v2493
  %v2495 = vand.u32 %v2020, 4294901760
  %v2496 = vsub.f32 %v2020, %v2495
  %v2497 = vand.u32 %v2496, 4294901760
  %v2498 = vsub.f32 %v2496, %v2497
  %v2499 = vand.u32 %v2498, 4294901760
  %2500 = vmatpush.msra.mxu0 %v2499
  %v2501 = vand.u32 %v2093, 4294901760
  %2502 = vmatmul.f32.gmra.mxu0 %v2501
  %v2503 = vpop.f32.mrf.mxu0
  %v2504 = vadd.f32 %v2215, %v2503
  %v2505 = vand.u32 %v2096, 4294901760
  %2506 = vmatmul.f32.gmra.mxu0 %v2505
  %v2507 = vpop.f32.mrf.mxu0
  %v2508 = vadd.f32 %v2223, %v2507
  %v2509 = vand.u32 %v2099, 4294901760
  %2510 = vmatmul.f32.gmra.mxu0 %v2509
  %v2511 = vpop.f32.mrf.mxu0
  %v2512 = vadd.f32 %v2231, %v2511
  %v2513 = vand.u32 %v2102, 4294901760
  %2514 = vmatmul.f32.gmra.mxu0 %v2513
  %v2515 = vpop.f32.mrf.mxu0
  %v2516 = vadd.f32 %v2239, %v2515
  %v2517 = vand.u32 %v2105, 4294901760
  %2518 = vmatmul.f32.gmra.mxu0 %v2517
  %v2519 = vpop.f32.mrf.mxu0
  %v2520 = vadd.f32 %v2247, %v2519
  %v2521 = vand.u32 %v2108, 4294901760
  %2522 = vmatmul.f32.gmra.mxu0 %v2521
  %v2523 = vpop.f32.mrf.mxu0
  %v2524 = vadd.f32 %v2255, %v2523
  %v2525 = vand.u32 %v2111, 4294901760
  %2526 = vmatmul.f32.gmra.mxu0 %v2525
  %v2527 = vpop.f32.mrf.mxu0
  %v2528 = vadd.f32 %v2263, %v2527
  %v2529 = vand.u32 %v2114, 4294901760
  %2530 = vmatmul.f32.gmra.mxu0 %v2529
  %v2531 = vpop.f32.mrf.mxu0
  %v2532 = vadd.f32 %v2271, %v2531
  %v2533 = vand.u32 %v2117, 4294901760
  %2534 = vmatmul.f32.gmra.mxu0 %v2533
  %v2535 = vpop.f32.mrf.mxu0
  %v2536 = vadd.f32 %v2279, %v2535
  %v2537 = vand.u32 %v2120, 4294901760
  %2538 = vmatmul.f32.gmra.mxu0 %v2537
  %v2539 = vpop.f32.mrf.mxu0
  %v2540 = vadd.f32 %v2287, %v2539
  %v2541 = vand.u32 %v2123, 4294901760
  %2542 = vmatmul.f32.gmra.mxu0 %v2541
  %v2543 = vpop.f32.mrf.mxu0
  %v2544 = vadd.f32 %v2295, %v2543
  %v2545 = vand.u32 %v2126, 4294901760
  %2546 = vmatmul.f32.gmra.mxu0 %v2545
  %v2547 = vpop.f32.mrf.mxu0
  %v2548 = vadd.f32 %v2303, %v2547
  %v2549 = vand.u32 %v2129, 4294901760
  %2550 = vmatmul.f32.gmra.mxu0 %v2549
  %v2551 = vpop.f32.mrf.mxu0
  %v2552 = vadd.f32 %v2311, %v2551
  %v2553 = vand.u32 %v2132, 4294901760
  %2554 = vmatmul.f32.gmra.mxu0 %v2553
  %v2555 = vpop.f32.mrf.mxu0
  %v2556 = vadd.f32 %v2319, %v2555
  %v2557 = vand.u32 %v2135, 4294901760
  %2558 = vmatmul.f32.gmra.mxu0 %v2557
  %v2559 = vpop.f32.mrf.mxu0
  %v2560 = vadd.f32 %v2327, %v2559
  %v2561 = vand.u32 %v2138, 4294901760
  %2562 = vmatmul.f32.gmra.mxu0 %v2561
  %v2563 = vpop.f32.mrf.mxu0
  %v2564 = vadd.f32 %v2335, %v2563
  %v2565 = vand.u32 %v2141, 4294901760
  %2566 = vmatmul.f32.gmra.mxu0 %v2565
  %v2567 = vpop.f32.mrf.mxu0
  %v2568 = vadd.f32 %v2343, %v2567
  %v2569 = vand.u32 %v2144, 4294901760
  %2570 = vmatmul.f32.gmra.mxu0 %v2569
  %v2571 = vpop.f32.mrf.mxu0
  %v2572 = vadd.f32 %v2351, %v2571
  %v2573 = vand.u32 %v2147, 4294901760
  %2574 = vmatmul.f32.gmra.mxu0 %v2573
  %v2575 = vpop.f32.mrf.mxu0
  %v2576 = vadd.f32 %v2359, %v2575
  %v2577 = vand.u32 %v2150, 4294901760
  %2578 = vmatmul.f32.gmra.mxu0 %v2577
  %v2579 = vpop.f32.mrf.mxu0
  %v2580 = vadd.f32 %v2367, %v2579
  %v2581 = vand.u32 %v2153, 4294901760
  %2582 = vmatmul.f32.gmra.mxu0 %v2581
  %v2583 = vpop.f32.mrf.mxu0
  %v2584 = vadd.f32 %v2375, %v2583
  %v2585 = vand.u32 %v2156, 4294901760
  %2586 = vmatmul.f32.gmra.mxu0 %v2585
  %v2587 = vpop.f32.mrf.mxu0
  %v2588 = vadd.f32 %v2383, %v2587
  %v2589 = vand.u32 %v2159, 4294901760
  %2590 = vmatmul.f32.gmra.mxu0 %v2589
  %v2591 = vpop.f32.mrf.mxu0
  %v2592 = vadd.f32 %v2391, %v2591
  %v2593 = vand.u32 %v2162, 4294901760
  %2594 = vmatmul.f32.gmra.mxu0 %v2593
  %v2595 = vpop.f32.mrf.mxu0
  %v2596 = vadd.f32 %v2399, %v2595
  %v2597 = vand.u32 %v2165, 4294901760
  %2598 = vmatmul.f32.gmra.mxu0 %v2597
  %v2599 = vpop.f32.mrf.mxu0
  %v2600 = vadd.f32 %v2407, %v2599
  %v2601 = vand.u32 %v2168, 4294901760
  %2602 = vmatmul.f32.gmra.mxu0 %v2601
  %v2603 = vpop.f32.mrf.mxu0
  %v2604 = vadd.f32 %v2415, %v2603
  %v2605 = vand.u32 %v2171, 4294901760
  %2606 = vmatmul.f32.gmra.mxu0 %v2605
  %v2607 = vpop.f32.mrf.mxu0
  %v2608 = vadd.f32 %v2423, %v2607
  %v2609 = vand.u32 %v2174, 4294901760
  %2610 = vmatmul.f32.gmra.mxu0 %v2609
  %v2611 = vpop.f32.mrf.mxu0
  %v2612 = vadd.f32 %v2431, %v2611
  %v2613 = vand.u32 %v2177, 4294901760
  %2614 = vmatmul.f32.gmra.mxu0 %v2613
  %v2615 = vpop.f32.mrf.mxu0
  %v2616 = vadd.f32 %v2439, %v2615
  %v2617 = vand.u32 %v2180, 4294901760
  %2618 = vmatmul.f32.gmra.mxu0 %v2617
  %v2619 = vpop.f32.mrf.mxu0
  %v2620 = vadd.f32 %v2447, %v2619
  %v2621 = vand.u32 %v2183, 4294901760
  %2622 = vmatmul.f32.gmra.mxu0 %v2621
  %v2623 = vpop.f32.mrf.mxu0
  %v2624 = vadd.f32 %v2455, %v2623
  %v2625 = vand.u32 %v2186, 4294901760
  %2626 = vmatmul.f32.gmra.mxu0 %v2625
  %v2627 = vpop.f32.mrf.mxu0
  %v2628 = vadd.f32 %v2463, %v2627
  %2629 = vdwg.mxu0
  %2630 = vmatpush.msra.mxu0 0.0
  %2631 = vmatpush.msra.mxu0 0.0
  %2632 = vmatpush.msra.mxu0 0.0
  %2633 = vmatpush.msra.mxu0 0.0
  %2634 = vmatpush.msra.mxu0 0.0
  %2635 = vmatpush.msra.mxu0 0.0
  %2636 = vmatpush.msra.mxu0 0.0
  %2637 = vmatpush.msra.mxu0 0.0
  %2638 = vmatpush.msra.mxu0 0.0
  %2639 = vmatpush.msra.mxu0 0.0
  %2640 = vmatpush.msra.mxu0 0.0
  %2641 = vmatpush.msra.mxu0 0.0
  %v2642 = vand.u32 %v2023, 4294901760
  %v2643 = vsub.f32 %v2023, %v2642
  %2644 = vmatpush.msra.mxu0 %v2643
  %v2645 = vand.u32 %v2022, 4294901760
  %v2646 = vsub.f32 %v2022, %v2645
  %2647 = vmatpush.msra.mxu0 %v2646
  %v2648 = vand.u32 %v2021, 4294901760
  %v2649 = vsub.f32 %v2021, %v2648
  %2650 = vmatpush.msra.mxu0 %v2649
  %v2651 = vand.u32 %v2020, 4294901760
  %v2652 = vsub.f32 %v2020, %v2651
  %2653 = vmatpush.msra.mxu0 %v2652
  %v2654 = vand.u32 %v2093, 4294901760
  %v2655 = vsub.f32 %v2093, %v2654
  %2656 = vmatmul.f32.gmra.mxu0 %v2655
  %v2657 = vpop.f32.mrf.mxu0
  %v2658 = vadd.f32 %v2504, %v2657
  %v2659 = vand.u32 %v2096, 4294901760
  %v2660 = vsub.f32 %v2096, %v2659
  %2661 = vmatmul.f32.gmra.mxu0 %v2660
  %v2662 = vpop.f32.mrf.mxu0
  %v2663 = vadd.f32 %v2508, %v2662
  %v2664 = vand.u32 %v2099, 4294901760
  %v2665 = vsub.f32 %v2099, %v2664
  %2666 = vmatmul.f32.gmra.mxu0 %v2665
  %v2667 = vpop.f32.mrf.mxu0
  %v2668 = vadd.f32 %v2512, %v2667
  %v2669 = vand.u32 %v2102, 4294901760
  %v2670 = vsub.f32 %v2102, %v2669
  %2671 = vmatmul.f32.gmra.mxu0 %v2670
  %v2672 = vpop.f32.mrf.mxu0
  %v2673 = vadd.f32 %v2516, %v2672
  %v2674 = vand.u32 %v2105, 4294901760
  %v2675 = vsub.f32 %v2105, %v2674
  %2676 = vmatmul.f32.gmra.mxu0 %v2675
  %v2677 = vpop.f32.mrf.mxu0
  %v2678 = vadd.f32 %v2520, %v2677
  %v2679 = vand.u32 %v2108, 4294901760
  %v2680 = vsub.f32 %v2108, %v2679
  %2681 = vmatmul.f32.gmra.mxu0 %v2680
  %v2682 = vpop.f32.mrf.mxu0
  %v2683 = vadd.f32 %v2524, %v2682
  %v2684 = vand.u32 %v2111, 4294901760
  %v2685 = vsub.f32 %v2111, %v2684
  %2686 = vmatmul.f32.gmra.mxu0 %v2685
  %v2687 = vpop.f32.mrf.mxu0
  %v2688 = vadd.f32 %v2528, %v2687
  %v2689 = vand.u32 %v2114, 4294901760
  %v2690 = vsub.f32 %v2114, %v2689
  %2691 = vmatmul.f32.gmra.mxu0 %v2690
  %v2692 = vpop.f32.mrf.mxu0
  %v2693 = vadd.f32 %v2532, %v2692
  %v2694 = vand.u32 %v2117, 4294901760
  %v2695 = vsub.f32 %v2117, %v2694
  %2696 = vmatmul.f32.gmra.mxu0 %v2695
  %v2697 = vpop.f32.mrf.mxu0
  %v2698 = vadd.f32 %v2536, %v2697
  %v2699 = vand.u32 %v2120, 4294901760
  %v2700 = vsub.f32 %v2120, %v2699
  %2701 = vmatmul.f32.gmra.mxu0 %v2700
  %v2702 = vpop.f32.mrf.mxu0
  %v2703 = vadd.f32 %v2540, %v2702
  %v2704 = vand.u32 %v2123, 4294901760
  %v2705 = vsub.f32 %v2123, %v2704
  %2706 = vmatmul.f32.gmra.mxu0 %v2705
  %v2707 = vpop.f32.mrf.mxu0
  %v2708 = vadd.f32 %v2544, %v2707
  %v2709 = vand.u32 %v2126, 4294901760
  %v2710 = vsub.f32 %v2126, %v2709
  %2711 = vmatmul.f32.gmra.mxu0 %v2710
  %v2712 = vpop.f32.mrf.mxu0
  %v2713 = vadd.f32 %v2548, %v2712
  %v2714 = vand.u32 %v2129, 4294901760
  %v2715 = vsub.f32 %v2129, %v2714
  %2716 = vmatmul.f32.gmra.mxu0 %v2715
  %v2717 = vpop.f32.mrf.mxu0
  %v2718 = vadd.f32 %v2552, %v2717
  %v2719 = vand.u32 %v2132, 4294901760
  %v2720 = vsub.f32 %v2132, %v2719
  %2721 = vmatmul.f32.gmra.mxu0 %v2720
  %v2722 = vpop.f32.mrf.mxu0
  %v2723 = vadd.f32 %v2556, %v2722
  %v2724 = vand.u32 %v2135, 4294901760
  %v2725 = vsub.f32 %v2135, %v2724
  %2726 = vmatmul.f32.gmra.mxu0 %v2725
  %v2727 = vpop.f32.mrf.mxu0
  %v2728 = vadd.f32 %v2560, %v2727
  %v2729 = vand.u32 %v2138, 4294901760
  %v2730 = vsub.f32 %v2138, %v2729
  %2731 = vmatmul.f32.gmra.mxu0 %v2730
  %v2732 = vpop.f32.mrf.mxu0
  %v2733 = vadd.f32 %v2564, %v2732
  %v2734 = vand.u32 %v2141, 4294901760
  %v2735 = vsub.f32 %v2141, %v2734
  %2736 = vmatmul.f32.gmra.mxu0 %v2735
  %v2737 = vpop.f32.mrf.mxu0
  %v2738 = vadd.f32 %v2568, %v2737
  %v2739 = vand.u32 %v2144, 4294901760
  %v2740 = vsub.f32 %v2144, %v2739
  %2741 = vmatmul.f32.gmra.mxu0 %v2740
  %v2742 = vpop.f32.mrf.mxu0
  %v2743 = vadd.f32 %v2572, %v2742
  %v2744 = vand.u32 %v2147, 4294901760
  %v2745 = vsub.f32 %v2147, %v2744
  %2746 = vmatmul.f32.gmra.mxu0 %v2745
  %v2747 = vpop.f32.mrf.mxu0
  %v2748 = vadd.f32 %v2576, %v2747
  %v2749 = vand.u32 %v2150, 4294901760
  %v2750 = vsub.f32 %v2150, %v2749
  %2751 = vmatmul.f32.gmra.mxu0 %v2750
  %v2752 = vpop.f32.mrf.mxu0
  %v2753 = vadd.f32 %v2580, %v2752
  %v2754 = vand.u32 %v2153, 4294901760
  %v2755 = vsub.f32 %v2153, %v2754
  %2756 = vmatmul.f32.gmra.mxu0 %v2755
  %v2757 = vpop.f32.mrf.mxu0
  %v2758 = vadd.f32 %v2584, %v2757
  %v2759 = vand.u32 %v2156, 4294901760
  %v2760 = vsub.f32 %v2156, %v2759
  %2761 = vmatmul.f32.gmra.mxu0 %v2760
  %v2762 = vpop.f32.mrf.mxu0
  %v2763 = vadd.f32 %v2588, %v2762
  %v2764 = vand.u32 %v2159, 4294901760
  %v2765 = vsub.f32 %v2159, %v2764
  %2766 = vmatmul.f32.gmra.mxu0 %v2765
  %v2767 = vpop.f32.mrf.mxu0
  %v2768 = vadd.f32 %v2592, %v2767
  %v2769 = vand.u32 %v2162, 4294901760
  %v2770 = vsub.f32 %v2162, %v2769
  %2771 = vmatmul.f32.gmra.mxu0 %v2770
  %v2772 = vpop.f32.mrf.mxu0
  %v2773 = vadd.f32 %v2596, %v2772
  %v2774 = vand.u32 %v2165, 4294901760
  %v2775 = vsub.f32 %v2165, %v2774
  %2776 = vmatmul.f32.gmra.mxu0 %v2775
  %v2777 = vpop.f32.mrf.mxu0
  %v2778 = vadd.f32 %v2600, %v2777
  %v2779 = vand.u32 %v2168, 4294901760
  %v2780 = vsub.f32 %v2168, %v2779
  %2781 = vmatmul.f32.gmra.mxu0 %v2780
  %v2782 = vpop.f32.mrf.mxu0
  %v2783 = vadd.f32 %v2604, %v2782
  %v2784 = vand.u32 %v2171, 4294901760
  %v2785 = vsub.f32 %v2171, %v2784
  %2786 = vmatmul.f32.gmra.mxu0 %v2785
  %v2787 = vpop.f32.mrf.mxu0
  %v2788 = vadd.f32 %v2608, %v2787
  %v2789 = vand.u32 %v2174, 4294901760
  %v2790 = vsub.f32 %v2174, %v2789
  %2791 = vmatmul.f32.gmra.mxu0 %v2790
  %v2792 = vpop.f32.mrf.mxu0
  %v2793 = vadd.f32 %v2612, %v2792
  %v2794 = vand.u32 %v2177, 4294901760
  %v2795 = vsub.f32 %v2177, %v2794
  %2796 = vmatmul.f32.gmra.mxu0 %v2795
  %v2797 = vpop.f32.mrf.mxu0
  %v2798 = vadd.f32 %v2616, %v2797
  %v2799 = vand.u32 %v2180, 4294901760
  %v2800 = vsub.f32 %v2180, %v2799
  %2801 = vmatmul.f32.gmra.mxu0 %v2800
  %v2802 = vpop.f32.mrf.mxu0
  %v2803 = vadd.f32 %v2620, %v2802
  %v2804 = vand.u32 %v2183, 4294901760
  %v2805 = vsub.f32 %v2183, %v2804
  %2806 = vmatmul.f32.gmra.mxu0 %v2805
  %v2807 = vpop.f32.mrf.mxu0
  %v2808 = vadd.f32 %v2624, %v2807
  %v2809 = vand.u32 %v2186, 4294901760
  %v2810 = vsub.f32 %v2186, %v2809
  %2811 = vmatmul.f32.gmra.mxu0 %v2810
  %v2812 = vpop.f32.mrf.mxu0
  %v2813 = vadd.f32 %v2628, %v2812
  %2814 = vdwg.mxu0
  %2815 = vmatpush.msra.mxu0 0.0
  %2816 = vmatpush.msra.mxu0 0.0
  %2817 = vmatpush.msra.mxu0 0.0
  %2818 = vmatpush.msra.mxu0 0.0
  %2819 = vmatpush.msra.mxu0 0.0
  %2820 = vmatpush.msra.mxu0 0.0
  %2821 = vmatpush.msra.mxu0 0.0
  %2822 = vmatpush.msra.mxu0 0.0
  %2823 = vmatpush.msra.mxu0 0.0
  %2824 = vmatpush.msra.mxu0 0.0
  %2825 = vmatpush.msra.mxu0 0.0
  %2826 = vmatpush.msra.mxu0 0.0
  %v2827 = vand.u32 %v2023, 4294901760
  %2828 = vmatpush.msra.mxu0 %v2827
  %v2829 = vand.u32 %v2022, 4294901760
  %2830 = vmatpush.msra.mxu0 %v2829
  %v2831 = vand.u32 %v2021, 4294901760
  %2832 = vmatpush.msra.mxu0 %v2831
  %v2833 = vand.u32 %v2020, 4294901760
  %2834 = vmatpush.msra.mxu0 %v2833
  %v2835 = vand.u32 %v2093, 4294901760
  %v2836 = vsub.f32 %v2093, %v2835
  %v2837 = vand.u32 %v2836, 4294901760
  %2838 = vmatmul.f32.gmra.mxu0 %v2837
  %v2839 = vpop.f32.mrf.mxu0
  %v2840 = vadd.f32 %v2658, %v2839
  %v2841 = vand.u32 %v2096, 4294901760
  %v2842 = vsub.f32 %v2096, %v2841
  %v2843 = vand.u32 %v2842, 4294901760
  %2844 = vmatmul.f32.gmra.mxu0 %v2843
  %v2845 = vpop.f32.mrf.mxu0
  %v2846 = vadd.f32 %v2663, %v2845
  %v2847 = vand.u32 %v2099, 4294901760
  %v2848 = vsub.f32 %v2099, %v2847
  %v2849 = vand.u32 %v2848, 4294901760
  %2850 = vmatmul.f32.gmra.mxu0 %v2849
  %v2851 = vpop.f32.mrf.mxu0
  %v2852 = vadd.f32 %v2668, %v2851
  %v2853 = vand.u32 %v2102, 4294901760
  %v2854 = vsub.f32 %v2102, %v2853
  %v2855 = vand.u32 %v2854, 4294901760
  %2856 = vmatmul.f32.gmra.mxu0 %v2855
  %v2857 = vpop.f32.mrf.mxu0
  %v2858 = vadd.f32 %v2673, %v2857
  %v2859 = vand.u32 %v2105, 4294901760
  %v2860 = vsub.f32 %v2105, %v2859
  %v2861 = vand.u32 %v2860, 4294901760
  %2862 = vmatmul.f32.gmra.mxu0 %v2861
  %v2863 = vpop.f32.mrf.mxu0
  %v2864 = vadd.f32 %v2678, %v2863
  %v2865 = vand.u32 %v2108, 4294901760
  %v2866 = vsub.f32 %v2108, %v2865
  %v2867 = vand.u32 %v2866, 4294901760
  %2868 = vmatmul.f32.gmra.mxu0 %v2867
  %v2869 = vpop.f32.mrf.mxu0
  %v2870 = vadd.f32 %v2683, %v2869
  %v2871 = vand.u32 %v2111, 4294901760
  %v2872 = vsub.f32 %v2111, %v2871
  %v2873 = vand.u32 %v2872, 4294901760
  %2874 = vmatmul.f32.gmra.mxu0 %v2873
  %v2875 = vpop.f32.mrf.mxu0
  %v2876 = vadd.f32 %v2688, %v2875
  %v2877 = vand.u32 %v2114, 4294901760
  %v2878 = vsub.f32 %v2114, %v2877
  %v2879 = vand.u32 %v2878, 4294901760
  %2880 = vmatmul.f32.gmra.mxu0 %v2879
  %v2881 = vpop.f32.mrf.mxu0
  %v2882 = vadd.f32 %v2693, %v2881
  %v2883 = vand.u32 %v2117, 4294901760
  %v2884 = vsub.f32 %v2117, %v2883
  %v2885 = vand.u32 %v2884, 4294901760
  %2886 = vmatmul.f32.gmra.mxu0 %v2885
  %v2887 = vpop.f32.mrf.mxu0
  %v2888 = vadd.f32 %v2698, %v2887
  %v2889 = vand.u32 %v2120, 4294901760
  %v2890 = vsub.f32 %v2120, %v2889
  %v2891 = vand.u32 %v2890, 4294901760
  %2892 = vmatmul.f32.gmra.mxu0 %v2891
  %v2893 = vpop.f32.mrf.mxu0
  %v2894 = vadd.f32 %v2703, %v2893
  %v2895 = vand.u32 %v2123, 4294901760
  %v2896 = vsub.f32 %v2123, %v2895
  %v2897 = vand.u32 %v2896, 4294901760
  %2898 = vmatmul.f32.gmra.mxu0 %v2897
  %v2899 = vpop.f32.mrf.mxu0
  %v2900 = vadd.f32 %v2708, %v2899
  %v2901 = vand.u32 %v2126, 4294901760
  %v2902 = vsub.f32 %v2126, %v2901
  %v2903 = vand.u32 %v2902, 4294901760
  %2904 = vmatmul.f32.gmra.mxu0 %v2903
  %v2905 = vpop.f32.mrf.mxu0
  %v2906 = vadd.f32 %v2713, %v2905
  %v2907 = vand.u32 %v2129, 4294901760
  %v2908 = vsub.f32 %v2129, %v2907
  %v2909 = vand.u32 %v2908, 4294901760
  %2910 = vmatmul.f32.gmra.mxu0 %v2909
  %v2911 = vpop.f32.mrf.mxu0
  %v2912 = vadd.f32 %v2718, %v2911
  %v2913 = vand.u32 %v2132, 4294901760
  %v2914 = vsub.f32 %v2132, %v2913
  %v2915 = vand.u32 %v2914, 4294901760
  %2916 = vmatmul.f32.gmra.mxu0 %v2915
  %v2917 = vpop.f32.mrf.mxu0
  %v2918 = vadd.f32 %v2723, %v2917
  %v2919 = vand.u32 %v2135, 4294901760
  %v2920 = vsub.f32 %v2135, %v2919
  %v2921 = vand.u32 %v2920, 4294901760
  %2922 = vmatmul.f32.gmra.mxu0 %v2921
  %v2923 = vpop.f32.mrf.mxu0
  %v2924 = vadd.f32 %v2728, %v2923
  %v2925 = vand.u32 %v2138, 4294901760
  %v2926 = vsub.f32 %v2138, %v2925
  %v2927 = vand.u32 %v2926, 4294901760
  %2928 = vmatmul.f32.gmra.mxu0 %v2927
  %v2929 = vpop.f32.mrf.mxu0
  %v2930 = vadd.f32 %v2733, %v2929
  %v2931 = vand.u32 %v2141, 4294901760
  %v2932 = vsub.f32 %v2141, %v2931
  %v2933 = vand.u32 %v2932, 4294901760
  %2934 = vmatmul.f32.gmra.mxu0 %v2933
  %v2935 = vpop.f32.mrf.mxu0
  %v2936 = vadd.f32 %v2738, %v2935
  %v2937 = vand.u32 %v2144, 4294901760
  %v2938 = vsub.f32 %v2144, %v2937
  %v2939 = vand.u32 %v2938, 4294901760
  %2940 = vmatmul.f32.gmra.mxu0 %v2939
  %v2941 = vpop.f32.mrf.mxu0
  %v2942 = vadd.f32 %v2743, %v2941
  %v2943 = vand.u32 %v2147, 4294901760
  %v2944 = vsub.f32 %v2147, %v2943
  %v2945 = vand.u32 %v2944, 4294901760
  %2946 = vmatmul.f32.gmra.mxu0 %v2945
  %v2947 = vpop.f32.mrf.mxu0
  %v2948 = vadd.f32 %v2748, %v2947
  %v2949 = vand.u32 %v2150, 4294901760
  %v2950 = vsub.f32 %v2150, %v2949
  %v2951 = vand.u32 %v2950, 4294901760
  %2952 = vmatmul.f32.gmra.mxu0 %v2951
  %v2953 = vpop.f32.mrf.mxu0
  %v2954 = vadd.f32 %v2753, %v2953
  %v2955 = vand.u32 %v2153, 4294901760
  %v2956 = vsub.f32 %v2153, %v2955
  %v2957 = vand.u32 %v2956, 4294901760
  %2958 = vmatmul.f32.gmra.mxu0 %v2957
  %v2959 = vpop.f32.mrf.mxu0
  %v2960 = vadd.f32 %v2758, %v2959
  %v2961 = vand.u32 %v2156, 4294901760
  %v2962 = vsub.f32 %v2156, %v2961
  %v2963 = vand.u32 %v2962, 4294901760
  %2964 = vmatmul.f32.gmra.mxu0 %v2963
  %v2965 = vpop.f32.mrf.mxu0
  %v2966 = vadd.f32 %v2763, %v2965
  %v2967 = vand.u32 %v2159, 4294901760
  %v2968 = vsub.f32 %v2159, %v2967
  %v2969 = vand.u32 %v2968, 4294901760
  %2970 = vmatmul.f32.gmra.mxu0 %v2969
  %v2971 = vpop.f32.mrf.mxu0
  %v2972 = vadd.f32 %v2768, %v2971
  %v2973 = vand.u32 %v2162, 4294901760
  %v2974 = vsub.f32 %v2162, %v2973
  %v2975 = vand.u32 %v2974, 4294901760
  %2976 = vmatmul.f32.gmra.mxu0 %v2975
  %v2977 = vpop.f32.mrf.mxu0
  %v2978 = vadd.f32 %v2773, %v2977
  %v2979 = vand.u32 %v2165, 4294901760
  %v2980 = vsub.f32 %v2165, %v2979
  %v2981 = vand.u32 %v2980, 4294901760
  %2982 = vmatmul.f32.gmra.mxu0 %v2981
  %v2983 = vpop.f32.mrf.mxu0
  %v2984 = vadd.f32 %v2778, %v2983
  %v2985 = vand.u32 %v2168, 4294901760
  %v2986 = vsub.f32 %v2168, %v2985
  %v2987 = vand.u32 %v2986, 4294901760
  %2988 = vmatmul.f32.gmra.mxu0 %v2987
  %v2989 = vpop.f32.mrf.mxu0
  %v2990 = vadd.f32 %v2783, %v2989
  %v2991 = vand.u32 %v2171, 4294901760
  %v2992 = vsub.f32 %v2171, %v2991
  %v2993 = vand.u32 %v2992, 4294901760
  %2994 = vmatmul.f32.gmra.mxu0 %v2993
  %v2995 = vpop.f32.mrf.mxu0
  %v2996 = vadd.f32 %v2788, %v2995
  %v2997 = vand.u32 %v2174, 4294901760
  %v2998 = vsub.f32 %v2174, %v2997
  %v2999 = vand.u32 %v2998, 4294901760
  %3000 = vmatmul.f32.gmra.mxu0 %v2999
  %v3001 = vpop.f32.mrf.mxu0
  %v3002 = vadd.f32 %v2793, %v3001
  %v3003 = vand.u32 %v2177, 4294901760
  %v3004 = vsub.f32 %v2177, %v3003
  %v3005 = vand.u32 %v3004, 4294901760
  %3006 = vmatmul.f32.gmra.mxu0 %v3005
  %v3007 = vpop.f32.mrf.mxu0
  %v3008 = vadd.f32 %v2798, %v3007
  %v3009 = vand.u32 %v2180, 4294901760
  %v3010 = vsub.f32 %v2180, %v3009
  %v3011 = vand.u32 %v3010, 4294901760
  %3012 = vmatmul.f32.gmra.mxu0 %v3011
  %v3013 = vpop.f32.mrf.mxu0
  %v3014 = vadd.f32 %v2803, %v3013
  %v3015 = vand.u32 %v2183, 4294901760
  %v3016 = vsub.f32 %v2183, %v3015
  %v3017 = vand.u32 %v3016, 4294901760
  %3018 = vmatmul.f32.gmra.mxu0 %v3017
  %v3019 = vpop.f32.mrf.mxu0
  %v3020 = vadd.f32 %v2808, %v3019
  %v3021 = vand.u32 %v2186, 4294901760
  %v3022 = vsub.f32 %v2186, %v3021
  %v3023 = vand.u32 %v3022, 4294901760
  %3024 = vmatmul.f32.gmra.mxu0 %v3023
  %v3025 = vpop.f32.mrf.mxu0
  %v3026 = vadd.f32 %v2813, %v3025
  %3027 = vdwg.mxu0
  %3028 = vmatpush.msra.mxu0 0.0
  %3029 = vmatpush.msra.mxu0 0.0
  %3030 = vmatpush.msra.mxu0 0.0
  %3031 = vmatpush.msra.mxu0 0.0
  %3032 = vmatpush.msra.mxu0 0.0
  %3033 = vmatpush.msra.mxu0 0.0
  %3034 = vmatpush.msra.mxu0 0.0
  %3035 = vmatpush.msra.mxu0 0.0
  %3036 = vmatpush.msra.mxu0 0.0
  %3037 = vmatpush.msra.mxu0 0.0
  %3038 = vmatpush.msra.mxu0 0.0
  %3039 = vmatpush.msra.mxu0 0.0
  %v3040 = vand.u32 %v2023, 4294901760
  %v3041 = vsub.f32 %v2023, %v3040
  %v3042 = vand.u32 %v3041, 4294901760
  %3043 = vmatpush.msra.mxu0 %v3042
  %v3044 = vand.u32 %v2022, 4294901760
  %v3045 = vsub.f32 %v2022, %v3044
  %v3046 = vand.u32 %v3045, 4294901760
  %3047 = vmatpush.msra.mxu0 %v3046
  %v3048 = vand.u32 %v2021, 4294901760
  %v3049 = vsub.f32 %v2021, %v3048
  %v3050 = vand.u32 %v3049, 4294901760
  %3051 = vmatpush.msra.mxu0 %v3050
  %v3052 = vand.u32 %v2020, 4294901760
  %v3053 = vsub.f32 %v2020, %v3052
  %v3054 = vand.u32 %v3053, 4294901760
  %3055 = vmatpush.msra.mxu0 %v3054
  %v3056 = vand.u32 %v2093, 4294901760
  %3057 = vmatmul.f32.gmra.mxu0 %v3056
  %v3058 = vpop.f32.mrf.mxu0
  %v3059 = vadd.f32 %v2840, %v3058
  %v3060 = vand.u32 %v2096, 4294901760
  %3061 = vmatmul.f32.gmra.mxu0 %v3060
  %v3062 = vpop.f32.mrf.mxu0
  %v3063 = vadd.f32 %v2846, %v3062
  %v3064 = vand.u32 %v2099, 4294901760
  %3065 = vmatmul.f32.gmra.mxu0 %v3064
  %v3066 = vpop.f32.mrf.mxu0
  %v3067 = vadd.f32 %v2852, %v3066
  %v3068 = vand.u32 %v2102, 4294901760
  %3069 = vmatmul.f32.gmra.mxu0 %v3068
  %v3070 = vpop.f32.mrf.mxu0
  %v3071 = vadd.f32 %v2858, %v3070
  %v3072 = vand.u32 %v2105, 4294901760
  %3073 = vmatmul.f32.gmra.mxu0 %v3072
  %v3074 = vpop.f32.mrf.mxu0
  %v3075 = vadd.f32 %v2864, %v3074
  %v3076 = vand.u32 %v2108, 4294901760
  %3077 = vmatmul.f32.gmra.mxu0 %v3076
  %v3078 = vpop.f32.mrf.mxu0
  %v3079 = vadd.f32 %v2870, %v3078
  %v3080 = vand.u32 %v2111, 4294901760
  %3081 = vmatmul.f32.gmra.mxu0 %v3080
  %v3082 = vpop.f32.mrf.mxu0
  %v3083 = vadd.f32 %v2876, %v3082
  %v3084 = vand.u32 %v2114, 4294901760
  %3085 = vmatmul.f32.gmra.mxu0 %v3084
  %v3086 = vpop.f32.mrf.mxu0
  %v3087 = vadd.f32 %v2882, %v3086
  %v3088 = vand.u32 %v2117, 4294901760
  %3089 = vmatmul.f32.gmra.mxu0 %v3088
  %v3090 = vpop.f32.mrf.mxu0
  %v3091 = vadd.f32 %v2888, %v3090
  %v3092 = vand.u32 %v2120, 4294901760
  %3093 = vmatmul.f32.gmra.mxu0 %v3092
  %v3094 = vpop.f32.mrf.mxu0
  %v3095 = vadd.f32 %v2894, %v3094
  %v3096 = vand.u32 %v2123, 4294901760
  %3097 = vmatmul.f32.gmra.mxu0 %v3096
  %v3098 = vpop.f32.mrf.mxu0
  %v3099 = vadd.f32 %v2900, %v3098
  %v3100 = vand.u32 %v2126, 4294901760
  %3101 = vmatmul.f32.gmra.mxu0 %v3100
  %v3102 = vpop.f32.mrf.mxu0
  %v3103 = vadd.f32 %v2906, %v3102
  %v3104 = vand.u32 %v2129, 4294901760
  %3105 = vmatmul.f32.gmra.mxu0 %v3104
  %v3106 = vpop.f32.mrf.mxu0
  %v3107 = vadd.f32 %v2912, %v3106
  %v3108 = vand.u32 %v2132, 4294901760
  %3109 = vmatmul.f32.gmra.mxu0 %v3108
  %v3110 = vpop.f32.mrf.mxu0
  %v3111 = vadd.f32 %v2918, %v3110
  %v3112 = vand.u32 %v2135, 4294901760
  %3113 = vmatmul.f32.gmra.mxu0 %v3112
  %v3114 = vpop.f32.mrf.mxu0
  %v3115 = vadd.f32 %v2924, %v3114
  %v3116 = vand.u32 %v2138, 4294901760
  %3117 = vmatmul.f32.gmra.mxu0 %v3116
  %v3118 = vpop.f32.mrf.mxu0
  %v3119 = vadd.f32 %v2930, %v3118
  %v3120 = vand.u32 %v2141, 4294901760
  %3121 = vmatmul.f32.gmra.mxu0 %v3120
  %v3122 = vpop.f32.mrf.mxu0
  %v3123 = vadd.f32 %v2936, %v3122
  %v3124 = vand.u32 %v2144, 4294901760
  %3125 = vmatmul.f32.gmra.mxu0 %v3124
  %v3126 = vpop.f32.mrf.mxu0
  %v3127 = vadd.f32 %v2942, %v3126
  %v3128 = vand.u32 %v2147, 4294901760
  %3129 = vmatmul.f32.gmra.mxu0 %v3128
  %v3130 = vpop.f32.mrf.mxu0
  %v3131 = vadd.f32 %v2948, %v3130
  %v3132 = vand.u32 %v2150, 4294901760
  %3133 = vmatmul.f32.gmra.mxu0 %v3132
  %v3134 = vpop.f32.mrf.mxu0
  %v3135 = vadd.f32 %v2954, %v3134
  %v3136 = vand.u32 %v2153, 4294901760
  %3137 = vmatmul.f32.gmra.mxu0 %v3136
  %v3138 = vpop.f32.mrf.mxu0
  %v3139 = vadd.f32 %v2960, %v3138
  %v3140 = vand.u32 %v2156, 4294901760
  %3141 = vmatmul.f32.gmra.mxu0 %v3140
  %v3142 = vpop.f32.mrf.mxu0
  %v3143 = vadd.f32 %v2966, %v3142
  %v3144 = vand.u32 %v2159, 4294901760
  %3145 = vmatmul.f32.gmra.mxu0 %v3144
  %v3146 = vpop.f32.mrf.mxu0
  %v3147 = vadd.f32 %v2972, %v3146
  %v3148 = vand.u32 %v2162, 4294901760
  %3149 = vmatmul.f32.gmra.mxu0 %v3148
  %v3150 = vpop.f32.mrf.mxu0
  %v3151 = vadd.f32 %v2978, %v3150
  %v3152 = vand.u32 %v2165, 4294901760
  %3153 = vmatmul.f32.gmra.mxu0 %v3152
  %v3154 = vpop.f32.mrf.mxu0
  %v3155 = vadd.f32 %v2984, %v3154
  %v3156 = vand.u32 %v2168, 4294901760
  %3157 = vmatmul.f32.gmra.mxu0 %v3156
  %v3158 = vpop.f32.mrf.mxu0
  %v3159 = vadd.f32 %v2990, %v3158
  %v3160 = vand.u32 %v2171, 4294901760
  %3161 = vmatmul.f32.gmra.mxu0 %v3160
  %v3162 = vpop.f32.mrf.mxu0
  %v3163 = vadd.f32 %v2996, %v3162
  %v3164 = vand.u32 %v2174, 4294901760
  %3165 = vmatmul.f32.gmra.mxu0 %v3164
  %v3166 = vpop.f32.mrf.mxu0
  %v3167 = vadd.f32 %v3002, %v3166
  %v3168 = vand.u32 %v2177, 4294901760
  %3169 = vmatmul.f32.gmra.mxu0 %v3168
  %v3170 = vpop.f32.mrf.mxu0
  %v3171 = vadd.f32 %v3008, %v3170
  %v3172 = vand.u32 %v2180, 4294901760
  %3173 = vmatmul.f32.gmra.mxu0 %v3172
  %v3174 = vpop.f32.mrf.mxu0
  %v3175 = vadd.f32 %v3014, %v3174
  %v3176 = vand.u32 %v2183, 4294901760
  %3177 = vmatmul.f32.gmra.mxu0 %v3176
  %v3178 = vpop.f32.mrf.mxu0
  %v3179 = vadd.f32 %v3020, %v3178
  %v3180 = vand.u32 %v2186, 4294901760
  %3181 = vmatmul.f32.gmra.mxu0 %v3180
  %v3182 = vpop.f32.mrf.mxu0
  %v3183 = vadd.f32 %v3026, %v3182
  %3184 = vdwg.mxu0
  %3185 = vmatpush.msra.mxu0 0.0
  %3186 = vmatpush.msra.mxu0 0.0
  %3187 = vmatpush.msra.mxu0 0.0
  %3188 = vmatpush.msra.mxu0 0.0
  %3189 = vmatpush.msra.mxu0 0.0
  %3190 = vmatpush.msra.mxu0 0.0
  %3191 = vmatpush.msra.mxu0 0.0
  %3192 = vmatpush.msra.mxu0 0.0
  %3193 = vmatpush.msra.mxu0 0.0
  %3194 = vmatpush.msra.mxu0 0.0
  %3195 = vmatpush.msra.mxu0 0.0
  %3196 = vmatpush.msra.mxu0 0.0
  %v3197 = vand.u32 %v2023, 4294901760
  %3198 = vmatpush.msra.mxu0 %v3197
  %v3199 = vand.u32 %v2022, 4294901760
  %3200 = vmatpush.msra.mxu0 %v3199
  %v3201 = vand.u32 %v2021, 4294901760
  %3202 = vmatpush.msra.mxu0 %v3201
  %v3203 = vand.u32 %v2020, 4294901760
  %3204 = vmatpush.msra.mxu0 %v3203
  %v3205 = vand.u32 %v2093, 4294901760
  %3206 = vmatmul.f32.gmra.mxu0 %v3205
  %v3207 = vpop.f32.mrf.mxu0
  %v3208 = vadd.f32 %v3059, %v3207
  %v3209 = vand.u32 %v2096, 4294901760
  %3210 = vmatmul.f32.gmra.mxu0 %v3209
  %v3211 = vpop.f32.mrf.mxu0
  %v3212 = vadd.f32 %v3063, %v3211
  %v3213 = vand.u32 %v2099, 4294901760
  %3214 = vmatmul.f32.gmra.mxu0 %v3213
  %v3215 = vpop.f32.mrf.mxu0
  %v3216 = vadd.f32 %v3067, %v3215
  %v3217 = vand.u32 %v2102, 4294901760
  %3218 = vmatmul.f32.gmra.mxu0 %v3217
  %v3219 = vpop.f32.mrf.mxu0
  %v3220 = vadd.f32 %v3071, %v3219
  %v3221 = vand.u32 %v2105, 4294901760
  %3222 = vmatmul.f32.gmra.mxu0 %v3221
  %v3223 = vpop.f32.mrf.mxu0
  %v3224 = vadd.f32 %v3075, %v3223
  %v3225 = vand.u32 %v2108, 4294901760
  %3226 = vmatmul.f32.gmra.mxu0 %v3225
  %v3227 = vpop.f32.mrf.mxu0
  %v3228 = vadd.f32 %v3079, %v3227
  %v3229 = vand.u32 %v2111, 4294901760
  %3230 = vmatmul.f32.gmra.mxu0 %v3229
  %v3231 = vpop.f32.mrf.mxu0
  %v3232 = vadd.f32 %v3083, %v3231
  %v3233 = vand.u32 %v2114, 4294901760
  %3234 = vmatmul.f32.gmra.mxu0 %v3233
  %v3235 = vpop.f32.mrf.mxu0
  %v3236 = vadd.f32 %v3087, %v3235
  %v3237 = vand.u32 %v2117, 4294901760
  %3238 = vmatmul.f32.gmra.mxu0 %v3237
  %v3239 = vpop.f32.mrf.mxu0
  %v3240 = vadd.f32 %v3091, %v3239
  %v3241 = vand.u32 %v2120, 4294901760
  %3242 = vmatmul.f32.gmra.mxu0 %v3241
  %v3243 = vpop.f32.mrf.mxu0
  %v3244 = vadd.f32 %v3095, %v3243
  %v3245 = vand.u32 %v2123, 4294901760
  %3246 = vmatmul.f32.gmra.mxu0 %v3245
  %v3247 = vpop.f32.mrf.mxu0
  %v3248 = vadd.f32 %v3099, %v3247
  %v3249 = vand.u32 %v2126, 4294901760
  %3250 = vmatmul.f32.gmra.mxu0 %v3249
  %v3251 = vpop.f32.mrf.mxu0
  %v3252 = vadd.f32 %v3103, %v3251
  %v3253 = vand.u32 %v2129, 4294901760
  %3254 = vmatmul.f32.gmra.mxu0 %v3253
  %v3255 = vpop.f32.mrf.mxu0
  %v3256 = vadd.f32 %v3107, %v3255
  %v3257 = vand.u32 %v2132, 4294901760
  %3258 = vmatmul.f32.gmra.mxu0 %v3257
  %v3259 = vpop.f32.mrf.mxu0
  %v3260 = vadd.f32 %v3111, %v3259
  %v3261 = vand.u32 %v2135, 4294901760
  %3262 = vmatmul.f32.gmra.mxu0 %v3261
  %v3263 = vpop.f32.mrf.mxu0
  %v3264 = vadd.f32 %v3115, %v3263
  %v3265 = vand.u32 %v2138, 4294901760
  %3266 = vmatmul.f32.gmra.mxu0 %v3265
  %v3267 = vpop.f32.mrf.mxu0
  %v3268 = vadd.f32 %v3119, %v3267
  %v3269 = vand.u32 %v2141, 4294901760
  %3270 = vmatmul.f32.gmra.mxu0 %v3269
  %v3271 = vpop.f32.mrf.mxu0
  %v3272 = vadd.f32 %v3123, %v3271
  %v3273 = vand.u32 %v2144, 4294901760
  %3274 = vmatmul.f32.gmra.mxu0 %v3273
  %v3275 = vpop.f32.mrf.mxu0
  %v3276 = vadd.f32 %v3127, %v3275
  %v3277 = vand.u32 %v2147, 4294901760
  %3278 = vmatmul.f32.gmra.mxu0 %v3277
  %v3279 = vpop.f32.mrf.mxu0
  %v3280 = vadd.f32 %v3131, %v3279
  %v3281 = vand.u32 %v2150, 4294901760
  %3282 = vmatmul.f32.gmra.mxu0 %v3281
  %v3283 = vpop.f32.mrf.mxu0
  %v3284 = vadd.f32 %v3135, %v3283
  %v3285 = vand.u32 %v2153, 4294901760
  %3286 = vmatmul.f32.gmra.mxu0 %v3285
  %v3287 = vpop.f32.mrf.mxu0
  %v3288 = vadd.f32 %v3139, %v3287
  %v3289 = vand.u32 %v2156, 4294901760
  %3290 = vmatmul.f32.gmra.mxu0 %v3289
  %v3291 = vpop.f32.mrf.mxu0
  %v3292 = vadd.f32 %v3143, %v3291
  %v3293 = vand.u32 %v2159, 4294901760
  %3294 = vmatmul.f32.gmra.mxu0 %v3293
  %v3295 = vpop.f32.mrf.mxu0
  %v3296 = vadd.f32 %v3147, %v3295
  %v3297 = vand.u32 %v2162, 4294901760
  %3298 = vmatmul.f32.gmra.mxu0 %v3297
  %v3299 = vpop.f32.mrf.mxu0
  %v3300 = vadd.f32 %v3151, %v3299
  %v3301 = vand.u32 %v2165, 4294901760
  %3302 = vmatmul.f32.gmra.mxu0 %v3301
  %v3303 = vpop.f32.mrf.mxu0
  %v3304 = vadd.f32 %v3155, %v3303
  %v3305 = vand.u32 %v2168, 4294901760
  %3306 = vmatmul.f32.gmra.mxu0 %v3305
  %v3307 = vpop.f32.mrf.mxu0
  %v3308 = vadd.f32 %v3159, %v3307
  %v3309 = vand.u32 %v2171, 4294901760
  %3310 = vmatmul.f32.gmra.mxu0 %v3309
  %v3311 = vpop.f32.mrf.mxu0
  %v3312 = vadd.f32 %v3163, %v3311
  %v3313 = vand.u32 %v2174, 4294901760
  %3314 = vmatmul.f32.gmra.mxu0 %v3313
  %v3315 = vpop.f32.mrf.mxu0
  %v3316 = vadd.f32 %v3167, %v3315
  %v3317 = vand.u32 %v2177, 4294901760
  %3318 = vmatmul.f32.gmra.mxu0 %v3317
  %v3319 = vpop.f32.mrf.mxu0
  %v3320 = vadd.f32 %v3171, %v3319
  %v3321 = vand.u32 %v2180, 4294901760
  %3322 = vmatmul.f32.gmra.mxu0 %v3321
  %v3323 = vpop.f32.mrf.mxu0
  %v3324 = vadd.f32 %v3175, %v3323
  %v3325 = vand.u32 %v2183, 4294901760
  %3326 = vmatmul.f32.gmra.mxu0 %v3325
  %v3327 = vpop.f32.mrf.mxu0
  %v3328 = vadd.f32 %v3179, %v3327
  %v3329 = vand.u32 %v2186, 4294901760
  %3330 = vmatmul.f32.gmra.mxu0 %v3329
  %v3331 = vpop.f32.mrf.mxu0
  %v3332 = vadd.f32 %v3183, %v3331
  %3333 = vdwg.mxu0
  %vm3334 = vcmask 130048
  %3335 = vst.msk [vmem:[%s11] sm:$0xff] %vm3334, %v3208
  %3336 = vst.msk [vmem:[%s11 + $0x8] sm:$0xff] %vm3334, %v3212
  %3337 = vst.msk [vmem:[%s11 + $0x10] sm:$0xff] %vm3334, %v3216
  %3338 = vst.msk [vmem:[%s11 + $0x18] sm:$0xff] %vm3334, %v3220
  %3339 = vst.msk [vmem:[%s11 + $0x20] sm:$0xff] %vm3334, %v3224
  %3340 = vst.msk [vmem:[%s11 + $0x28] sm:$0xff] %vm3334, %v3228
  %3341 = vst.msk [vmem:[%s11 + $0x30] sm:$0xff] %vm3334, %v3232
  %3342 = vst.msk [vmem:[%s11 + $0x38] sm:$0xff] %vm3334, %v3236
  %3343 = vst.msk [vmem:[%s11 + $0x40] sm:$0xff] %vm3334, %v3240
  %3344 = vst.msk [vmem:[%s11 + $0x48] sm:$0xff] %vm3334, %v3244
  %3345 = vst.msk [vmem:[%s11 + $0x50] sm:$0xff] %vm3334, %v3248
  %3346 = vst.msk [vmem:[%s11 + $0x58] sm:$0xff] %vm3334, %v3252
  %3347 = vst.msk [vmem:[%s11 + $0x60] sm:$0xff] %vm3334, %v3256
  %3348 = vst.msk [vmem:[%s11 + $0x68] sm:$0xff] %vm3334, %v3260
  %3349 = vst.msk [vmem:[%s11 + $0x70] sm:$0xff] %vm3334, %v3264
  %3350 = vst.msk [vmem:[%s11 + $0x78] sm:$0xff] %vm3334, %v3268
  %3351 = vst.msk [vmem:[%s11 + $0x80] sm:$0xff] %vm3334, %v3272
  %3352 = vst.msk [vmem:[%s11 + $0x88] sm:$0xff] %vm3334, %v3276
  %3353 = vst.msk [vmem:[%s11 + $0x90] sm:$0xff] %vm3334, %v3280
  %3354 = vst.msk [vmem:[%s11 + $0x98] sm:$0xff] %vm3334, %v3284
  %3355 = vst.msk [vmem:[%s11 + $0xa0] sm:$0xff] %vm3334, %v3288
  %3356 = vst.msk [vmem:[%s11 + $0xa8] sm:$0xff] %vm3334, %v3292
  %3357 = vst.msk [vmem:[%s11 + $0xb0] sm:$0xff] %vm3334, %v3296
  %3358 = vst.msk [vmem:[%s11 + $0xb8] sm:$0xff] %vm3334, %v3300
  %3359 = vst.msk [vmem:[%s11 + $0xc0] sm:$0xff] %vm3334, %v3304
  %3360 = vst.msk [vmem:[%s11 + $0xc8] sm:$0xff] %vm3334, %v3308
  %3361 = vst.msk [vmem:[%s11 + $0xd0] sm:$0xff] %vm3334, %v3312
  %3362 = vst.msk [vmem:[%s11 + $0xd8] sm:$0xff] %vm3334, %v3316
  %3363 = vst.msk [vmem:[%s11 + $0xe0] sm:$0xff] %vm3334, %v3320
  %3364 = vst.msk [vmem:[%s11 + $0xe8] sm:$0xff] %vm3334, %v3324
  %3365 = vst.msk [vmem:[%s11 + $0xf0] sm:$0xff] %vm3334, %v3328
  %3366 = vst.msk [vmem:[%s11 + $0xf8] sm:$0xff] %vm3334, %v3332
  // Predicated region
  $region46: #{tpu_custom_call.1} parent=0 // pred_check
    _
  $region47: #{tpu_custom_call.1} parent=0 // pred_check_branch
    %3368 = sbr.rel (0) target = $region49
  $region48: #{tpu_custom_call.1} parent=0 // pred_region
    _
  $region49: #{tpu_custom_call.1} parent=0 // pred_fallthru
    _
  // Predicated region
  $region50: #{tpu_custom_call.1} parent=0 // pred_check
    _
  $region51: #{tpu_custom_call.1} parent=0 // pred_check_branch
    %3370 = sbr.rel (0) target = $region53
  $region52: #{tpu_custom_call.1} parent=0 // pred_region
    _
  $region53: #{tpu_custom_call.1} parent=0 // pred_fallthru
    _

</llo_original>
